<compile_context>
chip_gen: v7x
topology: tpu7x:2x2x1
jax: 0.10.0
libtpu: 0.0.40
codegen_flags: <defaults>
</compile_context>

<pallas_src>
import functools

import jax
import jax.numpy as jnp
from jax import lax
from jax.experimental import pallas as pl
from jax.experimental.pallas import tpu as pltpu

KH = KW = 3           # conv kernel_size=3, stride=1, padding=1
POOL = 3              # pool_size=3
POOL_STRIDE = 2       # pool_stride=2
POOL_PAD = 1          # pool padding=1
BN_EPS = 1e-5
LANE = 128            # TPU lane width


def _round_up(x, m):
    return (x + m - 1) // m * m


def _pool_block_kernel(x_ref, w_ref, b_ref, out_ref, apad_ref, *,
                       nb, H, W, Wpp, OH, OW):
    """conv3x3 + folded-BN bias + ReLU + maxpool3x3/s2/p1 for `nb` images.

    x_ref   : (nb, Lx, Cin)      bf16  flat zero-padded input, row pitch Wpp (Wpp % 8 == 0)
    w_ref   : (9, Cin, Cpo)      bf16  BN-folded conv weights, tap-major
    b_ref   : (1, Cpo)           f32   BN-folded bias
    out_ref : (nb, OH, OW, Cpo)  bf16  pooled output
    apad_ref: (H+2, Wpp, Cpo)    f32   pool-padded activation plane (scratch)
    """
    Cpo = out_ref.shape[-1]
    M = H * Wpp                       # conv output rows computed (full padded pitch)

    for img in range(nb):
        # ---- conv: 9 accumulating MXU dots over contiguous flat windows -----------
        # act[p] for p = h*Wpp + (w+1) is the conv output at (h, w); column 0 of each
        # row holds conv-at-(-1) garbage and columns > W+1 hold junk (never read).
        acc = None
        for kh in range(KH):
            for kw in range(KW):
                xw = x_ref[img, pl.ds(kh * Wpp + kw, M), :]          # (M, Cin) bf16
                d = jnp.dot(xw, w_ref[kh * KW + kw],
                            preferred_element_type=jnp.float32)      # (M, Cpo) f32
                acc = d if acc is None else acc + d

        act = jnp.maximum(acc + b_ref[...], 0.0)                     # folded bias + ReLU

        # ---- drop the activation into the pool-padded plane -----------------------
        # Wpp % 8 == 0 -> the reshape is a pure regrouping and the store is aligned
        # and unmasked.  Borders are zeroed AFTER the store (they receive garbage /
        # stale data otherwise); ReLU >= 0 makes zero padding equivalent to -inf.
        apad_ref[1:H + 1, :, :] = act.reshape(H, Wpp, Cpo)
        zrow = jnp.zeros((1, Wpp, Cpo), jnp.float32)
        zcol = jnp.zeros((H + 2, 1, Cpo), jnp.float32)
        apad_ref[0:1, :, :] = zrow                 # top pool pad
        apad_ref[H + 1:H + 2, :, :] = zrow         # bottom pool pad (needed for odd H)
        apad_ref[:, 0:1, :] = zcol                 # left pool pad
        apad_ref[:, W + 1:W + 2, :] = zcol         # right pool pad (needed for odd W)

        # ---- MaxPool2d 3x3 / stride 2 / pad 1 --------------------------------------
        # Column taps: three sublane-strided reads, reduced with VPU maxes.
        c0 = apad_ref[:, pl.ds(0, OW, stride=POOL_STRIDE), :]
        c1 = apad_ref[:, pl.ds(1, OW, stride=POOL_STRIDE), :]
        c2 = apad_ref[:, pl.ds(2, OW, stride=POOL_STRIDE), :]
        cmax = jnp.maximum(jnp.maximum(c0, c1), c2)                  # (H+2, OW, Cpo)

        # Row taps: stride-2 subsample along the *leading* axis of the value
        # (free vreg regrouping: reshape/index/concat touch no layout axes).
        pairs = cmax[0:2 * OH].reshape(OH, 2, OW, Cpo)
        ev = pairs[:, 0]                                             # rows 0,2,...,2*OH-2
        od = pairs[:, 1]                                             # rows 1,3,...,2*OH-1
        th = jnp.concatenate([ev[1:], cmax[2 * OH:2 * OH + 1]],
                             axis=0)                                 # rows 2,4,...,2*OH
        pooled = jnp.maximum(jnp.maximum(ev, od), th)                # (OH, OW, Cpo)

        out_ref[img, :, :, :] = pooled.astype(out_ref.dtype)


def pool_block_forward(x_nchw, params, *, images_per_step=None):
    """NCHW in -> NCHW out.  Eval-mode BN folded in the wrapper; kernel does the rest."""
    w_oihw, b, gamma, beta, mean, var = params
    N, Cin, H, W = x_nchw.shape
    Cout = w_oihw.shape[0]
    OH = (H + 2 * POOL_PAD - POOL) // POOL_STRIDE + 1
    OW = (W + 2 * POOL_PAD - POOL) // POOL_STRIDE + 1
    Cpo = _round_up(Cout, LANE)
    Wpp = _round_up(W + 3, 8)         # left pad 2 + W + right pad >=1, 8-aligned pitch
    Lx = (H + 3) * Wpp                # top pad 1 + H + 2 bottom pad rows (keeps tap
                                      # windows in-bounds; garbage reads hit zeros)
    f32 = jnp.float32

    # Images per grid step: amortize per-step overhead for small images, but keep at
    # least 2 grid steps so the v7x megacore can shard the "parallel" batch axis.
    if images_per_step is None:
        images_per_step = 1
        for cand in (8, 4, 2):
            if N % cand == 0 and N // cand >= 2:
                images_per_step = cand
                break
    nb = images_per_step
    assert N % nb == 0

    # ---- fold eval-mode BatchNorm + conv bias into the conv weights / bias --------
    scale = gamma.astype(f32) * lax.rsqrt(var.astype(f32) + BN_EPS)        # (Cout,)
    w_fold = w_oihw.astype(f32) * scale[:, None, None, None]               # (Cout,Cin,3,3)
    b_fold = (b.astype(f32) - mean.astype(f32)) * scale + beta.astype(f32)

    # Weights -> (9, Cin, Cpo) bf16, tap-major (kh*3+kw); only Cout is lane-padded.
    w_t = jnp.transpose(w_fold, (2, 3, 1, 0)).reshape(KH * KW, Cin, Cout)
    w_t = jnp.pad(w_t, ((0, 0), (0, 0), (0, Cpo - Cout))).astype(jnp.bfloat16)
    b_row = jnp.pad(b_fold, (0, Cpo - Cout)).reshape(1, Cpo).astype(f32)

    # Input -> NHWC, asymmetric zero pad (top 1 / bottom 2 / left 2 / right to Wpp),
    # flatten rows to pitch Wpp, cast bf16.  Channels stay at their natural count.
    x_nhwc = jnp.transpose(x_nchw, (0, 2, 3, 1)).astype(f32)
    x_pad = jnp.pad(x_nhwc, ((0, 0), (1, 2), (2, Wpp - W - 2), (0, 0)))
    x_flat = x_pad.reshape(N, Lx, Cin).astype(jnp.bfloat16)

    kernel = functools.partial(_pool_block_kernel, nb=nb, H=H, W=W,
                               Wpp=Wpp, OH=OH, OW=OW)

    out_padded = pl.pallas_call(
        kernel,
        out_shape=jax.ShapeDtypeStruct((N, OH, OW, Cpo), jnp.bfloat16),
        grid=(N // nb,),
        in_specs=[
            pl.BlockSpec((nb, Lx, Cin), lambda n: (n, 0, 0)),
            pl.BlockSpec((KH * KW, Cin, Cpo), lambda n: (0, 0, 0)),
            pl.BlockSpec((1, Cpo), lambda n: (0, 0)),
        ],
        out_specs=pl.BlockSpec((nb, OH, OW, Cpo), lambda n: (n, 0, 0, 0)),
        scratch_shapes=[
            pltpu.VMEM((H + 2, Wpp, Cpo), jnp.float32),   # pool-padded activation plane
        ],
        compiler_params=pltpu.CompilerParams(
            dimension_semantics=("parallel",),            # batch axis -> megacore shards
            vmem_limit_bytes=32 * 1024 * 1024,
        ),
    )(x_flat, w_t, b_row)

    # Drop channel lane padding, back to NCHW, restore f32.
    out = out_padded[..., :Cout].astype(f32)
    return jnp.transpose(out, (0, 3, 1, 2))


def pool_block_ref(x, params):
    """Pure-JAX f32 reference (NCHW), mirrors the PyTorch forward (eval-mode BN, ReLU)."""
    w, b, gamma, beta, mean, var = params
    y = lax.conv_general_dilated(x, w, (1, 1), ((1, 1), (1, 1)),
                                 dimension_numbers=('NCHW', 'OIHW', 'NCHW'))
    y = y + b.reshape(1, -1, 1, 1)
    scale = gamma / jnp.sqrt(var + BN_EPS)
    shift = beta - mean * scale
    y = jnp.maximum(y * scale.reshape(1, -1, 1, 1) + shift.reshape(1, -1, 1, 1), 0.0)
    y = lax.reduce_window(y, -jnp.inf, lax.max,
                          (1, 1, POOL, POOL), (1, 1, POOL_STRIDE, POOL_STRIDE),
                          padding=((0, 0), (0, 0), (1, 1), (1, 1)))
    return y


if __name__ == "__main__":
    key = jax.random.PRNGKey(0)
    k1, k2, k3, k4, k5, k6, k7 = jax.random.split(key, 7)
    N, Cin, H, W, Cout = 2, 4, 16, 16, 8

    x = jax.random.normal(k1, (N, Cin, H, W), jnp.float32)
    w = 0.1 * jax.random.normal(k2, (Cout, Cin, KH, KW), jnp.float32)
    b = 0.1 * jax.random.normal(k3, (Cout,), jnp.float32)
    gamma = 1.0 + 0.1 * jax.random.normal(k4, (Cout,), jnp.float32)
    beta = 0.1 * jax.random.normal(k5, (Cout,), jnp.float32)
    mean = 0.1 * jax.random.normal(k6, (Cout,), jnp.float32)
    var = jax.random.uniform(k7, (Cout,), jnp.float32, minval=0.5, maxval=1.5)
    params = (w, b, gamma, beta, mean, var)

    forward = jax.jit(pool_block_forward)
    out = jax.block_until_ready(forward(x, params))
    assert out.shape == (N, Cout, 8, 8), out.shape

    ref = pool_block_ref(x, params)
    err = float(jnp.max(jnp.abs(out - ref)))
    # bf16 conv operands + bf16 output store (f32 accumulation) vs. the pure-f32 reference.
    if err > 5e-2:
        raise AssertionError(f"kernel/reference mismatch, max abs err = {err}")
    print("KERNEL_OK")
</pallas_src>

<mosaic_0001>
module attributes {stable_mosaic.version = 11 : i64} {
  func.func @_pool_block_kernel(%arg0: i32, %arg1: memref<1x456x4xbf16, #tpu.memory_space<vmem>>, %arg2: memref<9x4x128xbf16, #tpu.memory_space<vmem>>, %arg3: memref<1x128xf32, #tpu.memory_space<vmem>>, %arg4: memref<1x8x8x128xbf16, #tpu.memory_space<vmem>>, %arg5: memref<18x24x128xf32, #tpu.memory_space<vmem>>) attributes {dimension_semantics = [#tpu.dimension_semantics<parallel>], iteration_bounds = array<i64: 2>, scalar_prefetch = 0 : i64, scratch_operands = 1 : i64, tpu.core_type = #tpu.core_type<tc>, window_params = [{transform_indices = @transform_0, window_bounds = array<i64: 1, 456, 4>}, {pipeline_mode = #tpu.pipeline_mode<synchronous>, transform_indices = @transform_1, window_bounds = array<i64: 9, 4, 128>}, {pipeline_mode = #tpu.pipeline_mode<synchronous>, transform_indices = @transform_2, window_bounds = array<i64: 1, 128>}, {transform_indices = @transform_3, window_bounds = array<i64: 1, 8, 8, 128>}]} {
    %c0 = arith.constant 0 : index
    %c0_0 = arith.constant 0 : index
    %c0_1 = arith.constant 0 : index
    %0 = vector.load %arg1[%c0, %c0_0, %c0_1] : memref<1x456x4xbf16, #tpu.memory_space<vmem>>, vector<1x384x4xbf16>
    %1 = vector.shape_cast %0 : vector<1x384x4xbf16> to vector<384x4xbf16>
    %c0_2 = arith.constant 0 : index
    %c0_3 = arith.constant 0 : index
    %c0_4 = arith.constant 0 : index
    %2 = vector.load %arg2[%c0_2, %c0_3, %c0_4] : memref<9x4x128xbf16, #tpu.memory_space<vmem>>, vector<1x4x128xbf16>
    %3 = vector.shape_cast %2 : vector<1x4x128xbf16> to vector<4x128xbf16>
    %cst = arith.constant dense<0.000000e+00> : vector<384x128xf32>
    %4 = tpu.matmul %1, %3, %cst {dimension_numbers = #tpu.dot_dimension_numbers<[1], [0], [0], [1], [0, 0, 1, 1], [], []>} : vector<384x4xbf16>, vector<4x128xbf16>, vector<384x128xf32> -> vector<384x128xf32>
    %c0_5 = arith.constant 0 : index
    %c1 = arith.constant 1 : index
    %c0_6 = arith.constant 0 : index
    %5 = vector.load %arg1[%c0_5, %c1, %c0_6] : memref<1x456x4xbf16, #tpu.memory_space<vmem>>, vector<1x384x4xbf16>
    %6 = vector.shape_cast %5 : vector<1x384x4xbf16> to vector<384x4xbf16>
    %c1_7 = arith.constant 1 : index
    %c0_8 = arith.constant 0 : index
    %c0_9 = arith.constant 0 : index
    %7 = vector.load %arg2[%c1_7, %c0_8, %c0_9] : memref<9x4x128xbf16, #tpu.memory_space<vmem>>, vector<1x4x128xbf16>
    %8 = vector.shape_cast %7 : vector<1x4x128xbf16> to vector<4x128xbf16>
    %cst_10 = arith.constant dense<0.000000e+00> : vector<384x128xf32>
    %9 = tpu.matmul %6, %8, %cst_10 {dimension_numbers = #tpu.dot_dimension_numbers<[1], [0], [0], [1], [0, 0, 1, 1], [], []>} : vector<384x4xbf16>, vector<4x128xbf16>, vector<384x128xf32> -> vector<384x128xf32>
    %10 = arith.addf %4, %9 : vector<384x128xf32>
    %c0_11 = arith.constant 0 : index
    %c2 = arith.constant 2 : index
    %c0_12 = arith.constant 0 : index
    %11 = vector.load %arg1[%c0_11, %c2, %c0_12] : memref<1x456x4xbf16, #tpu.memory_space<vmem>>, vector<1x384x4xbf16>
    %12 = vector.shape_cast %11 : vector<1x384x4xbf16> to vector<384x4xbf16>
    %c2_13 = arith.constant 2 : index
    %c0_14 = arith.constant 0 : index
    %c0_15 = arith.constant 0 : index
    %13 = vector.load %arg2[%c2_13, %c0_14, %c0_15] : memref<9x4x128xbf16, #tpu.memory_space<vmem>>, vector<1x4x128xbf16>
    %14 = vector.shape_cast %13 : vector<1x4x128xbf16> to vector<4x128xbf16>
    %cst_16 = arith.constant dense<0.000000e+00> : vector<384x128xf32>
    %15 = tpu.matmul %12, %14, %cst_16 {dimension_numbers = #tpu.dot_dimension_numbers<[1], [0], [0], [1], [0, 0, 1, 1], [], []>} : vector<384x4xbf16>, vector<4x128xbf16>, vector<384x128xf32> -> vector<384x128xf32>
    %16 = arith.addf %10, %15 : vector<384x128xf32>
    %c0_17 = arith.constant 0 : index
    %c24 = arith.constant 24 : index
    %c0_18 = arith.constant 0 : index
    %17 = vector.load %arg1[%c0_17, %c24, %c0_18] : memref<1x456x4xbf16, #tpu.memory_space<vmem>>, vector<1x384x4xbf16>
    %18 = vector.shape_cast %17 : vector<1x384x4xbf16> to vector<384x4xbf16>
    %c3 = arith.constant 3 : index
    %c0_19 = arith.constant 0 : index
    %c0_20 = arith.constant 0 : index
    %19 = vector.load %arg2[%c3, %c0_19, %c0_20] : memref<9x4x128xbf16, #tpu.memory_space<vmem>>, vector<1x4x128xbf16>
    %20 = vector.shape_cast %19 : vector<1x4x128xbf16> to vector<4x128xbf16>
    %cst_21 = arith.constant dense<0.000000e+00> : vector<384x128xf32>
    %21 = tpu.matmul %18, %20, %cst_21 {dimension_numbers = #tpu.dot_dimension_numbers<[1], [0], [0], [1], [0, 0, 1, 1], [], []>} : vector<384x4xbf16>, vector<4x128xbf16>, vector<384x128xf32> -> vector<384x128xf32>
    %22 = arith.addf %16, %21 : vector<384x128xf32>
    %c0_22 = arith.constant 0 : index
    %c25 = arith.constant 25 : index
    %c0_23 = arith.constant 0 : index
    %23 = vector.load %arg1[%c0_22, %c25, %c0_23] : memref<1x456x4xbf16, #tpu.memory_space<vmem>>, vector<1x384x4xbf16>
    %24 = vector.shape_cast %23 : vector<1x384x4xbf16> to vector<384x4xbf16>
    %c4 = arith.constant 4 : index
    %c0_24 = arith.constant 0 : index
    %c0_25 = arith.constant 0 : index
    %25 = vector.load %arg2[%c4, %c0_24, %c0_25] : memref<9x4x128xbf16, #tpu.memory_space<vmem>>, vector<1x4x128xbf16>
    %26 = vector.shape_cast %25 : vector<1x4x128xbf16> to vector<4x128xbf16>
    %cst_26 = arith.constant dense<0.000000e+00> : vector<384x128xf32>
    %27 = tpu.matmul %24, %26, %cst_26 {dimension_numbers = #tpu.dot_dimension_numbers<[1], [0], [0], [1], [0, 0, 1, 1], [], []>} : vector<384x4xbf16>, vector<4x128xbf16>, vector<384x128xf32> -> vector<384x128xf32>
    %28 = arith.addf %22, %27 : vector<384x128xf32>
    %c0_27 = arith.constant 0 : index
    %c26 = arith.constant 26 : index
    %c0_28 = arith.constant 0 : index
    %29 = vector.load %arg1[%c0_27, %c26, %c0_28] : memref<1x456x4xbf16, #tpu.memory_space<vmem>>, vector<1x384x4xbf16>
    %30 = vector.shape_cast %29 : vector<1x384x4xbf16> to vector<384x4xbf16>
    %c5 = arith.constant 5 : index
    %c0_29 = arith.constant 0 : index
    %c0_30 = arith.constant 0 : index
    %31 = vector.load %arg2[%c5, %c0_29, %c0_30] : memref<9x4x128xbf16, #tpu.memory_space<vmem>>, vector<1x4x128xbf16>
    %32 = vector.shape_cast %31 : vector<1x4x128xbf16> to vector<4x128xbf16>
    %cst_31 = arith.constant dense<0.000000e+00> : vector<384x128xf32>
    %33 = tpu.matmul %30, %32, %cst_31 {dimension_numbers = #tpu.dot_dimension_numbers<[1], [0], [0], [1], [0, 0, 1, 1], [], []>} : vector<384x4xbf16>, vector<4x128xbf16>, vector<384x128xf32> -> vector<384x128xf32>
    %34 = arith.addf %28, %33 : vector<384x128xf32>
    %c0_32 = arith.constant 0 : index
    %c48 = arith.constant 48 : index
    %c0_33 = arith.constant 0 : index
    %35 = vector.load %arg1[%c0_32, %c48, %c0_33] : memref<1x456x4xbf16, #tpu.memory_space<vmem>>, vector<1x384x4xbf16>
    %36 = vector.shape_cast %35 : vector<1x384x4xbf16> to vector<384x4xbf16>
    %c6 = arith.constant 6 : index
    %c0_34 = arith.constant 0 : index
    %c0_35 = arith.constant 0 : index
    %37 = vector.load %arg2[%c6, %c0_34, %c0_35] : memref<9x4x128xbf16, #tpu.memory_space<vmem>>, vector<1x4x128xbf16>
    %38 = vector.shape_cast %37 : vector<1x4x128xbf16> to vector<4x128xbf16>
    %cst_36 = arith.constant dense<0.000000e+00> : vector<384x128xf32>
    %39 = tpu.matmul %36, %38, %cst_36 {dimension_numbers = #tpu.dot_dimension_numbers<[1], [0], [0], [1], [0, 0, 1, 1], [], []>} : vector<384x4xbf16>, vector<4x128xbf16>, vector<384x128xf32> -> vector<384x128xf32>
    %40 = arith.addf %34, %39 : vector<384x128xf32>
    %c0_37 = arith.constant 0 : index
    %c49 = arith.constant 49 : index
    %c0_38 = arith.constant 0 : index
    %41 = vector.load %arg1[%c0_37, %c49, %c0_38] : memref<1x456x4xbf16, #tpu.memory_space<vmem>>, vector<1x384x4xbf16>
    %42 = vector.shape_cast %41 : vector<1x384x4xbf16> to vector<384x4xbf16>
    %c7 = arith.constant 7 : index
    %c0_39 = arith.constant 0 : index
    %c0_40 = arith.constant 0 : index
    %43 = vector.load %arg2[%c7, %c0_39, %c0_40] : memref<9x4x128xbf16, #tpu.memory_space<vmem>>, vector<1x4x128xbf16>
    %44 = vector.shape_cast %43 : vector<1x4x128xbf16> to vector<4x128xbf16>
    %cst_41 = arith.constant dense<0.000000e+00> : vector<384x128xf32>
    %45 = tpu.matmul %42, %44, %cst_41 {dimension_numbers = #tpu.dot_dimension_numbers<[1], [0], [0], [1], [0, 0, 1, 1], [], []>} : vector<384x4xbf16>, vector<4x128xbf16>, vector<384x128xf32> -> vector<384x128xf32>
    %46 = arith.addf %40, %45 : vector<384x128xf32>
    %c0_42 = arith.constant 0 : index
    %c50 = arith.constant 50 : index
    %c0_43 = arith.constant 0 : index
    %47 = vector.load %arg1[%c0_42, %c50, %c0_43] : memref<1x456x4xbf16, #tpu.memory_space<vmem>>, vector<1x384x4xbf16>
    %48 = vector.shape_cast %47 : vector<1x384x4xbf16> to vector<384x4xbf16>
    %c8 = arith.constant 8 : index
    %c0_44 = arith.constant 0 : index
    %c0_45 = arith.constant 0 : index
    %49 = vector.load %arg2[%c8, %c0_44, %c0_45] : memref<9x4x128xbf16, #tpu.memory_space<vmem>>, vector<1x4x128xbf16>
    %50 = vector.shape_cast %49 : vector<1x4x128xbf16> to vector<4x128xbf16>
    %cst_46 = arith.constant dense<0.000000e+00> : vector<384x128xf32>
    %51 = tpu.matmul %48, %50, %cst_46 {dimension_numbers = #tpu.dot_dimension_numbers<[1], [0], [0], [1], [0, 0, 1, 1], [], []>} : vector<384x4xbf16>, vector<4x128xbf16>, vector<384x128xf32> -> vector<384x128xf32>
    %52 = arith.addf %46, %51 : vector<384x128xf32>
    %c0_47 = arith.constant 0 : index
    %c0_48 = arith.constant 0 : index
    %53 = vector.load %arg3[%c0_47, %c0_48] : memref<1x128xf32, #tpu.memory_space<vmem>>, vector<1x128xf32>
    %54 = vector.broadcast %53 : vector<1x128xf32> to vector<384x128xf32>
    %55 = arith.addf %52, %54 : vector<384x128xf32>
    %cst_49 = arith.constant 0.000000e+00 : f32
    %56 = vector.broadcast %cst_49 : f32 to vector<384x128xf32>
    %57 = arith.maximumf %55, %56 : vector<384x128xf32>
    %58 = vector.shape_cast %57 : vector<384x128xf32> to vector<16x24x128xf32>
    %c1_50 = arith.constant 1 : index
    %c0_51 = arith.constant 0 : index
    %c0_52 = arith.constant 0 : index
    %59 = vector.load %arg5[%c1_50, %c0_51, %c0_52] : memref<18x24x128xf32, #tpu.memory_space<vmem>>, vector<16x24x128xf32>
    tpu.vector_store %arg5[%c1_50, %c0_51, %c0_52], %58 {strides = array<i32>} : memref<18x24x128xf32, #tpu.memory_space<vmem>>, vector<16x24x128xf32>,
    %cst_53 = arith.constant 0.000000e+00 : f32
    %60 = vector.broadcast %cst_53 : f32 to vector<1x24x128xf32>
    %cst_54 = arith.constant 0.000000e+00 : f32
    %61 = vector.broadcast %cst_54 : f32 to vector<18x1x128xf32>
    %c0_55 = arith.constant 0 : index
    %c0_56 = arith.constant 0 : index
    %c0_57 = arith.constant 0 : index
    %62 = vector.load %arg5[%c0_55, %c0_56, %c0_57] : memref<18x24x128xf32, #tpu.memory_space<vmem>>, vector<1x24x128xf32>
    tpu.vector_store %arg5[%c0_55, %c0_56, %c0_57], %60 {strides = array<i32>} : memref<18x24x128xf32, #tpu.memory_space<vmem>>, vector<1x24x128xf32>,
    %c17 = arith.constant 17 : index
    %c0_58 = arith.constant 0 : index
    %c0_59 = arith.constant 0 : index
    %63 = vector.load %arg5[%c17, %c0_58, %c0_59] : memref<18x24x128xf32, #tpu.memory_space<vmem>>, vector<1x24x128xf32>
    tpu.vector_store %arg5[%c17, %c0_58, %c0_59], %60 {strides = array<i32>} : memref<18x24x128xf32, #tpu.memory_space<vmem>>, vector<1x24x128xf32>,
    %c0_60 = arith.constant 0 : index
    %c0_61 = arith.constant 0 : index
    %c0_62 = arith.constant 0 : index
    %64 = vector.load %arg5[%c0_60, %c0_61, %c0_62] : memref<18x24x128xf32, #tpu.memory_space<vmem>>, vector<18x1x128xf32>
    tpu.vector_store %arg5[%c0_60, %c0_61, %c0_62], %61 {strides = array<i32>} : memref<18x24x128xf32, #tpu.memory_space<vmem>>, vector<18x1x128xf32>,
    %c0_63 = arith.constant 0 : index
    %c17_64 = arith.constant 17 : index
    %c0_65 = arith.constant 0 : index
    %65 = vector.load %arg5[%c0_63, %c17_64, %c0_65] : memref<18x24x128xf32, #tpu.memory_space<vmem>>, vector<18x1x128xf32>
    tpu.vector_store %arg5[%c0_63, %c17_64, %c0_65], %61 {strides = array<i32>} : memref<18x24x128xf32, #tpu.memory_space<vmem>>, vector<18x1x128xf32>,
    %c0_66 = arith.constant 0 : index
    %c0_67 = arith.constant 0 : index
    %c0_68 = arith.constant 0 : index
    %66 = tpu.strided_load %arg5[%c0_66, %c0_67, %c0_68] {strides = array<i32: 1, 2, 1>} : memref<18x24x128xf32, #tpu.memory_space<vmem>>, vector<18x8x128xf32>
    %c0_69 = arith.constant 0 : index
    %c1_70 = arith.constant 1 : index
    %c0_71 = arith.constant 0 : index
    %67 = tpu.strided_load %arg5[%c0_69, %c1_70, %c0_71] {strides = array<i32: 1, 2, 1>} : memref<18x24x128xf32, #tpu.memory_space<vmem>>, vector<18x8x128xf32>
    %c0_72 = arith.constant 0 : index
    %c2_73 = arith.constant 2 : index
    %c0_74 = arith.constant 0 : index
    %68 = tpu.strided_load %arg5[%c0_72, %c2_73, %c0_74] {strides = array<i32: 1, 2, 1>} : memref<18x24x128xf32, #tpu.memory_space<vmem>>, vector<18x8x128xf32>
    %69 = arith.maximumf %66, %67 : vector<18x8x128xf32>
    %70 = arith.maximumf %69, %68 : vector<18x8x128xf32>
    %71 = vector.extract_strided_slice %70 {offsets = [0, 0, 0], sizes = [16, 8, 128], strides = [1, 1, 1]} : vector<18x8x128xf32> to vector<16x8x128xf32>
    %72 = vector.shape_cast %71 : vector<16x8x128xf32> to vector<8x2x8x128xf32>
    %73 = vector.extract_strided_slice %72 {offsets = [0, 0, 0, 0], sizes = [8, 1, 8, 128], strides = [1, 1, 1, 1]} : vector<8x2x8x128xf32> to vector<8x1x8x128xf32>
    %74 = vector.shape_cast %73 : vector<8x1x8x128xf32> to vector<8x8x128xf32>
    %75 = vector.extract_strided_slice %72 {offsets = [0, 1, 0, 0], sizes = [8, 1, 8, 128], strides = [1, 1, 1, 1]} : vector<8x2x8x128xf32> to vector<8x1x8x128xf32>
    %76 = vector.shape_cast %75 : vector<8x1x8x128xf32> to vector<8x8x128xf32>
    %77 = vector.extract_strided_slice %74 {offsets = [1, 0, 0], sizes = [7, 8, 128], strides = [1, 1, 1]} : vector<8x8x128xf32> to vector<7x8x128xf32>
    %78 = vector.extract_strided_slice %70 {offsets = [16, 0, 0], sizes = [1, 8, 128], strides = [1, 1, 1]} : vector<18x8x128xf32> to vector<1x8x128xf32>
    %79 = tpu.concatenate %77, %78 in 0 : vector<7x8x128xf32>, vector<1x8x128xf32> -> vector<8x8x128xf32>
    %80 = arith.maximumf %74, %76 : vector<8x8x128xf32>
    %81 = arith.maximumf %80, %79 : vector<8x8x128xf32>
    %82 = arith.truncf %81 : vector<8x8x128xf32> to vector<8x8x128xbf16>
    %c0_75 = arith.constant 0 : index
    %c0_76 = arith.constant 0 : index
    %c0_77 = arith.constant 0 : index
    %c0_78 = arith.constant 0 : index
    %83 = vector.load %arg4[%c0_75, %c0_76, %c0_77, %c0_78] : memref<1x8x8x128xbf16, #tpu.memory_space<vmem>>, vector<1x8x8x128xbf16>
    %84 = vector.shape_cast %83 : vector<1x8x8x128xbf16> to vector<8x8x128xbf16>
    %85 = vector.shape_cast %82 : vector<8x8x128xbf16> to vector<1x8x8x128xbf16>
    tpu.vector_store %arg4[%c0_75, %c0_76, %c0_77, %c0_78], %85 {strides = array<i32>} : memref<1x8x8x128xbf16, #tpu.memory_space<vmem>>, vector<1x8x8x128xbf16>,
    return
  }
  func.func @transform_0(%arg0: i32) -> (i32, i32, i32) {
    %c0_i32 = arith.constant 0 : i32
    %c0_i32_0 = arith.constant 0 : i32
    %c0_i32_1 = arith.constant 0 : i32
    return %arg0, %c0_i32, %c0_i32_0 : i32, i32, i32
  }
  func.func @transform_1(%arg0: i32) -> (i32, i32, i32) {
    %c0_i32 = arith.constant 0 : i32
    %c0_i32_0 = arith.constant 0 : i32
    %c0_i32_1 = arith.constant 0 : i32
    %c0_i32_2 = arith.constant 0 : i32
    return %c0_i32, %c0_i32_0, %c0_i32_1 : i32, i32, i32
  }
  func.func @transform_2(%arg0: i32) -> (i32, i32) {
    %c0_i32 = arith.constant 0 : i32
    %c0_i32_0 = arith.constant 0 : i32
    %c0_i32_1 = arith.constant 0 : i32
    return %c0_i32, %c0_i32_0 : i32, i32
  }
  func.func @transform_3(%arg0: i32) -> (i32, i32, i32, i32) {
    %c0_i32 = arith.constant 0 : i32
    %c0_i32_0 = arith.constant 0 : i32
    %c0_i32_1 = arith.constant 0 : i32
    %c0_i32_2 = arith.constant 0 : i32
    return %arg0, %c0_i32, %c0_i32_0, %c0_i32_1 : i32, i32, i32, i32
  }
}

</mosaic_0001>

<llo_original>
// kernel: pool_block_forward.1
$region0: #{pool_block_forward.1}
  #allocation0 [shape = 'u32[]', space=smem, size = 0x4, offset = 0x4, fixed_abs, tag = 'smem constant byte address 0x4 - core index']
  #allocation1 [shape = 'u32[144,128]{1,0:T(1,128)}', space=vmem, size = 0x12000, scoped, tag = 'internal scratch']
  #allocation2 [shape = 'f32[18,24,128]{2,1,0:T(8,128)}', space=vmem, size = 0x36000, scoped, tag = 'scratch operand']
  %s0 = inlined_call_operand.vmem [shape: bf16[2,456,4], index: 0, kind: input, shape index: {}]
  %s1 = inlined_call_operand.vmem [shape: bf16[9,4,128], index: 1, kind: input, shape index: {}]
  %s2 = inlined_call_operand.vmem [shape: f32[1,128], index: 2, kind: input, shape index: {}]
  %s3 = inlined_call_operand.vmem [shape: bf16[2,8,8,128], index: 3, kind: output, shape index: {}]
  %s4 = sld [smem:[#allocation0]]
  $region45: #{pool_block_forward.1} parent=0
    _
  %s6 = ssub.s32 1, %s4
  %s7 = scalar_select 0, %s6, %s4
  loop: start=0, step=1, limit=4
  $region2: #{pool_block_forward.1} parent=0 // loop_pre_header
    _
  $region3: #{pool_block_forward.1} parent=0 // loop_header
    %s9 = sphi 0, %s13
    %p10 = scmp.ge.s32.totalorder %s9, 4
    %s19 = sphi 0, %s21
    %s22 = sphi 0, %s19
    %s23 = sphi 0, %s22
    %s39 = sphi 0, %s23
    %s43 = sphi 0, %s43
    %s45 = sphi 0, %s43
    %s46 = sphi 0, %s45
    %s60 = sphi 0, %s46
    %s64 = sphi 0, %s64
    %s66 = sphi 0, %s64
    %s67 = sphi 0, %s66
    %s81 = sphi 0, %s67
    %s87 = sphi 0, %s89
    %s90 = sphi 0, %s87
    %s91 = sphi 0, %s90
    %s107 = sphi 0, %s91
  $region4: #{pool_block_forward.1} parent=0 // loop_header_branch
    %12 = sbr.rel (%p10) target = $region8
  $region5: #{pool_block_forward.1} parent=0 // loop_body
    %s14 = ssub.s32 %s9, 1
    %s15 = ssub.s32 %s9, 2
    %s16 = sadd.s32 %s9, 1
    %s17 = ssub.s32 %s9, %s16
    %p18 = scmp.eq.s32.totalorder %s17, 0
    %s20 = sadd.s32 %s19, 1
    %s21 = scalar_select %p18, %s19, %s20
    %p24 = pneg %p18
    %p25 = scmp.eq.s32.totalorder %s9, 1
    %p26 = por %p24, %p25
    %p27 = scmp.ne.s32.totalorder %s19, %s22
    %p28 = scmp.eq.s32.totalorder %s9, 0
    %p29 = por %p27, %p28
    %p30 = scmp.ne.s32.totalorder %s19, %s22
    %p31 = scmp.eq.s32.totalorder %s14, 1
    %p32 = por %p30, %p31
    %p33 = scmp.ne.s32.totalorder %s22, %s23
    %p34 = scmp.eq.s32.totalorder %s14, 0
    %p35 = por %p33, %p34
    %p36 = scmp.ne.s32.totalorder %s22, %s23
    %p37 = scmp.eq.s32.totalorder %s15, 1
    %p38 = por %p36, %p37
    %p40 = scmp.ne.s32.totalorder %s23, %s39
    %p41 = scmp.eq.s32.totalorder %s15, 0
    %p42 = por %p40, %p41
    %s44 = sadd.s32 %s43, 1
    %p47 = scmp.eq.s32.totalorder %s9, 1
    %p48 = scmp.ne.s32.totalorder %s43, %s45
    %p49 = scmp.eq.s32.totalorder %s9, 0
    %p50 = por %p48, %p49
    %p51 = scmp.ne.s32.totalorder %s43, %s45
    %p52 = scmp.eq.s32.totalorder %s14, 1
    %p53 = por %p51, %p52
    %p54 = scmp.ne.s32.totalorder %s45, %s46
    %p55 = scmp.eq.s32.totalorder %s14, 0
    %p56 = por %p54, %p55
    %p57 = scmp.ne.s32.totalorder %s45, %s46
    %p58 = scmp.eq.s32.totalorder %s15, 1
    %p59 = por %p57, %p58
    %p61 = scmp.ne.s32.totalorder %s46, %s60
    %p62 = scmp.eq.s32.totalorder %s15, 0
    %p63 = por %p61, %p62
    %s65 = sadd.s32 %s64, 1
    %p68 = scmp.eq.s32.totalorder %s9, 1
    %p69 = scmp.ne.s32.totalorder %s64, %s66
    %p70 = scmp.eq.s32.totalorder %s9, 0
    %p71 = por %p69, %p70
    %p72 = scmp.ne.s32.totalorder %s64, %s66
    %p73 = scmp.eq.s32.totalorder %s14, 1
    %p74 = por %p72, %p73
    %p75 = scmp.ne.s32.totalorder %s66, %s67
    %p76 = scmp.eq.s32.totalorder %s14, 0
    %p77 = por %p75, %p76
    %p78 = scmp.ne.s32.totalorder %s66, %s67
    %p79 = scmp.eq.s32.totalorder %s15, 1
    %p80 = por %p78, %p79
    %p82 = scmp.ne.s32.totalorder %s67, %s81
    %p83 = scmp.eq.s32.totalorder %s15, 0
    %p84 = por %p82, %p83
    %s85 = ssub.s32 %s9, %s16
    %p86 = scmp.eq.s32.totalorder %s85, 0
    %s88 = sadd.s32 %s87, 1
    %s89 = scalar_select %p86, %s87, %s88
    %p92 = pneg %p86
    %p93 = scmp.eq.s32.totalorder %s9, 1
    %p94 = por %p92, %p93
    %p95 = scmp.ne.s32.totalorder %s87, %s90
    %p96 = scmp.eq.s32.totalorder %s9, 0
    %p97 = por %p95, %p96
    %p98 = scmp.ne.s32.totalorder %s87, %s90
    %p99 = scmp.eq.s32.totalorder %s14, 1
    %p100 = por %p98, %p99
    %p101 = scmp.ne.s32.totalorder %s90, %s91
    %p102 = scmp.eq.s32.totalorder %s14, 0
    %p103 = por %p101, %p102
    %p104 = scmp.ne.s32.totalorder %s90, %s91
    %p105 = scmp.eq.s32.totalorder %s15, 1
    %p106 = por %p104, %p105
    %p108 = scmp.ne.s32.totalorder %s91, %s107
    %p109 = scmp.eq.s32.totalorder %s15, 0
    %p110 = por %p108, %p109
    %p111 = scmp.le.s32.totalorder 1, %s9
    %p112 = scmp.lt.s32.totalorder %s9, 3
    %p113 = pnand %p111, %p112
    %p114 = pneg %p113
    // Predicated region
    $region9: #{pool_block_forward.1} parent=5 // pred_check
      _
    $region10: #{pool_block_forward.1} parent=5 // pred_check_branch
      %116 = sbr.rel (%p113) target = $region12
    $region11: #{pool_block_forward.1} parent=5 // pred_region
      %s117 = ssub.s32 %s9, 1
      // Predicated region
      $region13: #{pool_block_forward.1} parent=11 // pred_check
        %p118 = pneg %p56
      $region14: #{pool_block_forward.1} parent=11 // pred_check_branch
        %120 = sbr.rel (%p118) target = $region16
      $region15: #{pool_block_forward.1} parent=11 // pred_region
        _
      $region16: #{pool_block_forward.1} parent=11 // pred_fallthru
        _
      // Predicated region
      $region17: #{pool_block_forward.1} parent=11 // pred_check
        %p121 = pneg %p77
      $region18: #{pool_block_forward.1} parent=11 // pred_check_branch
        %123 = sbr.rel (%p121) target = $region20
      $region19: #{pool_block_forward.1} parent=11 // pred_region
        _
      $region20: #{pool_block_forward.1} parent=11 // pred_fallthru
        _
    $region12: #{pool_block_forward.1} parent=5 // pred_fallthru
      _
    %p124 = scmp.lt.s32.totalorder %s9, 2
    // Predicated region
    $region21: #{pool_block_forward.1} parent=5 // pred_check
      %p125 = pneg %p124
    $region22: #{pool_block_forward.1} parent=5 // pred_check_branch
      %127 = sbr.rel (%p125) target = $region24
    $region23: #{pool_block_forward.1} parent=5 // pred_region
      // Predicated region
      $region25: #{pool_block_forward.1} parent=23 // pred_check
        %p128 = pneg %p29
      $region26: #{pool_block_forward.1} parent=23 // pred_check_branch
        %130 = sbr.rel (%p128) target = $region28
      $region27: #{pool_block_forward.1} parent=23 // pred_region
        %p131 = scmp.lt.s32.totalorder %s9, 1
        %s132 = scalar_select %p131, %s9, 1
        %s133 = smul.addr %s132, 57
        %s134 = smul.addr %s133, 4
        %s135 = scalar_lea.vmem %s0, %s134
      $region28: #{pool_block_forward.1} parent=23 // pred_fallthru
        _
    $region24: #{pool_block_forward.1} parent=5 // pred_fallthru
      _
    %p136 = scmp.le.s32.totalorder 1, %s9
    %p137 = scmp.lt.s32.totalorder %s9, 3
    %p138 = pnand %p136, %p137
    %p139 = pneg %p138
    // Predicated region
    $region29: #{pool_block_forward.1} parent=5 // pred_check
      _
    $region30: #{pool_block_forward.1} parent=5 // pred_check_branch
      %141 = sbr.rel (%p138) target = $region32
    $region31: #{pool_block_forward.1} parent=5 // pred_region
      %s142 = ssub.s32 %s9, 1
      %p143 = scmp.lt.s32.totalorder %s14, 1
      %s144 = scalar_select %p143, %s14, 1
      %s145 = smul.addr %s144, 57
      %s146 = smul.addr %s145, 4
      %s147 = scalar_lea.vmem %s0, %s146
      %p148 = pneg %p35
      %p149 = pneg %p32
      %p150 = pneg %p56
      %p151 = pneg %p53
      %p152 = pneg %p77
      %p153 = pneg %p74
      %p154 = pneg %p103
      %p155 = pneg %p100
      %p156 = scmp.lt.s32.totalorder %s14, 1
      %s157 = scalar_select %p156, %s14, 1
      %s158 = smul.addr %s157, 8
      %s159 = smul.addr %s158, 4
      %s160 = scalar_lea.vmem %s3, %s159
      %p161 = scmp.lt.s32.totalorder %s14, 1
      %s162 = scalar_select %p161, %s14, 1
      %s163 = smul.addr %s162, 57
      %s164 = smul.addr %s163, 4
      %s165 = scalar_lea.vmem %s0, %s164
      %p166 = scmp.lt.s32.totalorder %s14, 1
      %s167 = scalar_select %p166, %s14, 1
      %s168 = smul.addr %s167, 8
      %s169 = smul.addr %s168, 4
      %s170 = scalar_lea.vmem %s3, %s169
      %v172 = vld [vmem:[%s165] sm:$0xf]
      %v173 = vld [vmem:[%s165 + $0x4] sm:$0xf]
      %v174 = vld [vmem:[%s165 + $0x8] sm:$0xf]
      %v175 = vld [vmem:[%s165 + $0xc] sm:$0xf]
      %v176 = vld [vmem:[%s165 + $0x10] sm:$0xf]
      %v177 = vld [vmem:[%s165 + $0x14] sm:$0xf]
      %v178 = vld [vmem:[%s165 + $0x18] sm:$0xf]
      %v179 = vld [vmem:[%s165 + $0x1c] sm:$0xf]
      %v180 = vld [vmem:[%s165 + $0x20] sm:$0xf]
      %v181 = vld [vmem:[%s165 + $0x24] sm:$0xf]
      %v182 = vld [vmem:[%s165 + $0x28] sm:$0xf]
      %v183 = vld [vmem:[%s165 + $0x2c] sm:$0xf]
      %v184 = vld [vmem:[%s165 + $0x30] sm:$0xf]
      %v185 = vld [vmem:[%s165 + $0x34] sm:$0xf]
      %v186 = vld [vmem:[%s165 + $0x38] sm:$0xf]
      %v187 = vld [vmem:[%s165 + $0x3c] sm:$0xf]
      %v188 = vld [vmem:[%s165 + $0x40] sm:$0xf]
      %v189 = vld [vmem:[%s165 + $0x44] sm:$0xf]
      %v190 = vld [vmem:[%s165 + $0x48] sm:$0xf]
      %v191 = vld [vmem:[%s165 + $0x4c] sm:$0xf]
      %v192 = vld [vmem:[%s165 + $0x50] sm:$0xf]
      %v193 = vld [vmem:[%s165 + $0x54] sm:$0xf]
      %v194 = vld [vmem:[%s165 + $0x58] sm:$0xf]
      %v195 = vld [vmem:[%s165 + $0x5c] sm:$0xf]
      %v196 = vld [vmem:[%s165 + $0x60] sm:$0xf]
      %v197 = vld [vmem:[%s165 + $0x64] sm:$0xf]
      %v198 = vld [vmem:[%s165 + $0x68] sm:$0xf]
      %v199 = vld [vmem:[%s165 + $0x6c] sm:$0xf]
      %v200 = vld [vmem:[%s165 + $0x70] sm:$0xf]
      %v201 = vld [vmem:[%s165 + $0x74] sm:$0xf]
      %v202 = vld [vmem:[%s165 + $0x78] sm:$0xf]
      %v203 = vld [vmem:[%s165 + $0x7c] sm:$0xf]
      %v204 = vld [vmem:[%s165 + $0x80] sm:$0xf]
      %v205 = vld [vmem:[%s165 + $0x84] sm:$0xf]
      %v206 = vld [vmem:[%s165 + $0x88] sm:$0xf]
      %v207 = vld [vmem:[%s165 + $0x8c] sm:$0xf]
      %v208 = vld [vmem:[%s165 + $0x90] sm:$0xf]
      %v209 = vld [vmem:[%s165 + $0x94] sm:$0xf]
      %v210 = vld [vmem:[%s165 + $0x98] sm:$0xf]
      %v211 = vld [vmem:[%s165 + $0x9c] sm:$0xf]
      %v212 = vld [vmem:[%s165 + $0xa0] sm:$0xf]
      %v213 = vld [vmem:[%s165 + $0xa4] sm:$0xf]
      %v214 = vld [vmem:[%s165 + $0xa8] sm:$0xf]
      %v215 = vld [vmem:[%s165 + $0xac] sm:$0xf]
      %v216 = vld [vmem:[%s165 + $0xb0] sm:$0xf]
      %v217 = vld [vmem:[%s165 + $0xb4] sm:$0xf]
      %v218 = vld [vmem:[%s165 + $0xb8] sm:$0xf]
      %v219 = vld [vmem:[%s165 + $0xbc] sm:$0xf]
      %v220 = vld [vmem:[%s1] sm:$0x3]
      %v221 = vld [vmem:[%s165 + $0xc0] sm:$0x1]
      %s222 = scalar_lea.vmem %s1, 2
      %v223 = vld [vmem:[%s222] sm:$0x3]
      %v273 = vunpack.c.l.b16 %v172
      %v274 = vunpack.c.l.b16 %v173
      %v275 = vunpack.c.l.b16 %v174
      %v276 = vunpack.c.l.b16 %v175
      %v277 = vunpack.c.l.b16 %v176
      %v278 = vunpack.c.l.b16 %v177
      %v279 = vunpack.c.l.b16 %v178
      %v280 = vunpack.c.l.b16 %v179
      %v281 = vunpack.c.l.b16 %v180
      %v282 = vunpack.c.l.b16 %v181
      %v283 = vunpack.c.l.b16 %v182
      %v284 = vunpack.c.l.b16 %v183
      %v285 = vunpack.c.l.b16 %v184
      %v286 = vunpack.c.l.b16 %v185
      %v287 = vunpack.c.l.b16 %v186
      %v288 = vunpack.c.l.b16 %v187
      %v289 = vunpack.c.l.b16 %v188
      %v290 = vunpack.c.l.b16 %v189
      %v291 = vunpack.c.l.b16 %v190
      %v292 = vunpack.c.l.b16 %v191
      %v293 = vunpack.c.l.b16 %v192
      %v294 = vunpack.c.l.b16 %v193
      %v295 = vunpack.c.l.b16 %v194
      %v296 = vunpack.c.l.b16 %v195
      %v297 = vunpack.c.l.b16 %v196
      %v298 = vunpack.c.l.b16 %v197
      %v299 = vunpack.c.l.b16 %v198
      %v300 = vunpack.c.l.b16 %v199
      %v301 = vunpack.c.l.b16 %v200
      %v302 = vunpack.c.l.b16 %v201
      %v303 = vunpack.c.l.b16 %v202
      %v304 = vunpack.c.l.b16 %v203
      %v305 = vunpack.c.l.b16 %v204
      %v306 = vunpack.c.l.b16 %v205
      %v307 = vunpack.c.l.b16 %v206
      %v308 = vunpack.c.l.b16 %v207
      %v309 = vunpack.c.l.b16 %v208
      %v310 = vunpack.c.l.b16 %v209
      %v311 = vunpack.c.l.b16 %v210
      %v312 = vunpack.c.l.b16 %v211
      %v313 = vunpack.c.l.b16 %v212
      %v314 = vunpack.c.l.b16 %v213
      %v315 = vunpack.c.l.b16 %v214
      %v316 = vunpack.c.l.b16 %v215
      %v317 = vunpack.c.l.b16 %v216
      %v318 = vunpack.c.l.b16 %v217
      %v319 = vunpack.c.l.b16 %v218
      %v320 = vunpack.c.l.b16 %v219
      %v321 = vunpack.c.l.b16 %v221
      %v322 = vpack.c.b16 %v274, %v273
      %v323 = vpack.c.b16 %v276, %v275
      %v324 = vpack.c.b16 %v278, %v277
      %v325 = vpack.c.b16 %v280, %v279
      %v326 = vpack.c.b16 %v282, %v281
      %v327 = vpack.c.b16 %v284, %v283
      %v328 = vpack.c.b16 %v286, %v285
      %v329 = vpack.c.b16 %v288, %v287
      %v330 = vpack.c.b16 %v290, %v289
      %v331 = vpack.c.b16 %v292, %v291
      %v332 = vpack.c.b16 %v294, %v293
      %v333 = vpack.c.b16 %v296, %v295
      %v334 = vpack.c.b16 %v298, %v297
      %v335 = vpack.c.b16 %v300, %v299
      %v336 = vpack.c.b16 %v302, %v301
      %v337 = vpack.c.b16 %v304, %v303
      %v338 = vpack.c.b16 %v306, %v305
      %v339 = vpack.c.b16 %v308, %v307
      %v340 = vpack.c.b16 %v310, %v309
      %v341 = vpack.c.b16 %v312, %v311
      %v342 = vpack.c.b16 %v314, %v313
      %v343 = vpack.c.b16 %v316, %v315
      %v344 = vpack.c.b16 %v318, %v317
      %v345 = vpack.c.b16 %v320, %v319
      %v346 = vpack.c.b16 %v321, %v321
      %vm347 = vsmask.f32 7424
      %v349 = vshrl.u32 %v322, 16
      %v351 = vshll.u32 %v322, 16
      %v353 = vrot.slane %v351, 1
      %v354 = vor.u32 %v349, %v353
      %v356 = vshll.u32 %v323, 16
      %v358 = vrot.slane %v356, 1
      %v359 = vsel %vm347, %v354, %v358
      %v360 = vshrl.u32 %v323, 16
      %v362 = vor.u32 %v360, %v358
      %v364 = vshll.u32 %v324, 16
      %v366 = vrot.slane %v364, 1
      %v367 = vsel %vm347, %v362, %v366
      %v368 = vshrl.u32 %v324, 16
      %v370 = vor.u32 %v368, %v366
      %v372 = vshll.u32 %v325, 16
      %v374 = vrot.slane %v372, 1
      %v375 = vsel %vm347, %v370, %v374
      %v376 = vshrl.u32 %v325, 16
      %v378 = vor.u32 %v376, %v374
      %v380 = vshll.u32 %v326, 16
      %v382 = vrot.slane %v380, 1
      %v383 = vsel %vm347, %v378, %v382
      %v384 = vshrl.u32 %v326, 16
      %v386 = vor.u32 %v384, %v382
      %v388 = vshll.u32 %v327, 16
      %v390 = vrot.slane %v388, 1
      %v391 = vsel %vm347, %v386, %v390
      %v392 = vshrl.u32 %v327, 16
      %v394 = vor.u32 %v392, %v390
      %v396 = vshll.u32 %v328, 16
      %v398 = vrot.slane %v396, 1
      %v399 = vsel %vm347, %v394, %v398
      %v400 = vshrl.u32 %v328, 16
      %v402 = vor.u32 %v400, %v398
      %v404 = vshll.u32 %v329, 16
      %v406 = vrot.slane %v404, 1
      %v407 = vsel %vm347, %v402, %v406
      %v408 = vshrl.u32 %v329, 16
      %v410 = vor.u32 %v408, %v406
      %v412 = vshll.u32 %v330, 16
      %v414 = vrot.slane %v412, 1
      %v415 = vsel %vm347, %v410, %v414
      %v416 = vshrl.u32 %v330, 16
      %v418 = vor.u32 %v416, %v414
      %v420 = vshll.u32 %v331, 16
      %v422 = vrot.slane %v420, 1
      %v423 = vsel %vm347, %v418, %v422
      %v424 = vshrl.u32 %v331, 16
      %v426 = vor.u32 %v424, %v422
      %v428 = vshll.u32 %v332, 16
      %v430 = vrot.slane %v428, 1
      %v431 = vsel %vm347, %v426, %v430
      %v432 = vshrl.u32 %v332, 16
      %v434 = vor.u32 %v432, %v430
      %v436 = vshll.u32 %v333, 16
      %v438 = vrot.slane %v436, 1
      %v439 = vsel %vm347, %v434, %v438
      %v440 = vshrl.u32 %v333, 16
      %v442 = vor.u32 %v440, %v438
      %v444 = vshll.u32 %v334, 16
      %v446 = vrot.slane %v444, 1
      %v447 = vsel %vm347, %v442, %v446
      %v448 = vshrl.u32 %v334, 16
      %v450 = vor.u32 %v448, %v446
      %v452 = vshll.u32 %v335, 16
      %v454 = vrot.slane %v452, 1
      %v455 = vsel %vm347, %v450, %v454
      %v456 = vshrl.u32 %v335, 16
      %v458 = vor.u32 %v456, %v454
      %v460 = vshll.u32 %v336, 16
      %v462 = vrot.slane %v460, 1
      %v463 = vsel %vm347, %v458, %v462
      %v464 = vshrl.u32 %v336, 16
      %v466 = vor.u32 %v464, %v462
      %v468 = vshll.u32 %v337, 16
      %v470 = vrot.slane %v468, 1
      %v471 = vsel %vm347, %v466, %v470
      %v472 = vshrl.u32 %v337, 16
      %v474 = vor.u32 %v472, %v470
      %v476 = vshll.u32 %v338, 16
      %v478 = vrot.slane %v476, 1
      %v479 = vsel %vm347, %v474, %v478
      %v480 = vshrl.u32 %v338, 16
      %v482 = vor.u32 %v480, %v478
      %v484 = vshll.u32 %v339, 16
      %v486 = vrot.slane %v484, 1
      %v487 = vsel %vm347, %v482, %v486
      %v488 = vshrl.u32 %v339, 16
      %v490 = vor.u32 %v488, %v486
      %v492 = vshll.u32 %v340, 16
      %v494 = vrot.slane %v492, 1
      %v495 = vsel %vm347, %v490, %v494
      %v496 = vshrl.u32 %v340, 16
      %v498 = vor.u32 %v496, %v494
      %v500 = vshll.u32 %v341, 16
      %v502 = vrot.slane %v500, 1
      %v503 = vsel %vm347, %v498, %v502
      %v504 = vshrl.u32 %v341, 16
      %v506 = vor.u32 %v504, %v502
      %v508 = vshll.u32 %v342, 16
      %v510 = vrot.slane %v508, 1
      %v511 = vsel %vm347, %v506, %v510
      %v512 = vshrl.u32 %v342, 16
      %v514 = vor.u32 %v512, %v510
      %v516 = vshll.u32 %v343, 16
      %v518 = vrot.slane %v516, 1
      %v519 = vsel %vm347, %v514, %v518
      %v520 = vshrl.u32 %v343, 16
      %v522 = vor.u32 %v520, %v518
      %v524 = vshll.u32 %v344, 16
      %v526 = vrot.slane %v524, 1
      %v527 = vsel %vm347, %v522, %v526
      %v528 = vshrl.u32 %v344, 16
      %v530 = vor.u32 %v528, %v526
      %v532 = vshll.u32 %v345, 16
      %v534 = vrot.slane %v532, 1
      %v535 = vsel %vm347, %v530, %v534
      %v536 = vshrl.u32 %v345, 16
      %v538 = vor.u32 %v536, %v534
      %v540 = vshll.u32 %v346, 16
      %v542 = vrot.slane %v540, 1
      %v543 = vsel %vm347, %v538, %v542
      %vm544 = vcmask 31744
      %v546 = vsel %vm544, %v359, 0
      %v549 = vsel %vm544, %v367, 0
      %v552 = vsel %vm544, %v375, 0
      %v555 = vsel %vm544, %v383, 0
      %v558 = vsel %vm544, %v391, 0
      %v561 = vsel %vm544, %v399, 0
      %v564 = vsel %vm544, %v407, 0
      %v567 = vsel %vm544, %v415, 0
      %v570 = vsel %vm544, %v423, 0
      %v573 = vsel %vm544, %v431, 0
      %v576 = vsel %vm544, %v439, 0
      %v579 = vsel %vm544, %v447, 0
      %v582 = vsel %vm544, %v455, 0
      %v585 = vsel %vm544, %v463, 0
      %v588 = vsel %vm544, %v471, 0
      %v591 = vsel %vm544, %v479, 0
      %v594 = vsel %vm544, %v487, 0
      %v597 = vsel %vm544, %v495, 0
      %v600 = vsel %vm544, %v503, 0
      %v603 = vsel %vm544, %v511, 0
      %v606 = vsel %vm544, %v519, 0
      %v609 = vsel %vm544, %v527, 0
      %v612 = vsel %vm544, %v535, 0
      %v615 = vsel %vm544, %v543, 0
      %vm617 = vcmask 1041408
      %v619 = vsel %vm617, %v223, 0
      %621 = vmatprep.subr.bf16.mxu0 0
      %622 = vmatpush1.bf16.msra.mxu0 %v619
      %623 = vmatprep.subr.bf16.mxu0 0
      %624 = vmatpush1.bf16.msra.mxu0 0
      %625 = vmatprep.subr.bf16.mxu0 0
      %626 = vmatpush1.bf16.msra.mxu0 0
      %627 = vmatprep.subr.bf16.mxu0 0
      %628 = vmatpush1.bf16.msra.mxu0 0
      %629 = vmatprep.subr.bf16.mxu0 0
      %630 = vmatpush1.bf16.msra.mxu0 0
      %631 = vmatprep.subr.bf16.mxu0 0
      %632 = vmatpush1.bf16.msra.mxu0 0
      %633 = vmatprep.subr.bf16.mxu0 0
      %634 = vmatpush1.bf16.msra.mxu0 0
      %635 = vmatprep.subr.bf16.mxu0 0
      %636 = vmatpush1.bf16.msra.mxu0 0
      %637 = vmatprep.subr.bf16.mxu0 0
      %638 = vmatpush1.bf16.msra.mxu0 0
      %639 = vmatprep.subr.bf16.mxu0 0
      %640 = vmatpush1.bf16.msra.mxu0 0
      %641 = vmatprep.subr.bf16.mxu0 0
      %642 = vmatpush1.bf16.msra.mxu0 0
      %643 = vmatprep.subr.bf16.mxu0 0
      %644 = vmatpush1.bf16.msra.mxu0 0
      %645 = vmatprep.subr.bf16.mxu0 0
      %646 = vmatpush1.bf16.msra.mxu0 0
      %647 = vmatprep.subr.bf16.mxu0 0
      %648 = vmatpush1.bf16.msra.mxu0 0
      %649 = vmatprep.subr.bf16.mxu0 0
      %650 = vmatpush1.bf16.msra.mxu0 0
      %651 = vmatprep.subr.bf16.mxu0 0
      %652 = vmatpush1.bf16.msra.mxu0 0
      %653 = vmatprep.mubr.bf16.mxu0 0
      %654 = vmatmul.mubr.bf16.gmra.mrb[0].mxu0 %v546
      %v655 = vpop.f32.mrb[0].mxu0
      %v656 = vadd.f32 0.0, %v655
      %v657 = vpop.f32.mrb[0].mxu0
      %v658 = vpop.f32.mrb[0].mxu0
      %v659 = vadd.f32 0.0, %v658
      %v660 = vpop.f32.mrb[0].mxu0
      %661 = vmatprep.mubr.bf16.mxu0 0
      %662 = vmatmul.mubr.bf16.gmra.mrb[0].mxu0 %v549
      %v663 = vpop.f32.mrb[0].mxu0
      %v664 = vadd.f32 0.0, %v663
      %v665 = vpop.f32.mrb[0].mxu0
      %v666 = vpop.f32.mrb[0].mxu0
      %v667 = vadd.f32 0.0, %v666
      %v668 = vpop.f32.mrb[0].mxu0
      %669 = vmatprep.mubr.bf16.mxu0 0
      %670 = vmatmul.mubr.bf16.gmra.mrb[0].mxu0 %v552
      %v671 = vpop.f32.mrb[0].mxu0
      %v672 = vadd.f32 0.0, %v671
      %v673 = vpop.f32.mrb[0].mxu0
      %v674 = vpop.f32.mrb[0].mxu0
      %v675 = vadd.f32 0.0, %v674
      %v676 = vpop.f32.mrb[0].mxu0
      %677 = vmatprep.mubr.bf16.mxu0 0
      %678 = vmatmul.mubr.bf16.gmra.mrb[0].mxu0 %v555
      %v679 = vpop.f32.mrb[0].mxu0
      %v680 = vadd.f32 0.0, %v679
      %v681 = vpop.f32.mrb[0].mxu0
      %v682 = vpop.f32.mrb[0].mxu0
      %v683 = vadd.f32 0.0, %v682
      %v684 = vpop.f32.mrb[0].mxu0
      %685 = vmatprep.mubr.bf16.mxu0 0
      %686 = vmatmul.mubr.bf16.gmra.mrb[0].mxu0 %v558
      %v687 = vpop.f32.mrb[0].mxu0
      %v688 = vadd.f32 0.0, %v687
      %v689 = vpop.f32.mrb[0].mxu0
      %v690 = vpop.f32.mrb[0].mxu0
      %v691 = vadd.f32 0.0, %v690
      %v692 = vpop.f32.mrb[0].mxu0
      %693 = vmatprep.mubr.bf16.mxu0 0
      %694 = vmatmul.mubr.bf16.gmra.mrb[0].mxu0 %v561
      %v695 = vpop.f32.mrb[0].mxu0
      %v696 = vadd.f32 0.0, %v695
      %v697 = vpop.f32.mrb[0].mxu0
      %v698 = vpop.f32.mrb[0].mxu0
      %v699 = vadd.f32 0.0, %v698
      %v700 = vpop.f32.mrb[0].mxu0
      %701 = vmatprep.mubr.bf16.mxu0 0
      %702 = vmatmul.mubr.bf16.gmra.mrb[0].mxu0 %v564
      %v703 = vpop.f32.mrb[0].mxu0
      %v704 = vadd.f32 0.0, %v703
      %v705 = vpop.f32.mrb[0].mxu0
      %v706 = vpop.f32.mrb[0].mxu0
      %v707 = vadd.f32 0.0, %v706
      %v708 = vpop.f32.mrb[0].mxu0
      %709 = vmatprep.mubr.bf16.mxu0 0
      %710 = vmatmul.mubr.bf16.gmra.mrb[0].mxu0 %v567
      %v711 = vpop.f32.mrb[0].mxu0
      %v712 = vadd.f32 0.0, %v711
      %v713 = vpop.f32.mrb[0].mxu0
      %v714 = vpop.f32.mrb[0].mxu0
      %v715 = vadd.f32 0.0, %v714
      %v716 = vpop.f32.mrb[0].mxu0
      %717 = vmatprep.mubr.bf16.mxu0 0
      %718 = vmatmul.mubr.bf16.gmra.mrb[0].mxu0 %v570
      %v719 = vpop.f32.mrb[0].mxu0
      %v720 = vadd.f32 0.0, %v719
      %v721 = vpop.f32.mrb[0].mxu0
      %v722 = vpop.f32.mrb[0].mxu0
      %v723 = vadd.f32 0.0, %v722
      %v724 = vpop.f32.mrb[0].mxu0
      %725 = vmatprep.mubr.bf16.mxu0 0
      %726 = vmatmul.mubr.bf16.gmra.mrb[0].mxu0 %v573
      %v727 = vpop.f32.mrb[0].mxu0
      %v728 = vadd.f32 0.0, %v727
      %v729 = vpop.f32.mrb[0].mxu0
      %v730 = vpop.f32.mrb[0].mxu0
      %v731 = vadd.f32 0.0, %v730
      %v732 = vpop.f32.mrb[0].mxu0
      %733 = vmatprep.mubr.bf16.mxu0 0
      %734 = vmatmul.mubr.bf16.gmra.mrb[0].mxu0 %v576
      %v735 = vpop.f32.mrb[0].mxu0
      %v736 = vadd.f32 0.0, %v735
      %v737 = vpop.f32.mrb[0].mxu0
      %v738 = vpop.f32.mrb[0].mxu0
      %v739 = vadd.f32 0.0, %v738
      %v740 = vpop.f32.mrb[0].mxu0
      %741 = vmatprep.mubr.bf16.mxu0 0
      %742 = vmatmul.mubr.bf16.gmra.mrb[0].mxu0 %v579
      %v743 = vpop.f32.mrb[0].mxu0
      %v744 = vadd.f32 0.0, %v743
      %v745 = vpop.f32.mrb[0].mxu0
      %v746 = vpop.f32.mrb[0].mxu0
      %v747 = vadd.f32 0.0, %v746
      %v748 = vpop.f32.mrb[0].mxu0
      %749 = vmatprep.mubr.bf16.mxu0 0
      %750 = vmatmul.mubr.bf16.gmra.mrb[0].mxu0 %v582
      %v751 = vpop.f32.mrb[0].mxu0
      %v752 = vadd.f32 0.0, %v751
      %v753 = vpop.f32.mrb[0].mxu0
      %v754 = vpop.f32.mrb[0].mxu0
      %v755 = vadd.f32 0.0, %v754
      %v756 = vpop.f32.mrb[0].mxu0
      %757 = vmatprep.mubr.bf16.mxu0 0
      %758 = vmatmul.mubr.bf16.gmra.mrb[0].mxu0 %v585
      %v759 = vpop.f32.mrb[0].mxu0
      %v760 = vadd.f32 0.0, %v759
      %v761 = vpop.f32.mrb[0].mxu0
      %v762 = vpop.f32.mrb[0].mxu0
      %v763 = vadd.f32 0.0, %v762
      %v764 = vpop.f32.mrb[0].mxu0
      %765 = vmatprep.mubr.bf16.mxu0 0
      %766 = vmatmul.mubr.bf16.gmra.mrb[0].mxu0 %v588
      %v767 = vpop.f32.mrb[0].mxu0
      %v768 = vadd.f32 0.0, %v767
      %v769 = vpop.f32.mrb[0].mxu0
      %v770 = vpop.f32.mrb[0].mxu0
      %v771 = vadd.f32 0.0, %v770
      %v772 = vpop.f32.mrb[0].mxu0
      %773 = vmatprep.mubr.bf16.mxu0 0
      %774 = vmatmul.mubr.bf16.gmra.mrb[0].mxu0 %v591
      %v775 = vpop.f32.mrb[0].mxu0
      %v776 = vadd.f32 0.0, %v775
      %v777 = vpop.f32.mrb[0].mxu0
      %v778 = vpop.f32.mrb[0].mxu0
      %v779 = vadd.f32 0.0, %v778
      %v780 = vpop.f32.mrb[0].mxu0
      %781 = vmatprep.mubr.bf16.mxu0 0
      %782 = vmatmul.mubr.bf16.gmra.mrb[0].mxu0 %v594
      %v783 = vpop.f32.mrb[0].mxu0
      %v784 = vadd.f32 0.0, %v783
      %v785 = vpop.f32.mrb[0].mxu0
      %v786 = vpop.f32.mrb[0].mxu0
      %v787 = vadd.f32 0.0, %v786
      %v788 = vpop.f32.mrb[0].mxu0
      %789 = vmatprep.mubr.bf16.mxu0 0
      %790 = vmatmul.mubr.bf16.gmra.mrb[0].mxu0 %v597
      %v791 = vpop.f32.mrb[0].mxu0
      %v792 = vadd.f32 0.0, %v791
      %v793 = vpop.f32.mrb[0].mxu0
      %v794 = vpop.f32.mrb[0].mxu0
      %v795 = vadd.f32 0.0, %v794
      %v796 = vpop.f32.mrb[0].mxu0
      %797 = vmatprep.mubr.bf16.mxu0 0
      %798 = vmatmul.mubr.bf16.gmra.mrb[0].mxu0 %v600
      %v799 = vpop.f32.mrb[0].mxu0
      %v800 = vadd.f32 0.0, %v799
      %v801 = vpop.f32.mrb[0].mxu0
      %v802 = vpop.f32.mrb[0].mxu0
      %v803 = vadd.f32 0.0, %v802
      %v804 = vpop.f32.mrb[0].mxu0
      %805 = vmatprep.mubr.bf16.mxu0 0
      %806 = vmatmul.mubr.bf16.gmra.mrb[0].mxu0 %v603
      %v807 = vpop.f32.mrb[0].mxu0
      %v808 = vadd.f32 0.0, %v807
      %v809 = vpop.f32.mrb[0].mxu0
      %v810 = vpop.f32.mrb[0].mxu0
      %v811 = vadd.f32 0.0, %v810
      %v812 = vpop.f32.mrb[0].mxu0
      %813 = vmatprep.mubr.bf16.mxu0 0
      %814 = vmatmul.mubr.bf16.gmra.mrb[0].mxu0 %v606
      %v815 = vpop.f32.mrb[0].mxu0
      %v816 = vadd.f32 0.0, %v815
      %v817 = vpop.f32.mrb[0].mxu0
      %v818 = vpop.f32.mrb[0].mxu0
      %v819 = vadd.f32 0.0, %v818
      %v820 = vpop.f32.mrb[0].mxu0
      %821 = vmatprep.mubr.bf16.mxu0 0
      %822 = vmatmul.mubr.bf16.gmra.mrb[0].mxu0 %v609
      %v823 = vpop.f32.mrb[0].mxu0
      %v824 = vadd.f32 0.0, %v823
      %v825 = vpop.f32.mrb[0].mxu0
      %v826 = vpop.f32.mrb[0].mxu0
      %v827 = vadd.f32 0.0, %v826
      %v828 = vpop.f32.mrb[0].mxu0
      %829 = vmatprep.mubr.bf16.mxu0 0
      %830 = vmatmul.mubr.bf16.gmra.mrb[0].mxu0 %v612
      %v831 = vpop.f32.mrb[0].mxu0
      %v832 = vadd.f32 0.0, %v831
      %v833 = vpop.f32.mrb[0].mxu0
      %v834 = vpop.f32.mrb[0].mxu0
      %v835 = vadd.f32 0.0, %v834
      %v836 = vpop.f32.mrb[0].mxu0
      %837 = vmatprep.mubr.bf16.mxu0 0
      %838 = vmatmul.mubr.bf16.gmra.mrb[0].mxu0 %v615
      %v839 = vpop.f32.mrb[0].mxu0
      %v840 = vadd.f32 0.0, %v839
      %v841 = vpop.f32.mrb[0].mxu0
      %v842 = vpop.f32.mrb[0].mxu0
      %v843 = vadd.f32 0.0, %v842
      %v844 = vpop.f32.mrb[0].mxu0
      %845 = vdwg.mxu0
      %v846 = vsel %vm544, %v322, 0
      %v848 = vsel %vm544, %v323, 0
      %v850 = vsel %vm544, %v324, 0
      %v852 = vsel %vm544, %v325, 0
      %v854 = vsel %vm544, %v326, 0
      %v856 = vsel %vm544, %v327, 0
      %v858 = vsel %vm544, %v328, 0
      %v860 = vsel %vm544, %v329, 0
      %v862 = vsel %vm544, %v330, 0
      %v864 = vsel %vm544, %v331, 0
      %v866 = vsel %vm544, %v332, 0
      %v868 = vsel %vm544, %v333, 0
      %v870 = vsel %vm544, %v334, 0
      %v872 = vsel %vm544, %v335, 0
      %v874 = vsel %vm544, %v336, 0
      %v876 = vsel %vm544, %v337, 0
      %v878 = vsel %vm544, %v338, 0
      %v880 = vsel %vm544, %v339, 0
      %v882 = vsel %vm544, %v340, 0
      %v884 = vsel %vm544, %v341, 0
      %v886 = vsel %vm544, %v342, 0
      %v888 = vsel %vm544, %v343, 0
      %v890 = vsel %vm544, %v344, 0
      %v892 = vsel %vm544, %v345, 0
      %v895 = vsel %vm617, %v220, 0
      %897 = vmatprep.subr.bf16.mxu0 0
      %898 = vmatpush1.bf16.msra.mxu0 %v895
      %899 = vmatprep.subr.bf16.mxu0 0
      %900 = vmatpush1.bf16.msra.mxu0 0
      %901 = vmatprep.subr.bf16.mxu0 0
      %902 = vmatpush1.bf16.msra.mxu0 0
      %903 = vmatprep.subr.bf16.mxu0 0
      %904 = vmatpush1.bf16.msra.mxu0 0
      %905 = vmatprep.subr.bf16.mxu0 0
      %906 = vmatpush1.bf16.msra.mxu0 0
      %907 = vmatprep.subr.bf16.mxu0 0
      %908 = vmatpush1.bf16.msra.mxu0 0
      %909 = vmatprep.subr.bf16.mxu0 0
      %910 = vmatpush1.bf16.msra.mxu0 0
      %911 = vmatprep.subr.bf16.mxu0 0
      %912 = vmatpush1.bf16.msra.mxu0 0
      %913 = vmatprep.subr.bf16.mxu0 0
      %914 = vmatpush1.bf16.msra.mxu0 0
      %915 = vmatprep.subr.bf16.mxu0 0
      %916 = vmatpush1.bf16.msra.mxu0 0
      %917 = vmatprep.subr.bf16.mxu0 0
      %918 = vmatpush1.bf16.msra.mxu0 0
      %919 = vmatprep.subr.bf16.mxu0 0
      %920 = vmatpush1.bf16.msra.mxu0 0
      %921 = vmatprep.subr.bf16.mxu0 0
      %922 = vmatpush1.bf16.msra.mxu0 0
      %923 = vmatprep.subr.bf16.mxu0 0
      %924 = vmatpush1.bf16.msra.mxu0 0
      %925 = vmatprep.subr.bf16.mxu0 0
      %926 = vmatpush1.bf16.msra.mxu0 0
      %927 = vmatprep.subr.bf16.mxu0 0
      %928 = vmatpush1.bf16.msra.mxu0 0
      %929 = vmatprep.mubr.bf16.mxu0 0
      %930 = vmatmul.mubr.bf16.gmra.mrb[0].mxu0 %v846
      %v931 = vpop.f32.mrb[0].mxu0
      %v932 = vadd.f32 %v656, %v931
      %v933 = vpop.f32.mrb[0].mxu0
      %v934 = vpop.f32.mrb[0].mxu0
      %v935 = vadd.f32 %v659, %v934
      %v936 = vpop.f32.mrb[0].mxu0
      %937 = vmatprep.mubr.bf16.mxu0 0
      %938 = vmatmul.mubr.bf16.gmra.mrb[0].mxu0 %v848
      %v939 = vpop.f32.mrb[0].mxu0
      %v940 = vadd.f32 %v664, %v939
      %v941 = vpop.f32.mrb[0].mxu0
      %v942 = vpop.f32.mrb[0].mxu0
      %v943 = vadd.f32 %v667, %v942
      %v944 = vpop.f32.mrb[0].mxu0
      %945 = vmatprep.mubr.bf16.mxu0 0
      %946 = vmatmul.mubr.bf16.gmra.mrb[0].mxu0 %v850
      %v947 = vpop.f32.mrb[0].mxu0
      %v948 = vadd.f32 %v672, %v947
      %v949 = vpop.f32.mrb[0].mxu0
      %v950 = vpop.f32.mrb[0].mxu0
      %v951 = vadd.f32 %v675, %v950
      %v952 = vpop.f32.mrb[0].mxu0
      %953 = vmatprep.mubr.bf16.mxu0 0
      %954 = vmatmul.mubr.bf16.gmra.mrb[0].mxu0 %v852
      %v955 = vpop.f32.mrb[0].mxu0
      %v956 = vadd.f32 %v680, %v955
      %v957 = vpop.f32.mrb[0].mxu0
      %v958 = vpop.f32.mrb[0].mxu0
      %v959 = vadd.f32 %v683, %v958
      %v960 = vpop.f32.mrb[0].mxu0
      %961 = vmatprep.mubr.bf16.mxu0 0
      %962 = vmatmul.mubr.bf16.gmra.mrb[0].mxu0 %v854
      %v963 = vpop.f32.mrb[0].mxu0
      %v964 = vadd.f32 %v688, %v963
      %v965 = vpop.f32.mrb[0].mxu0
      %v966 = vpop.f32.mrb[0].mxu0
      %v967 = vadd.f32 %v691, %v966
      %v968 = vpop.f32.mrb[0].mxu0
      %969 = vmatprep.mubr.bf16.mxu0 0
      %970 = vmatmul.mubr.bf16.gmra.mrb[0].mxu0 %v856
      %v971 = vpop.f32.mrb[0].mxu0
      %v972 = vadd.f32 %v696, %v971
      %v973 = vpop.f32.mrb[0].mxu0
      %v974 = vpop.f32.mrb[0].mxu0
      %v975 = vadd.f32 %v699, %v974
      %v976 = vpop.f32.mrb[0].mxu0
      %977 = vmatprep.mubr.bf16.mxu0 0
      %978 = vmatmul.mubr.bf16.gmra.mrb[0].mxu0 %v858
      %v979 = vpop.f32.mrb[0].mxu0
      %v980 = vadd.f32 %v704, %v979
      %v981 = vpop.f32.mrb[0].mxu0
      %v982 = vpop.f32.mrb[0].mxu0
      %v983 = vadd.f32 %v707, %v982
      %v984 = vpop.f32.mrb[0].mxu0
      %985 = vmatprep.mubr.bf16.mxu0 0
      %986 = vmatmul.mubr.bf16.gmra.mrb[0].mxu0 %v860
      %v987 = vpop.f32.mrb[0].mxu0
      %v988 = vadd.f32 %v712, %v987
      %v989 = vpop.f32.mrb[0].mxu0
      %v990 = vpop.f32.mrb[0].mxu0
      %v991 = vadd.f32 %v715, %v990
      %v992 = vpop.f32.mrb[0].mxu0
      %993 = vmatprep.mubr.bf16.mxu0 0
      %994 = vmatmul.mubr.bf16.gmra.mrb[0].mxu0 %v862
      %v995 = vpop.f32.mrb[0].mxu0
      %v996 = vadd.f32 %v720, %v995
      %v997 = vpop.f32.mrb[0].mxu0
      %v998 = vpop.f32.mrb[0].mxu0
      %v999 = vadd.f32 %v723, %v998
      %v1000 = vpop.f32.mrb[0].mxu0
      %1001 = vmatprep.mubr.bf16.mxu0 0
      %1002 = vmatmul.mubr.bf16.gmra.mrb[0].mxu0 %v864
      %v1003 = vpop.f32.mrb[0].mxu0
      %v1004 = vadd.f32 %v728, %v1003
      %v1005 = vpop.f32.mrb[0].mxu0
      %v1006 = vpop.f32.mrb[0].mxu0
      %v1007 = vadd.f32 %v731, %v1006
      %v1008 = vpop.f32.mrb[0].mxu0
      %1009 = vmatprep.mubr.bf16.mxu0 0
      %1010 = vmatmul.mubr.bf16.gmra.mrb[0].mxu0 %v866
      %v1011 = vpop.f32.mrb[0].mxu0
      %v1012 = vadd.f32 %v736, %v1011
      %v1013 = vpop.f32.mrb[0].mxu0
      %v1014 = vpop.f32.mrb[0].mxu0
      %v1015 = vadd.f32 %v739, %v1014
      %v1016 = vpop.f32.mrb[0].mxu0
      %1017 = vmatprep.mubr.bf16.mxu0 0
      %1018 = vmatmul.mubr.bf16.gmra.mrb[0].mxu0 %v868
      %v1019 = vpop.f32.mrb[0].mxu0
      %v1020 = vadd.f32 %v744, %v1019
      %v1021 = vpop.f32.mrb[0].mxu0
      %v1022 = vpop.f32.mrb[0].mxu0
      %v1023 = vadd.f32 %v747, %v1022
      %v1024 = vpop.f32.mrb[0].mxu0
      %1025 = vmatprep.mubr.bf16.mxu0 0
      %1026 = vmatmul.mubr.bf16.gmra.mrb[0].mxu0 %v870
      %v1027 = vpop.f32.mrb[0].mxu0
      %v1028 = vadd.f32 %v752, %v1027
      %v1029 = vpop.f32.mrb[0].mxu0
      %v1030 = vpop.f32.mrb[0].mxu0
      %v1031 = vadd.f32 %v755, %v1030
      %v1032 = vpop.f32.mrb[0].mxu0
      %1033 = vmatprep.mubr.bf16.mxu0 0
      %1034 = vmatmul.mubr.bf16.gmra.mrb[0].mxu0 %v872
      %v1035 = vpop.f32.mrb[0].mxu0
      %v1036 = vadd.f32 %v760, %v1035
      %v1037 = vpop.f32.mrb[0].mxu0
      %v1038 = vpop.f32.mrb[0].mxu0
      %v1039 = vadd.f32 %v763, %v1038
      %v1040 = vpop.f32.mrb[0].mxu0
      %1041 = vmatprep.mubr.bf16.mxu0 0
      %1042 = vmatmul.mubr.bf16.gmra.mrb[0].mxu0 %v874
      %v1043 = vpop.f32.mrb[0].mxu0
      %v1044 = vadd.f32 %v768, %v1043
      %v1045 = vpop.f32.mrb[0].mxu0
      %v1046 = vpop.f32.mrb[0].mxu0
      %v1047 = vadd.f32 %v771, %v1046
      %v1048 = vpop.f32.mrb[0].mxu0
      %1049 = vmatprep.mubr.bf16.mxu0 0
      %1050 = vmatmul.mubr.bf16.gmra.mrb[0].mxu0 %v876
      %v1051 = vpop.f32.mrb[0].mxu0
      %v1052 = vadd.f32 %v776, %v1051
      %v1053 = vpop.f32.mrb[0].mxu0
      %v1054 = vpop.f32.mrb[0].mxu0
      %v1055 = vadd.f32 %v779, %v1054
      %v1056 = vpop.f32.mrb[0].mxu0
      %1057 = vmatprep.mubr.bf16.mxu0 0
      %1058 = vmatmul.mubr.bf16.gmra.mrb[0].mxu0 %v878
      %v1059 = vpop.f32.mrb[0].mxu0
      %v1060 = vadd.f32 %v784, %v1059
      %v1061 = vpop.f32.mrb[0].mxu0
      %v1062 = vpop.f32.mrb[0].mxu0
      %v1063 = vadd.f32 %v787, %v1062
      %v1064 = vpop.f32.mrb[0].mxu0
      %1065 = vmatprep.mubr.bf16.mxu0 0
      %1066 = vmatmul.mubr.bf16.gmra.mrb[0].mxu0 %v880
      %v1067 = vpop.f32.mrb[0].mxu0
      %v1068 = vadd.f32 %v792, %v1067
      %v1069 = vpop.f32.mrb[0].mxu0
      %v1070 = vpop.f32.mrb[0].mxu0
      %v1071 = vadd.f32 %v795, %v1070
      %v1072 = vpop.f32.mrb[0].mxu0
      %1073 = vmatprep.mubr.bf16.mxu0 0
      %1074 = vmatmul.mubr.bf16.gmra.mrb[0].mxu0 %v882
      %v1075 = vpop.f32.mrb[0].mxu0
      %v1076 = vadd.f32 %v800, %v1075
      %v1077 = vpop.f32.mrb[0].mxu0
      %v1078 = vpop.f32.mrb[0].mxu0
      %v1079 = vadd.f32 %v803, %v1078
      %v1080 = vpop.f32.mrb[0].mxu0
      %1081 = vmatprep.mubr.bf16.mxu0 0
      %1082 = vmatmul.mubr.bf16.gmra.mrb[0].mxu0 %v884
      %v1083 = vpop.f32.mrb[0].mxu0
      %v1084 = vadd.f32 %v808, %v1083
      %v1085 = vpop.f32.mrb[0].mxu0
      %v1086 = vpop.f32.mrb[0].mxu0
      %v1087 = vadd.f32 %v811, %v1086
      %v1088 = vpop.f32.mrb[0].mxu0
      %1089 = vmatprep.mubr.bf16.mxu0 0
      %1090 = vmatmul.mubr.bf16.gmra.mrb[0].mxu0 %v886
      %v1091 = vpop.f32.mrb[0].mxu0
      %v1092 = vadd.f32 %v816, %v1091
      %v1093 = vpop.f32.mrb[0].mxu0
      %v1094 = vpop.f32.mrb[0].mxu0
      %v1095 = vadd.f32 %v819, %v1094
      %v1096 = vpop.f32.mrb[0].mxu0
      %1097 = vmatprep.mubr.bf16.mxu0 0
      %1098 = vmatmul.mubr.bf16.gmra.mrb[0].mxu0 %v888
      %v1099 = vpop.f32.mrb[0].mxu0
      %v1100 = vadd.f32 %v824, %v1099
      %v1101 = vpop.f32.mrb[0].mxu0
      %v1102 = vpop.f32.mrb[0].mxu0
      %v1103 = vadd.f32 %v827, %v1102
      %v1104 = vpop.f32.mrb[0].mxu0
      %1105 = vmatprep.mubr.bf16.mxu0 0
      %1106 = vmatmul.mubr.bf16.gmra.mrb[0].mxu0 %v890
      %v1107 = vpop.f32.mrb[0].mxu0
      %v1108 = vadd.f32 %v832, %v1107
      %v1109 = vpop.f32.mrb[0].mxu0
      %v1110 = vpop.f32.mrb[0].mxu0
      %v1111 = vadd.f32 %v835, %v1110
      %v1112 = vpop.f32.mrb[0].mxu0
      %1113 = vmatprep.mubr.bf16.mxu0 0
      %1114 = vmatmul.mubr.bf16.gmra.mrb[0].mxu0 %v892
      %v1115 = vpop.f32.mrb[0].mxu0
      %v1116 = vadd.f32 %v840, %v1115
      %v1117 = vpop.f32.mrb[0].mxu0
      %v1118 = vpop.f32.mrb[0].mxu0
      %v1119 = vadd.f32 %v843, %v1118
      %v1120 = vpop.f32.mrb[0].mxu0
      %1121 = vdwg.mxu0
      %v1122 = vld [vmem:[%s165] sm:$0xe]
      %s1123 = scalar_lea.vmem %s1, 4
      %v1124 = vld [vmem:[%s1123] sm:$0x3]
      %v1126 = vunpack.c.l.b16 %v1122
      %v1127 = vpack.c.b16 %v274, %v1126
      %vm1128 = vcmask 1046528
      %v1129 = vrot.slane %v1127, 1
      %v1130 = vrot.slane %v323, 1
      %v1131 = vsel %vm1128, %v1129, %v1130
      %v1132 = vrot.slane %v324, 1
      %v1133 = vsel %vm1128, %v1130, %v1132
      %v1134 = vrot.slane %v325, 1
      %v1135 = vsel %vm1128, %v1132, %v1134
      %v1136 = vrot.slane %v326, 1
      %v1137 = vsel %vm1128, %v1134, %v1136
      %v1138 = vrot.slane %v327, 1
      %v1139 = vsel %vm1128, %v1136, %v1138
      %v1140 = vrot.slane %v328, 1
      %v1141 = vsel %vm1128, %v1138, %v1140
      %v1142 = vrot.slane %v329, 1
      %v1143 = vsel %vm1128, %v1140, %v1142
      %v1144 = vrot.slane %v330, 1
      %v1145 = vsel %vm1128, %v1142, %v1144
      %v1146 = vrot.slane %v331, 1
      %v1147 = vsel %vm1128, %v1144, %v1146
      %v1148 = vrot.slane %v332, 1
      %v1149 = vsel %vm1128, %v1146, %v1148
      %v1150 = vrot.slane %v333, 1
      %v1151 = vsel %vm1128, %v1148, %v1150
      %v1152 = vrot.slane %v334, 1
      %v1153 = vsel %vm1128, %v1150, %v1152
      %v1154 = vrot.slane %v335, 1
      %v1155 = vsel %vm1128, %v1152, %v1154
      %v1156 = vrot.slane %v336, 1
      %v1157 = vsel %vm1128, %v1154, %v1156
      %v1158 = vrot.slane %v337, 1
      %v1159 = vsel %vm1128, %v1156, %v1158
      %v1160 = vrot.slane %v338, 1
      %v1161 = vsel %vm1128, %v1158, %v1160
      %v1162 = vrot.slane %v339, 1
      %v1163 = vsel %vm1128, %v1160, %v1162
      %v1164 = vrot.slane %v340, 1
      %v1165 = vsel %vm1128, %v1162, %v1164
      %v1166 = vrot.slane %v341, 1
      %v1167 = vsel %vm1128, %v1164, %v1166
      %v1168 = vrot.slane %v342, 1
      %v1169 = vsel %vm1128, %v1166, %v1168
      %v1170 = vrot.slane %v343, 1
      %v1171 = vsel %vm1128, %v1168, %v1170
      %v1172 = vrot.slane %v344, 1
      %v1173 = vsel %vm1128, %v1170, %v1172
      %v1174 = vrot.slane %v345, 1
      %v1175 = vsel %vm1128, %v1172, %v1174
      %v1176 = vrot.slane %v346, 1
      %v1177 = vsel %vm1128, %v1174, %v1176
      %v1179 = vsel %vm544, %v1131, 0
      %v1182 = vsel %vm544, %v1133, 0
      %v1185 = vsel %vm544, %v1135, 0
      %v1188 = vsel %vm544, %v1137, 0
      %v1191 = vsel %vm544, %v1139, 0
      %v1194 = vsel %vm544, %v1141, 0
      %v1197 = vsel %vm544, %v1143, 0
      %v1200 = vsel %vm544, %v1145, 0
      %v1203 = vsel %vm544, %v1147, 0
      %v1206 = vsel %vm544, %v1149, 0
      %v1209 = vsel %vm544, %v1151, 0
      %v1212 = vsel %vm544, %v1153, 0
      %v1215 = vsel %vm544, %v1155, 0
      %v1218 = vsel %vm544, %v1157, 0
      %v1221 = vsel %vm544, %v1159, 0
      %v1224 = vsel %vm544, %v1161, 0
      %v1227 = vsel %vm544, %v1163, 0
      %v1230 = vsel %vm544, %v1165, 0
      %v1233 = vsel %vm544, %v1167, 0
      %v1236 = vsel %vm544, %v1169, 0
      %v1239 = vsel %vm544, %v1171, 0
      %v1242 = vsel %vm544, %v1173, 0
      %v1245 = vsel %vm544, %v1175, 0
      %v1248 = vsel %vm544, %v1177, 0
      %v1251 = vsel %vm617, %v1124, 0
      %1253 = vmatprep.subr.bf16.mxu0 0
      %1254 = vmatpush1.bf16.msra.mxu0 %v1251
      %1255 = vmatprep.subr.bf16.mxu0 0
      %1256 = vmatpush1.bf16.msra.mxu0 0
      %1257 = vmatprep.subr.bf16.mxu0 0
      %1258 = vmatpush1.bf16.msra.mxu0 0
      %1259 = vmatprep.subr.bf16.mxu0 0
      %1260 = vmatpush1.bf16.msra.mxu0 0
      %1261 = vmatprep.subr.bf16.mxu0 0
      %1262 = vmatpush1.bf16.msra.mxu0 0
      %1263 = vmatprep.subr.bf16.mxu0 0
      %1264 = vmatpush1.bf16.msra.mxu0 0
      %1265 = vmatprep.subr.bf16.mxu0 0
      %1266 = vmatpush1.bf16.msra.mxu0 0
      %1267 = vmatprep.subr.bf16.mxu0 0
      %1268 = vmatpush1.bf16.msra.mxu0 0
      %1269 = vmatprep.subr.bf16.mxu0 0
      %1270 = vmatpush1.bf16.msra.mxu0 0
      %1271 = vmatprep.subr.bf16.mxu0 0
      %1272 = vmatpush1.bf16.msra.mxu0 0
      %1273 = vmatprep.subr.bf16.mxu0 0
      %1274 = vmatpush1.bf16.msra.mxu0 0
      %1275 = vmatprep.subr.bf16.mxu0 0
      %1276 = vmatpush1.bf16.msra.mxu0 0
      %1277 = vmatprep.subr.bf16.mxu0 0
      %1278 = vmatpush1.bf16.msra.mxu0 0
      %1279 = vmatprep.subr.bf16.mxu0 0
      %1280 = vmatpush1.bf16.msra.mxu0 0
      %1281 = vmatprep.subr.bf16.mxu0 0
      %1282 = vmatpush1.bf16.msra.mxu0 0
      %1283 = vmatprep.subr.bf16.mxu0 0
      %1284 = vmatpush1.bf16.msra.mxu0 0
      %1285 = vmatprep.mubr.bf16.mxu0 0
      %1286 = vmatmul.mubr.bf16.gmra.mrb[0].mxu0 %v1179
      %v1287 = vpop.f32.mrb[0].mxu0
      %v1288 = vadd.f32 0.0, %v1287
      %v1289 = vpop.f32.mrb[0].mxu0
      %v1290 = vpop.f32.mrb[0].mxu0
      %v1291 = vadd.f32 0.0, %v1290
      %v1292 = vpop.f32.mrb[0].mxu0
      %1293 = vmatprep.mubr.bf16.mxu0 0
      %1294 = vmatmul.mubr.bf16.gmra.mrb[0].mxu0 %v1182
      %v1295 = vpop.f32.mrb[0].mxu0
      %v1296 = vadd.f32 0.0, %v1295
      %v1297 = vpop.f32.mrb[0].mxu0
      %v1298 = vpop.f32.mrb[0].mxu0
      %v1299 = vadd.f32 0.0, %v1298
      %v1300 = vpop.f32.mrb[0].mxu0
      %1301 = vmatprep.mubr.bf16.mxu0 0
      %1302 = vmatmul.mubr.bf16.gmra.mrb[0].mxu0 %v1185
      %v1303 = vpop.f32.mrb[0].mxu0
      %v1304 = vadd.f32 0.0, %v1303
      %v1305 = vpop.f32.mrb[0].mxu0
      %v1306 = vpop.f32.mrb[0].mxu0
      %v1307 = vadd.f32 0.0, %v1306
      %v1308 = vpop.f32.mrb[0].mxu0
      %1309 = vmatprep.mubr.bf16.mxu0 0
      %1310 = vmatmul.mubr.bf16.gmra.mrb[0].mxu0 %v1188
      %v1311 = vpop.f32.mrb[0].mxu0
      %v1312 = vadd.f32 0.0, %v1311
      %v1313 = vpop.f32.mrb[0].mxu0
      %v1314 = vpop.f32.mrb[0].mxu0
      %v1315 = vadd.f32 0.0, %v1314
      %v1316 = vpop.f32.mrb[0].mxu0
      %1317 = vmatprep.mubr.bf16.mxu0 0
      %1318 = vmatmul.mubr.bf16.gmra.mrb[0].mxu0 %v1191
      %v1319 = vpop.f32.mrb[0].mxu0
      %v1320 = vadd.f32 0.0, %v1319
      %v1321 = vpop.f32.mrb[0].mxu0
      %v1322 = vpop.f32.mrb[0].mxu0
      %v1323 = vadd.f32 0.0, %v1322
      %v1324 = vpop.f32.mrb[0].mxu0
      %1325 = vmatprep.mubr.bf16.mxu0 0
      %1326 = vmatmul.mubr.bf16.gmra.mrb[0].mxu0 %v1194
      %v1327 = vpop.f32.mrb[0].mxu0
      %v1328 = vadd.f32 0.0, %v1327
      %v1329 = vpop.f32.mrb[0].mxu0
      %v1330 = vpop.f32.mrb[0].mxu0
      %v1331 = vadd.f32 0.0, %v1330
      %v1332 = vpop.f32.mrb[0].mxu0
      %1333 = vmatprep.mubr.bf16.mxu0 0
      %1334 = vmatmul.mubr.bf16.gmra.mrb[0].mxu0 %v1197
      %v1335 = vpop.f32.mrb[0].mxu0
      %v1336 = vadd.f32 0.0, %v1335
      %v1337 = vpop.f32.mrb[0].mxu0
      %v1338 = vpop.f32.mrb[0].mxu0
      %v1339 = vadd.f32 0.0, %v1338
      %v1340 = vpop.f32.mrb[0].mxu0
      %1341 = vmatprep.mubr.bf16.mxu0 0
      %1342 = vmatmul.mubr.bf16.gmra.mrb[0].mxu0 %v1200
      %v1343 = vpop.f32.mrb[0].mxu0
      %v1344 = vadd.f32 0.0, %v1343
      %v1345 = vpop.f32.mrb[0].mxu0
      %v1346 = vpop.f32.mrb[0].mxu0
      %v1347 = vadd.f32 0.0, %v1346
      %v1348 = vpop.f32.mrb[0].mxu0
      %1349 = vmatprep.mubr.bf16.mxu0 0
      %1350 = vmatmul.mubr.bf16.gmra.mrb[0].mxu0 %v1203
      %v1351 = vpop.f32.mrb[0].mxu0
      %v1352 = vadd.f32 0.0, %v1351
      %v1353 = vpop.f32.mrb[0].mxu0
      %v1354 = vpop.f32.mrb[0].mxu0
      %v1355 = vadd.f32 0.0, %v1354
      %v1356 = vpop.f32.mrb[0].mxu0
      %1357 = vmatprep.mubr.bf16.mxu0 0
      %1358 = vmatmul.mubr.bf16.gmra.mrb[0].mxu0 %v1206
      %v1359 = vpop.f32.mrb[0].mxu0
      %v1360 = vadd.f32 0.0, %v1359
      %v1361 = vpop.f32.mrb[0].mxu0
      %v1362 = vpop.f32.mrb[0].mxu0
      %v1363 = vadd.f32 0.0, %v1362
      %v1364 = vpop.f32.mrb[0].mxu0
      %1365 = vmatprep.mubr.bf16.mxu0 0
      %1366 = vmatmul.mubr.bf16.gmra.mrb[0].mxu0 %v1209
      %v1367 = vpop.f32.mrb[0].mxu0
      %v1368 = vadd.f32 0.0, %v1367
      %v1369 = vpop.f32.mrb[0].mxu0
      %v1370 = vpop.f32.mrb[0].mxu0
      %v1371 = vadd.f32 0.0, %v1370
      %v1372 = vpop.f32.mrb[0].mxu0
      %1373 = vmatprep.mubr.bf16.mxu0 0
      %1374 = vmatmul.mubr.bf16.gmra.mrb[0].mxu0 %v1212
      %v1375 = vpop.f32.mrb[0].mxu0
      %v1376 = vadd.f32 0.0, %v1375
      %v1377 = vpop.f32.mrb[0].mxu0
      %v1378 = vpop.f32.mrb[0].mxu0
      %v1379 = vadd.f32 0.0, %v1378
      %v1380 = vpop.f32.mrb[0].mxu0
      %1381 = vmatprep.mubr.bf16.mxu0 0
      %1382 = vmatmul.mubr.bf16.gmra.mrb[0].mxu0 %v1215
      %v1383 = vpop.f32.mrb[0].mxu0
      %v1384 = vadd.f32 0.0, %v1383
      %v1385 = vpop.f32.mrb[0].mxu0
      %v1386 = vpop.f32.mrb[0].mxu0
      %v1387 = vadd.f32 0.0, %v1386
      %v1388 = vpop.f32.mrb[0].mxu0
      %1389 = vmatprep.mubr.bf16.mxu0 0
      %1390 = vmatmul.mubr.bf16.gmra.mrb[0].mxu0 %v1218
      %v1391 = vpop.f32.mrb[0].mxu0
      %v1392 = vadd.f32 0.0, %v1391
      %v1393 = vpop.f32.mrb[0].mxu0
      %v1394 = vpop.f32.mrb[0].mxu0
      %v1395 = vadd.f32 0.0, %v1394
      %v1396 = vpop.f32.mrb[0].mxu0
      %1397 = vmatprep.mubr.bf16.mxu0 0
      %1398 = vmatmul.mubr.bf16.gmra.mrb[0].mxu0 %v1221
      %v1399 = vpop.f32.mrb[0].mxu0
      %v1400 = vadd.f32 0.0, %v1399
      %v1401 = vpop.f32.mrb[0].mxu0
      %v1402 = vpop.f32.mrb[0].mxu0
      %v1403 = vadd.f32 0.0, %v1402
      %v1404 = vpop.f32.mrb[0].mxu0
      %1405 = vmatprep.mubr.bf16.mxu0 0
      %1406 = vmatmul.mubr.bf16.gmra.mrb[0].mxu0 %v1224
      %v1407 = vpop.f32.mrb[0].mxu0
      %v1408 = vadd.f32 0.0, %v1407
      %v1409 = vpop.f32.mrb[0].mxu0
      %v1410 = vpop.f32.mrb[0].mxu0
      %v1411 = vadd.f32 0.0, %v1410
      %v1412 = vpop.f32.mrb[0].mxu0
      %1413 = vmatprep.mubr.bf16.mxu0 0
      %1414 = vmatmul.mubr.bf16.gmra.mrb[0].mxu0 %v1227
      %v1415 = vpop.f32.mrb[0].mxu0
      %v1416 = vadd.f32 0.0, %v1415
      %v1417 = vpop.f32.mrb[0].mxu0
      %v1418 = vpop.f32.mrb[0].mxu0
      %v1419 = vadd.f32 0.0, %v1418
      %v1420 = vpop.f32.mrb[0].mxu0
      %1421 = vmatprep.mubr.bf16.mxu0 0
      %1422 = vmatmul.mubr.bf16.gmra.mrb[0].mxu0 %v1230
      %v1423 = vpop.f32.mrb[0].mxu0
      %v1424 = vadd.f32 0.0, %v1423
      %v1425 = vpop.f32.mrb[0].mxu0
      %v1426 = vpop.f32.mrb[0].mxu0
      %v1427 = vadd.f32 0.0, %v1426
      %v1428 = vpop.f32.mrb[0].mxu0
      %1429 = vmatprep.mubr.bf16.mxu0 0
      %1430 = vmatmul.mubr.bf16.gmra.mrb[0].mxu0 %v1233
      %v1431 = vpop.f32.mrb[0].mxu0
      %v1432 = vadd.f32 0.0, %v1431
      %v1433 = vpop.f32.mrb[0].mxu0
      %v1434 = vpop.f32.mrb[0].mxu0
      %v1435 = vadd.f32 0.0, %v1434
      %v1436 = vpop.f32.mrb[0].mxu0
      %1437 = vmatprep.mubr.bf16.mxu0 0
      %1438 = vmatmul.mubr.bf16.gmra.mrb[0].mxu0 %v1236
      %v1439 = vpop.f32.mrb[0].mxu0
      %v1440 = vadd.f32 0.0, %v1439
      %v1441 = vpop.f32.mrb[0].mxu0
      %v1442 = vpop.f32.mrb[0].mxu0
      %v1443 = vadd.f32 0.0, %v1442
      %v1444 = vpop.f32.mrb[0].mxu0
      %1445 = vmatprep.mubr.bf16.mxu0 0
      %1446 = vmatmul.mubr.bf16.gmra.mrb[0].mxu0 %v1239
      %v1447 = vpop.f32.mrb[0].mxu0
      %v1448 = vadd.f32 0.0, %v1447
      %v1449 = vpop.f32.mrb[0].mxu0
      %v1450 = vpop.f32.mrb[0].mxu0
      %v1451 = vadd.f32 0.0, %v1450
      %v1452 = vpop.f32.mrb[0].mxu0
      %1453 = vmatprep.mubr.bf16.mxu0 0
      %1454 = vmatmul.mubr.bf16.gmra.mrb[0].mxu0 %v1242
      %v1455 = vpop.f32.mrb[0].mxu0
      %v1456 = vadd.f32 0.0, %v1455
      %v1457 = vpop.f32.mrb[0].mxu0
      %v1458 = vpop.f32.mrb[0].mxu0
      %v1459 = vadd.f32 0.0, %v1458
      %v1460 = vpop.f32.mrb[0].mxu0
      %1461 = vmatprep.mubr.bf16.mxu0 0
      %1462 = vmatmul.mubr.bf16.gmra.mrb[0].mxu0 %v1245
      %v1463 = vpop.f32.mrb[0].mxu0
      %v1464 = vadd.f32 0.0, %v1463
      %v1465 = vpop.f32.mrb[0].mxu0
      %v1466 = vpop.f32.mrb[0].mxu0
      %v1467 = vadd.f32 0.0, %v1466
      %v1468 = vpop.f32.mrb[0].mxu0
      %1469 = vmatprep.mubr.bf16.mxu0 0
      %1470 = vmatmul.mubr.bf16.gmra.mrb[0].mxu0 %v1248
      %v1471 = vpop.f32.mrb[0].mxu0
      %v1472 = vadd.f32 0.0, %v1471
      %v1473 = vpop.f32.mrb[0].mxu0
      %v1474 = vpop.f32.mrb[0].mxu0
      %v1475 = vadd.f32 0.0, %v1474
      %v1476 = vpop.f32.mrb[0].mxu0
      %1477 = vdwg.mxu0
      %v1478 = vadd.f32 %v932, %v1288
      %v1479 = vadd.f32 %v935, %v1291
      %v1480 = vadd.f32 %v940, %v1296
      %v1481 = vadd.f32 %v943, %v1299
      %v1482 = vadd.f32 %v948, %v1304
      %v1483 = vadd.f32 %v951, %v1307
      %v1484 = vadd.f32 %v956, %v1312
      %v1485 = vadd.f32 %v959, %v1315
      %v1486 = vadd.f32 %v964, %v1320
      %v1487 = vadd.f32 %v967, %v1323
      %v1488 = vadd.f32 %v972, %v1328
      %v1489 = vadd.f32 %v975, %v1331
      %v1490 = vadd.f32 %v980, %v1336
      %v1491 = vadd.f32 %v983, %v1339
      %v1492 = vadd.f32 %v988, %v1344
      %v1493 = vadd.f32 %v991, %v1347
      %v1494 = vadd.f32 %v996, %v1352
      %v1495 = vadd.f32 %v999, %v1355
      %v1496 = vadd.f32 %v1004, %v1360
      %v1497 = vadd.f32 %v1007, %v1363
      %v1498 = vadd.f32 %v1012, %v1368
      %v1499 = vadd.f32 %v1015, %v1371
      %v1500 = vadd.f32 %v1020, %v1376
      %v1501 = vadd.f32 %v1023, %v1379
      %v1502 = vadd.f32 %v1028, %v1384
      %v1503 = vadd.f32 %v1031, %v1387
      %v1504 = vadd.f32 %v1036, %v1392
      %v1505 = vadd.f32 %v1039, %v1395
      %v1506 = vadd.f32 %v1044, %v1400
      %v1507 = vadd.f32 %v1047, %v1403
      %v1508 = vadd.f32 %v1052, %v1408
      %v1509 = vadd.f32 %v1055, %v1411
      %v1510 = vadd.f32 %v1060, %v1416
      %v1511 = vadd.f32 %v1063, %v1419
      %v1512 = vadd.f32 %v1068, %v1424
      %v1513 = vadd.f32 %v1071, %v1427
      %v1514 = vadd.f32 %v1076, %v1432
      %v1515 = vadd.f32 %v1079, %v1435
      %v1516 = vadd.f32 %v1084, %v1440
      %v1517 = vadd.f32 %v1087, %v1443
      %v1518 = vadd.f32 %v1092, %v1448
      %v1519 = vadd.f32 %v1095, %v1451
      %v1520 = vadd.f32 %v1100, %v1456
      %v1521 = vadd.f32 %v1103, %v1459
      %v1522 = vadd.f32 %v1108, %v1464
      %v1523 = vadd.f32 %v1111, %v1467
      %v1524 = vadd.f32 %v1116, %v1472
      %v1525 = vadd.f32 %v1119, %v1475
      %v1526 = vld [vmem:[%s165 + $0xc] sm:$0xf]
      %v1527 = vld [vmem:[%s165 + $0x10] sm:$0xf]
      %v1528 = vld [vmem:[%s165 + $0x14] sm:$0xf]
      %v1529 = vld [vmem:[%s165 + $0x18] sm:$0xf]
      %v1530 = vld [vmem:[%s165 + $0x1c] sm:$0xf]
      %v1531 = vld [vmem:[%s165 + $0x20] sm:$0xf]
      %v1532 = vld [vmem:[%s165 + $0x24] sm:$0xf]
      %v1533 = vld [vmem:[%s165 + $0x28] sm:$0xf]
      %v1534 = vld [vmem:[%s165 + $0x2c] sm:$0xf]
      %v1535 = vld [vmem:[%s165 + $0x30] sm:$0xf]
      %v1536 = vld [vmem:[%s165 + $0x34] sm:$0xf]
      %v1537 = vld [vmem:[%s165 + $0x38] sm:$0xf]
      %v1538 = vld [vmem:[%s165 + $0x3c] sm:$0xf]
      %v1539 = vld [vmem:[%s165 + $0x40] sm:$0xf]
      %v1540 = vld [vmem:[%s165 + $0x44] sm:$0xf]
      %v1541 = vld [vmem:[%s165 + $0x48] sm:$0xf]
      %v1542 = vld [vmem:[%s165 + $0x4c] sm:$0xf]
      %v1543 = vld [vmem:[%s165 + $0x50] sm:$0xf]
      %v1544 = vld [vmem:[%s165 + $0x54] sm:$0xf]
      %v1545 = vld [vmem:[%s165 + $0x58] sm:$0xf]
      %v1546 = vld [vmem:[%s165 + $0x5c] sm:$0xf]
      %v1547 = vld [vmem:[%s165 + $0x60] sm:$0xf]
      %v1548 = vld [vmem:[%s165 + $0x64] sm:$0xf]
      %v1549 = vld [vmem:[%s165 + $0x68] sm:$0xf]
      %v1550 = vld [vmem:[%s165 + $0x6c] sm:$0xf]
      %v1551 = vld [vmem:[%s165 + $0x70] sm:$0xf]
      %v1552 = vld [vmem:[%s165 + $0x74] sm:$0xf]
      %v1553 = vld [vmem:[%s165 + $0x78] sm:$0xf]
      %v1554 = vld [vmem:[%s165 + $0x7c] sm:$0xf]
      %v1555 = vld [vmem:[%s165 + $0x80] sm:$0xf]
      %v1556 = vld [vmem:[%s165 + $0x84] sm:$0xf]
      %v1557 = vld [vmem:[%s165 + $0x88] sm:$0xf]
      %v1558 = vld [vmem:[%s165 + $0x8c] sm:$0xf]
      %v1559 = vld [vmem:[%s165 + $0x90] sm:$0xf]
      %v1560 = vld [vmem:[%s165 + $0x94] sm:$0xf]
      %v1561 = vld [vmem:[%s165 + $0x98] sm:$0xf]
      %v1562 = vld [vmem:[%s165 + $0x9c] sm:$0xf]
      %v1563 = vld [vmem:[%s165 + $0xa0] sm:$0xf]
      %v1564 = vld [vmem:[%s165 + $0xa4] sm:$0xf]
      %v1565 = vld [vmem:[%s165 + $0xa8] sm:$0xf]
      %v1566 = vld [vmem:[%s165 + $0xac] sm:$0xf]
      %v1567 = vld [vmem:[%s165 + $0xb0] sm:$0xf]
      %v1568 = vld [vmem:[%s165 + $0xb4] sm:$0xf]
      %v1569 = vld [vmem:[%s165 + $0xb8] sm:$0xf]
      %v1570 = vld [vmem:[%s165 + $0xbc] sm:$0xf]
      %v1571 = vld [vmem:[%s165 + $0xc0] sm:$0xf]
      %v1572 = vld [vmem:[%s165 + $0xc4] sm:$0xf]
      %v1573 = vld [vmem:[%s165 + $0xc8] sm:$0xf]
      %s1574 = scalar_lea.vmem %s1, 6
      %v1575 = vld [vmem:[%s1574] sm:$0x3]
      %v1624 = vunpack.c.l.b16 %v1526
      %v1625 = vunpack.c.l.b16 %v1527
      %v1626 = vunpack.c.l.b16 %v1528
      %v1627 = vunpack.c.l.b16 %v1529
      %v1628 = vunpack.c.l.b16 %v1530
      %v1629 = vunpack.c.l.b16 %v1531
      %v1630 = vunpack.c.l.b16 %v1532
      %v1631 = vunpack.c.l.b16 %v1533
      %v1632 = vunpack.c.l.b16 %v1534
      %v1633 = vunpack.c.l.b16 %v1535
      %v1634 = vunpack.c.l.b16 %v1536
      %v1635 = vunpack.c.l.b16 %v1537
      %v1636 = vunpack.c.l.b16 %v1538
      %v1637 = vunpack.c.l.b16 %v1539
      %v1638 = vunpack.c.l.b16 %v1540
      %v1639 = vunpack.c.l.b16 %v1541
      %v1640 = vunpack.c.l.b16 %v1542
      %v1641 = vunpack.c.l.b16 %v1543
      %v1642 = vunpack.c.l.b16 %v1544
      %v1643 = vunpack.c.l.b16 %v1545
      %v1644 = vunpack.c.l.b16 %v1546
      %v1645 = vunpack.c.l.b16 %v1547
      %v1646 = vunpack.c.l.b16 %v1548
      %v1647 = vunpack.c.l.b16 %v1549
      %v1648 = vunpack.c.l.b16 %v1550
      %v1649 = vunpack.c.l.b16 %v1551
      %v1650 = vunpack.c.l.b16 %v1552
      %v1651 = vunpack.c.l.b16 %v1553
      %v1652 = vunpack.c.l.b16 %v1554
      %v1653 = vunpack.c.l.b16 %v1555
      %v1654 = vunpack.c.l.b16 %v1556
      %v1655 = vunpack.c.l.b16 %v1557
      %v1656 = vunpack.c.l.b16 %v1558
      %v1657 = vunpack.c.l.b16 %v1559
      %v1658 = vunpack.c.l.b16 %v1560
      %v1659 = vunpack.c.l.b16 %v1561
      %v1660 = vunpack.c.l.b16 %v1562
      %v1661 = vunpack.c.l.b16 %v1563
      %v1662 = vunpack.c.l.b16 %v1564
      %v1663 = vunpack.c.l.b16 %v1565
      %v1664 = vunpack.c.l.b16 %v1566
      %v1665 = vunpack.c.l.b16 %v1567
      %v1666 = vunpack.c.l.b16 %v1568
      %v1667 = vunpack.c.l.b16 %v1569
      %v1668 = vunpack.c.l.b16 %v1570
      %v1669 = vunpack.c.l.b16 %v1571
      %v1670 = vunpack.c.l.b16 %v1572
      %v1671 = vunpack.c.l.b16 %v1573
      %v1672 = vpack.c.b16 %v1625, %v1624
      %v1673 = vpack.c.b16 %v1627, %v1626
      %v1674 = vpack.c.b16 %v1629, %v1628
      %v1675 = vpack.c.b16 %v1631, %v1630
      %v1676 = vpack.c.b16 %v1633, %v1632
      %v1677 = vpack.c.b16 %v1635, %v1634
      %v1678 = vpack.c.b16 %v1637, %v1636
      %v1679 = vpack.c.b16 %v1639, %v1638
      %v1680 = vpack.c.b16 %v1641, %v1640
      %v1681 = vpack.c.b16 %v1643, %v1642
      %v1682 = vpack.c.b16 %v1645, %v1644
      %v1683 = vpack.c.b16 %v1647, %v1646
      %v1684 = vpack.c.b16 %v1649, %v1648
      %v1685 = vpack.c.b16 %v1651, %v1650
      %v1686 = vpack.c.b16 %v1653, %v1652
      %v1687 = vpack.c.b16 %v1655, %v1654
      %v1688 = vpack.c.b16 %v1657, %v1656
      %v1689 = vpack.c.b16 %v1659, %v1658
      %v1690 = vpack.c.b16 %v1661, %v1660
      %v1691 = vpack.c.b16 %v1663, %v1662
      %v1692 = vpack.c.b16 %v1665, %v1664
      %v1693 = vpack.c.b16 %v1667, %v1666
      %v1694 = vpack.c.b16 %v1669, %v1668
      %v1695 = vpack.c.b16 %v1671, %v1670
      %v1697 = vsel %vm544, %v1672, 0
      %v1700 = vsel %vm544, %v1673, 0
      %v1703 = vsel %vm544, %v1674, 0
      %v1706 = vsel %vm544, %v1675, 0
      %v1709 = vsel %vm544, %v1676, 0
      %v1712 = vsel %vm544, %v1677, 0
      %v1715 = vsel %vm544, %v1678, 0
      %v1718 = vsel %vm544, %v1679, 0
      %v1721 = vsel %vm544, %v1680, 0
      %v1724 = vsel %vm544, %v1681, 0
      %v1727 = vsel %vm544, %v1682, 0
      %v1730 = vsel %vm544, %v1683, 0
      %v1733 = vsel %vm544, %v1684, 0
      %v1736 = vsel %vm544, %v1685, 0
      %v1739 = vsel %vm544, %v1686, 0
      %v1742 = vsel %vm544, %v1687, 0
      %v1745 = vsel %vm544, %v1688, 0
      %v1748 = vsel %vm544, %v1689, 0
      %v1751 = vsel %vm544, %v1690, 0
      %v1754 = vsel %vm544, %v1691, 0
      %v1757 = vsel %vm544, %v1692, 0
      %v1760 = vsel %vm544, %v1693, 0
      %v1763 = vsel %vm544, %v1694, 0
      %v1766 = vsel %vm544, %v1695, 0
      %v1769 = vsel %vm617, %v1575, 0
      %1771 = vmatprep.subr.bf16.mxu0 0
      %1772 = vmatpush1.bf16.msra.mxu0 %v1769
      %1773 = vmatprep.subr.bf16.mxu0 0
      %1774 = vmatpush1.bf16.msra.mxu0 0
      %1775 = vmatprep.subr.bf16.mxu0 0
      %1776 = vmatpush1.bf16.msra.mxu0 0
      %1777 = vmatprep.subr.bf16.mxu0 0
      %1778 = vmatpush1.bf16.msra.mxu0 0
      %1779 = vmatprep.subr.bf16.mxu0 0
      %1780 = vmatpush1.bf16.msra.mxu0 0
      %1781 = vmatprep.subr.bf16.mxu0 0
      %1782 = vmatpush1.bf16.msra.mxu0 0
      %1783 = vmatprep.subr.bf16.mxu0 0
      %1784 = vmatpush1.bf16.msra.mxu0 0
      %1785 = vmatprep.subr.bf16.mxu0 0
      %1786 = vmatpush1.bf16.msra.mxu0 0
      %1787 = vmatprep.subr.bf16.mxu0 0
      %1788 = vmatpush1.bf16.msra.mxu0 0
      %1789 = vmatprep.subr.bf16.mxu0 0
      %1790 = vmatpush1.bf16.msra.mxu0 0
      %1791 = vmatprep.subr.bf16.mxu0 0
      %1792 = vmatpush1.bf16.msra.mxu0 0
      %1793 = vmatprep.subr.bf16.mxu0 0
      %1794 = vmatpush1.bf16.msra.mxu0 0
      %1795 = vmatprep.subr.bf16.mxu0 0
      %1796 = vmatpush1.bf16.msra.mxu0 0
      %1797 = vmatprep.subr.bf16.mxu0 0
      %1798 = vmatpush1.bf16.msra.mxu0 0
      %1799 = vmatprep.subr.bf16.mxu0 0
      %1800 = vmatpush1.bf16.msra.mxu0 0
      %1801 = vmatprep.subr.bf16.mxu0 0
      %1802 = vmatpush1.bf16.msra.mxu0 0
      %1803 = vmatprep.mubr.bf16.mxu0 0
      %1804 = vmatmul.mubr.bf16.gmra.mrb[0].mxu0 %v1697
      %v1805 = vpop.f32.mrb[0].mxu0
      %v1806 = vadd.f32 0.0, %v1805
      %v1807 = vpop.f32.mrb[0].mxu0
      %v1808 = vpop.f32.mrb[0].mxu0
      %v1809 = vadd.f32 0.0, %v1808
      %v1810 = vpop.f32.mrb[0].mxu0
      %1811 = vmatprep.mubr.bf16.mxu0 0
      %1812 = vmatmul.mubr.bf16.gmra.mrb[0].mxu0 %v1700
      %v1813 = vpop.f32.mrb[0].mxu0
      %v1814 = vadd.f32 0.0, %v1813
      %v1815 = vpop.f32.mrb[0].mxu0
      %v1816 = vpop.f32.mrb[0].mxu0
      %v1817 = vadd.f32 0.0, %v1816
      %v1818 = vpop.f32.mrb[0].mxu0
      %1819 = vmatprep.mubr.bf16.mxu0 0
      %1820 = vmatmul.mubr.bf16.gmra.mrb[0].mxu0 %v1703
      %v1821 = vpop.f32.mrb[0].mxu0
      %v1822 = vadd.f32 0.0, %v1821
      %v1823 = vpop.f32.mrb[0].mxu0
      %v1824 = vpop.f32.mrb[0].mxu0
      %v1825 = vadd.f32 0.0, %v1824
      %v1826 = vpop.f32.mrb[0].mxu0
      %1827 = vmatprep.mubr.bf16.mxu0 0
      %1828 = vmatmul.mubr.bf16.gmra.mrb[0].mxu0 %v1706
      %v1829 = vpop.f32.mrb[0].mxu0
      %v1830 = vadd.f32 0.0, %v1829
      %v1831 = vpop.f32.mrb[0].mxu0
      %v1832 = vpop.f32.mrb[0].mxu0
      %v1833 = vadd.f32 0.0, %v1832
      %v1834 = vpop.f32.mrb[0].mxu0
      %1835 = vmatprep.mubr.bf16.mxu0 0
      %1836 = vmatmul.mubr.bf16.gmra.mrb[0].mxu0 %v1709
      %v1837 = vpop.f32.mrb[0].mxu0
      %v1838 = vadd.f32 0.0, %v1837
      %v1839 = vpop.f32.mrb[0].mxu0
      %v1840 = vpop.f32.mrb[0].mxu0
      %v1841 = vadd.f32 0.0, %v1840
      %v1842 = vpop.f32.mrb[0].mxu0
      %1843 = vmatprep.mubr.bf16.mxu0 0
      %1844 = vmatmul.mubr.bf16.gmra.mrb[0].mxu0 %v1712
      %v1845 = vpop.f32.mrb[0].mxu0
      %v1846 = vadd.f32 0.0, %v1845
      %v1847 = vpop.f32.mrb[0].mxu0
      %v1848 = vpop.f32.mrb[0].mxu0
      %v1849 = vadd.f32 0.0, %v1848
      %v1850 = vpop.f32.mrb[0].mxu0
      %1851 = vmatprep.mubr.bf16.mxu0 0
      %1852 = vmatmul.mubr.bf16.gmra.mrb[0].mxu0 %v1715
      %v1853 = vpop.f32.mrb[0].mxu0
      %v1854 = vadd.f32 0.0, %v1853
      %v1855 = vpop.f32.mrb[0].mxu0
      %v1856 = vpop.f32.mrb[0].mxu0
      %v1857 = vadd.f32 0.0, %v1856
      %v1858 = vpop.f32.mrb[0].mxu0
      %1859 = vmatprep.mubr.bf16.mxu0 0
      %1860 = vmatmul.mubr.bf16.gmra.mrb[0].mxu0 %v1718
      %v1861 = vpop.f32.mrb[0].mxu0
      %v1862 = vadd.f32 0.0, %v1861
      %v1863 = vpop.f32.mrb[0].mxu0
      %v1864 = vpop.f32.mrb[0].mxu0
      %v1865 = vadd.f32 0.0, %v1864
      %v1866 = vpop.f32.mrb[0].mxu0
      %1867 = vmatprep.mubr.bf16.mxu0 0
      %1868 = vmatmul.mubr.bf16.gmra.mrb[0].mxu0 %v1721
      %v1869 = vpop.f32.mrb[0].mxu0
      %v1870 = vadd.f32 0.0, %v1869
      %v1871 = vpop.f32.mrb[0].mxu0
      %v1872 = vpop.f32.mrb[0].mxu0
      %v1873 = vadd.f32 0.0, %v1872
      %v1874 = vpop.f32.mrb[0].mxu0
      %1875 = vmatprep.mubr.bf16.mxu0 0
      %1876 = vmatmul.mubr.bf16.gmra.mrb[0].mxu0 %v1724
      %v1877 = vpop.f32.mrb[0].mxu0
      %v1878 = vadd.f32 0.0, %v1877
      %v1879 = vpop.f32.mrb[0].mxu0
      %v1880 = vpop.f32.mrb[0].mxu0
      %v1881 = vadd.f32 0.0, %v1880
      %v1882 = vpop.f32.mrb[0].mxu0
      %1883 = vmatprep.mubr.bf16.mxu0 0
      %1884 = vmatmul.mubr.bf16.gmra.mrb[0].mxu0 %v1727
      %v1885 = vpop.f32.mrb[0].mxu0
      %v1886 = vadd.f32 0.0, %v1885
      %v1887 = vpop.f32.mrb[0].mxu0
      %v1888 = vpop.f32.mrb[0].mxu0
      %v1889 = vadd.f32 0.0, %v1888
      %v1890 = vpop.f32.mrb[0].mxu0
      %1891 = vmatprep.mubr.bf16.mxu0 0
      %1892 = vmatmul.mubr.bf16.gmra.mrb[0].mxu0 %v1730
      %v1893 = vpop.f32.mrb[0].mxu0
      %v1894 = vadd.f32 0.0, %v1893
      %v1895 = vpop.f32.mrb[0].mxu0
      %v1896 = vpop.f32.mrb[0].mxu0
      %v1897 = vadd.f32 0.0, %v1896
      %v1898 = vpop.f32.mrb[0].mxu0
      %1899 = vmatprep.mubr.bf16.mxu0 0
      %1900 = vmatmul.mubr.bf16.gmra.mrb[0].mxu0 %v1733
      %v1901 = vpop.f32.mrb[0].mxu0
      %v1902 = vadd.f32 0.0, %v1901
      %v1903 = vpop.f32.mrb[0].mxu0
      %v1904 = vpop.f32.mrb[0].mxu0
      %v1905 = vadd.f32 0.0, %v1904
      %v1906 = vpop.f32.mrb[0].mxu0
      %1907 = vmatprep.mubr.bf16.mxu0 0
      %1908 = vmatmul.mubr.bf16.gmra.mrb[0].mxu0 %v1736
      %v1909 = vpop.f32.mrb[0].mxu0
      %v1910 = vadd.f32 0.0, %v1909
      %v1911 = vpop.f32.mrb[0].mxu0
      %v1912 = vpop.f32.mrb[0].mxu0
      %v1913 = vadd.f32 0.0, %v1912
      %v1914 = vpop.f32.mrb[0].mxu0
      %1915 = vmatprep.mubr.bf16.mxu0 0
      %1916 = vmatmul.mubr.bf16.gmra.mrb[0].mxu0 %v1739
      %v1917 = vpop.f32.mrb[0].mxu0
      %v1918 = vadd.f32 0.0, %v1917
      %v1919 = vpop.f32.mrb[0].mxu0
      %v1920 = vpop.f32.mrb[0].mxu0
      %v1921 = vadd.f32 0.0, %v1920
      %v1922 = vpop.f32.mrb[0].mxu0
      %1923 = vmatprep.mubr.bf16.mxu0 0
      %1924 = vmatmul.mubr.bf16.gmra.mrb[0].mxu0 %v1742
      %v1925 = vpop.f32.mrb[0].mxu0
      %v1926 = vadd.f32 0.0, %v1925
      %v1927 = vpop.f32.mrb[0].mxu0
      %v1928 = vpop.f32.mrb[0].mxu0
      %v1929 = vadd.f32 0.0, %v1928
      %v1930 = vpop.f32.mrb[0].mxu0
      %1931 = vmatprep.mubr.bf16.mxu0 0
      %1932 = vmatmul.mubr.bf16.gmra.mrb[0].mxu0 %v1745
      %v1933 = vpop.f32.mrb[0].mxu0
      %v1934 = vadd.f32 0.0, %v1933
      %v1935 = vpop.f32.mrb[0].mxu0
      %v1936 = vpop.f32.mrb[0].mxu0
      %v1937 = vadd.f32 0.0, %v1936
      %v1938 = vpop.f32.mrb[0].mxu0
      %1939 = vmatprep.mubr.bf16.mxu0 0
      %1940 = vmatmul.mubr.bf16.gmra.mrb[0].mxu0 %v1748
      %v1941 = vpop.f32.mrb[0].mxu0
      %v1942 = vadd.f32 0.0, %v1941
      %v1943 = vpop.f32.mrb[0].mxu0
      %v1944 = vpop.f32.mrb[0].mxu0
      %v1945 = vadd.f32 0.0, %v1944
      %v1946 = vpop.f32.mrb[0].mxu0
      %1947 = vmatprep.mubr.bf16.mxu0 0
      %1948 = vmatmul.mubr.bf16.gmra.mrb[0].mxu0 %v1751
      %v1949 = vpop.f32.mrb[0].mxu0
      %v1950 = vadd.f32 0.0, %v1949
      %v1951 = vpop.f32.mrb[0].mxu0
      %v1952 = vpop.f32.mrb[0].mxu0
      %v1953 = vadd.f32 0.0, %v1952
      %v1954 = vpop.f32.mrb[0].mxu0
      %1955 = vmatprep.mubr.bf16.mxu0 0
      %1956 = vmatmul.mubr.bf16.gmra.mrb[0].mxu0 %v1754
      %v1957 = vpop.f32.mrb[0].mxu0
      %v1958 = vadd.f32 0.0, %v1957
      %v1959 = vpop.f32.mrb[0].mxu0
      %v1960 = vpop.f32.mrb[0].mxu0
      %v1961 = vadd.f32 0.0, %v1960
      %v1962 = vpop.f32.mrb[0].mxu0
      %1963 = vmatprep.mubr.bf16.mxu0 0
      %1964 = vmatmul.mubr.bf16.gmra.mrb[0].mxu0 %v1757
      %v1965 = vpop.f32.mrb[0].mxu0
      %v1966 = vadd.f32 0.0, %v1965
      %v1967 = vpop.f32.mrb[0].mxu0
      %v1968 = vpop.f32.mrb[0].mxu0
      %v1969 = vadd.f32 0.0, %v1968
      %v1970 = vpop.f32.mrb[0].mxu0
      %1971 = vmatprep.mubr.bf16.mxu0 0
      %1972 = vmatmul.mubr.bf16.gmra.mrb[0].mxu0 %v1760
      %v1973 = vpop.f32.mrb[0].mxu0
      %v1974 = vadd.f32 0.0, %v1973
      %v1975 = vpop.f32.mrb[0].mxu0
      %v1976 = vpop.f32.mrb[0].mxu0
      %v1977 = vadd.f32 0.0, %v1976
      %v1978 = vpop.f32.mrb[0].mxu0
      %1979 = vmatprep.mubr.bf16.mxu0 0
      %1980 = vmatmul.mubr.bf16.gmra.mrb[0].mxu0 %v1763
      %v1981 = vpop.f32.mrb[0].mxu0
      %v1982 = vadd.f32 0.0, %v1981
      %v1983 = vpop.f32.mrb[0].mxu0
      %v1984 = vpop.f32.mrb[0].mxu0
      %v1985 = vadd.f32 0.0, %v1984
      %v1986 = vpop.f32.mrb[0].mxu0
      %1987 = vmatprep.mubr.bf16.mxu0 0
      %1988 = vmatmul.mubr.bf16.gmra.mrb[0].mxu0 %v1766
      %v1989 = vpop.f32.mrb[0].mxu0
      %v1990 = vadd.f32 0.0, %v1989
      %v1991 = vpop.f32.mrb[0].mxu0
      %v1992 = vpop.f32.mrb[0].mxu0
      %v1993 = vadd.f32 0.0, %v1992
      %v1994 = vpop.f32.mrb[0].mxu0
      %1995 = vdwg.mxu0
      %v1996 = vadd.f32 %v1478, %v1806
      %v1997 = vadd.f32 %v1479, %v1809
      %v1998 = vadd.f32 %v1480, %v1814
      %v1999 = vadd.f32 %v1481, %v1817
      %v2000 = vadd.f32 %v1482, %v1822
      %v2001 = vadd.f32 %v1483, %v1825
      %v2002 = vadd.f32 %v1484, %v1830
      %v2003 = vadd.f32 %v1485, %v1833
      %v2004 = vadd.f32 %v1486, %v1838
      %v2005 = vadd.f32 %v1487, %v1841
      %v2006 = vadd.f32 %v1488, %v1846
      %v2007 = vadd.f32 %v1489, %v1849
      %v2008 = vadd.f32 %v1490, %v1854
      %v2009 = vadd.f32 %v1491, %v1857
      %v2010 = vadd.f32 %v1492, %v1862
      %v2011 = vadd.f32 %v1493, %v1865
      %v2012 = vadd.f32 %v1494, %v1870
      %v2013 = vadd.f32 %v1495, %v1873
      %v2014 = vadd.f32 %v1496, %v1878
      %v2015 = vadd.f32 %v1497, %v1881
      %v2016 = vadd.f32 %v1498, %v1886
      %v2017 = vadd.f32 %v1499, %v1889
      %v2018 = vadd.f32 %v1500, %v1894
      %v2019 = vadd.f32 %v1501, %v1897
      %v2020 = vadd.f32 %v1502, %v1902
      %v2021 = vadd.f32 %v1503, %v1905
      %v2022 = vadd.f32 %v1504, %v1910
      %v2023 = vadd.f32 %v1505, %v1913
      %v2024 = vadd.f32 %v1506, %v1918
      %v2025 = vadd.f32 %v1507, %v1921
      %v2026 = vadd.f32 %v1508, %v1926
      %v2027 = vadd.f32 %v1509, %v1929
      %v2028 = vadd.f32 %v1510, %v1934
      %v2029 = vadd.f32 %v1511, %v1937
      %v2030 = vadd.f32 %v1512, %v1942
      %v2031 = vadd.f32 %v1513, %v1945
      %v2032 = vadd.f32 %v1514, %v1950
      %v2033 = vadd.f32 %v1515, %v1953
      %v2034 = vadd.f32 %v1516, %v1958
      %v2035 = vadd.f32 %v1517, %v1961
      %v2036 = vadd.f32 %v1518, %v1966
      %v2037 = vadd.f32 %v1519, %v1969
      %v2038 = vadd.f32 %v1520, %v1974
      %v2039 = vadd.f32 %v1521, %v1977
      %v2040 = vadd.f32 %v1522, %v1982
      %v2041 = vadd.f32 %v1523, %v1985
      %v2042 = vadd.f32 %v1524, %v1990
      %v2043 = vadd.f32 %v1525, %v1993
      %v2044 = vld [vmem:[%s165 + $0xc] sm:$0xf]
      %v2045 = vld [vmem:[%s165 + $0x10] sm:$0xf]
      %v2046 = vld [vmem:[%s165 + $0x14] sm:$0xf]
      %v2047 = vld [vmem:[%s165 + $0x18] sm:$0xf]
      %v2048 = vld [vmem:[%s165 + $0x1c] sm:$0xf]
      %v2049 = vld [vmem:[%s165 + $0x20] sm:$0xf]
      %v2050 = vld [vmem:[%s165 + $0x24] sm:$0xf]
      %v2051 = vld [vmem:[%s165 + $0x28] sm:$0xf]
      %v2052 = vld [vmem:[%s165 + $0x2c] sm:$0xf]
      %v2053 = vld [vmem:[%s165 + $0x30] sm:$0xf]
      %v2054 = vld [vmem:[%s165 + $0x34] sm:$0xf]
      %v2055 = vld [vmem:[%s165 + $0x38] sm:$0xf]
      %v2056 = vld [vmem:[%s165 + $0x3c] sm:$0xf]
      %v2057 = vld [vmem:[%s165 + $0x40] sm:$0xf]
      %v2058 = vld [vmem:[%s165 + $0x44] sm:$0xf]
      %v2059 = vld [vmem:[%s165 + $0x48] sm:$0xf]
      %v2060 = vld [vmem:[%s165 + $0x4c] sm:$0xf]
      %v2061 = vld [vmem:[%s165 + $0x50] sm:$0xf]
      %v2062 = vld [vmem:[%s165 + $0x54] sm:$0xf]
      %v2063 = vld [vmem:[%s165 + $0x58] sm:$0xf]
      %v2064 = vld [vmem:[%s165 + $0x5c] sm:$0xf]
      %v2065 = vld [vmem:[%s165 + $0x60] sm:$0xf]
      %v2066 = vld [vmem:[%s165 + $0x64] sm:$0xf]
      %v2067 = vld [vmem:[%s165 + $0x68] sm:$0xf]
      %v2068 = vld [vmem:[%s165 + $0x6c] sm:$0xf]
      %v2069 = vld [vmem:[%s165 + $0x70] sm:$0xf]
      %v2070 = vld [vmem:[%s165 + $0x74] sm:$0xf]
      %v2071 = vld [vmem:[%s165 + $0x78] sm:$0xf]
      %v2072 = vld [vmem:[%s165 + $0x7c] sm:$0xf]
      %v2073 = vld [vmem:[%s165 + $0x80] sm:$0xf]
      %v2074 = vld [vmem:[%s165 + $0x84] sm:$0xf]
      %v2075 = vld [vmem:[%s165 + $0x88] sm:$0xf]
      %v2076 = vld [vmem:[%s165 + $0x8c] sm:$0xf]
      %v2077 = vld [vmem:[%s165 + $0x90] sm:$0xf]
      %v2078 = vld [vmem:[%s165 + $0x94] sm:$0xf]
      %v2079 = vld [vmem:[%s165 + $0x98] sm:$0xf]
      %v2080 = vld [vmem:[%s165 + $0x9c] sm:$0xf]
      %v2081 = vld [vmem:[%s165 + $0xa0] sm:$0xf]
      %v2082 = vld [vmem:[%s165 + $0xa4] sm:$0xf]
      %v2083 = vld [vmem:[%s165 + $0xa8] sm:$0xf]
      %v2084 = vld [vmem:[%s165 + $0xac] sm:$0xf]
      %v2085 = vld [vmem:[%s165 + $0xb0] sm:$0xf]
      %v2086 = vld [vmem:[%s165 + $0xb4] sm:$0xf]
      %v2087 = vld [vmem:[%s165 + $0xb8] sm:$0xf]
      %v2088 = vld [vmem:[%s165 + $0xbc] sm:$0xf]
      %v2089 = vld [vmem:[%s165 + $0xc0] sm:$0xf]
      %v2090 = vld [vmem:[%s165 + $0xc4] sm:$0xf]
      %v2091 = vld [vmem:[%s165 + $0xc8] sm:$0xf]
      %v2092 = vld [vmem:[%s165 + $0xcc] sm:$0x1]
      %s2093 = scalar_lea.vmem %s1, 8
      %v2094 = vld [vmem:[%s2093] sm:$0x3]
      %v2144 = vunpack.c.l.b16 %v2044
      %v2145 = vunpack.c.l.b16 %v2045
      %v2146 = vunpack.c.l.b16 %v2046
      %v2147 = vunpack.c.l.b16 %v2047
      %v2148 = vunpack.c.l.b16 %v2048
      %v2149 = vunpack.c.l.b16 %v2049
      %v2150 = vunpack.c.l.b16 %v2050
      %v2151 = vunpack.c.l.b16 %v2051
      %v2152 = vunpack.c.l.b16 %v2052
      %v2153 = vunpack.c.l.b16 %v2053
      %v2154 = vunpack.c.l.b16 %v2054
      %v2155 = vunpack.c.l.b16 %v2055
      %v2156 = vunpack.c.l.b16 %v2056
      %v2157 = vunpack.c.l.b16 %v2057
      %v2158 = vunpack.c.l.b16 %v2058
      %v2159 = vunpack.c.l.b16 %v2059
      %v2160 = vunpack.c.l.b16 %v2060
      %v2161 = vunpack.c.l.b16 %v2061
      %v2162 = vunpack.c.l.b16 %v2062
      %v2163 = vunpack.c.l.b16 %v2063
      %v2164 = vunpack.c.l.b16 %v2064
      %v2165 = vunpack.c.l.b16 %v2065
      %v2166 = vunpack.c.l.b16 %v2066
      %v2167 = vunpack.c.l.b16 %v2067
      %v2168 = vunpack.c.l.b16 %v2068
      %v2169 = vunpack.c.l.b16 %v2069
      %v2170 = vunpack.c.l.b16 %v2070
      %v2171 = vunpack.c.l.b16 %v2071
      %v2172 = vunpack.c.l.b16 %v2072
      %v2173 = vunpack.c.l.b16 %v2073
      %v2174 = vunpack.c.l.b16 %v2074
      %v2175 = vunpack.c.l.b16 %v2075
      %v2176 = vunpack.c.l.b16 %v2076
      %v2177 = vunpack.c.l.b16 %v2077
      %v2178 = vunpack.c.l.b16 %v2078
      %v2179 = vunpack.c.l.b16 %v2079
      %v2180 = vunpack.c.l.b16 %v2080
      %v2181 = vunpack.c.l.b16 %v2081
      %v2182 = vunpack.c.l.b16 %v2082
      %v2183 = vunpack.c.l.b16 %v2083
      %v2184 = vunpack.c.l.b16 %v2084
      %v2185 = vunpack.c.l.b16 %v2085
      %v2186 = vunpack.c.l.b16 %v2086
      %v2187 = vunpack.c.l.b16 %v2087
      %v2188 = vunpack.c.l.b16 %v2088
      %v2189 = vunpack.c.l.b16 %v2089
      %v2190 = vunpack.c.l.b16 %v2090
      %v2191 = vunpack.c.l.b16 %v2091
      %v2192 = vunpack.c.l.b16 %v2092
      %v2193 = vpack.c.b16 %v2145, %v2144
      %v2194 = vpack.c.b16 %v2147, %v2146
      %v2195 = vpack.c.b16 %v2149, %v2148
      %v2196 = vpack.c.b16 %v2151, %v2150
      %v2197 = vpack.c.b16 %v2153, %v2152
      %v2198 = vpack.c.b16 %v2155, %v2154
      %v2199 = vpack.c.b16 %v2157, %v2156
      %v2200 = vpack.c.b16 %v2159, %v2158
      %v2201 = vpack.c.b16 %v2161, %v2160
      %v2202 = vpack.c.b16 %v2163, %v2162
      %v2203 = vpack.c.b16 %v2165, %v2164
      %v2204 = vpack.c.b16 %v2167, %v2166
      %v2205 = vpack.c.b16 %v2169, %v2168
      %v2206 = vpack.c.b16 %v2171, %v2170
      %v2207 = vpack.c.b16 %v2173, %v2172
      %v2208 = vpack.c.b16 %v2175, %v2174
      %v2209 = vpack.c.b16 %v2177, %v2176
      %v2210 = vpack.c.b16 %v2179, %v2178
      %v2211 = vpack.c.b16 %v2181, %v2180
      %v2212 = vpack.c.b16 %v2183, %v2182
      %v2213 = vpack.c.b16 %v2185, %v2184
      %v2214 = vpack.c.b16 %v2187, %v2186
      %v2215 = vpack.c.b16 %v2189, %v2188
      %v2216 = vpack.c.b16 %v2191, %v2190
      %v2217 = vpack.c.b16 %v2192, %v2192
      %v2219 = vshrl.u32 %v2193, 16
      %v2221 = vshll.u32 %v2193, 16
      %v2223 = vrot.slane %v2221, 1
      %v2224 = vor.u32 %v2219, %v2223
      %v2226 = vshll.u32 %v2194, 16
      %v2228 = vrot.slane %v2226, 1
      %v2229 = vsel %vm347, %v2224, %v2228
      %v2230 = vshrl.u32 %v2194, 16
      %v2232 = vor.u32 %v2230, %v2228
      %v2234 = vshll.u32 %v2195, 16
      %v2236 = vrot.slane %v2234, 1
      %v2237 = vsel %vm347, %v2232, %v2236
      %v2238 = vshrl.u32 %v2195, 16
      %v2240 = vor.u32 %v2238, %v2236
      %v2242 = vshll.u32 %v2196, 16
      %v2244 = vrot.slane %v2242, 1
      %v2245 = vsel %vm347, %v2240, %v2244
      %v2246 = vshrl.u32 %v2196, 16
      %v2248 = vor.u32 %v2246, %v2244
      %v2250 = vshll.u32 %v2197, 16
      %v2252 = vrot.slane %v2250, 1
      %v2253 = vsel %vm347, %v2248, %v2252
      %v2254 = vshrl.u32 %v2197, 16
      %v2256 = vor.u32 %v2254, %v2252
      %v2258 = vshll.u32 %v2198, 16
      %v2260 = vrot.slane %v2258, 1
      %v2261 = vsel %vm347, %v2256, %v2260
      %v2262 = vshrl.u32 %v2198, 16
      %v2264 = vor.u32 %v2262, %v2260
      %v2266 = vshll.u32 %v2199, 16
      %v2268 = vrot.slane %v2266, 1
      %v2269 = vsel %vm347, %v2264, %v2268
      %v2270 = vshrl.u32 %v2199, 16
      %v2272 = vor.u32 %v2270, %v2268
      %v2274 = vshll.u32 %v2200, 16
      %v2276 = vrot.slane %v2274, 1
      %v2277 = vsel %vm347, %v2272, %v2276
      %v2278 = vshrl.u32 %v2200, 16
      %v2280 = vor.u32 %v2278, %v2276
      %v2282 = vshll.u32 %v2201, 16
      %v2284 = vrot.slane %v2282, 1
      %v2285 = vsel %vm347, %v2280, %v2284
      %v2286 = vshrl.u32 %v2201, 16
      %v2288 = vor.u32 %v2286, %v2284
      %v2290 = vshll.u32 %v2202, 16
      %v2292 = vrot.slane %v2290, 1
      %v2293 = vsel %vm347, %v2288, %v2292
      %v2294 = vshrl.u32 %v2202, 16
      %v2296 = vor.u32 %v2294, %v2292
      %v2298 = vshll.u32 %v2203, 16
      %v2300 = vrot.slane %v2298, 1
      %v2301 = vsel %vm347, %v2296, %v2300
      %v2302 = vshrl.u32 %v2203, 16
      %v2304 = vor.u32 %v2302, %v2300
      %v2306 = vshll.u32 %v2204, 16
      %v2308 = vrot.slane %v2306, 1
      %v2309 = vsel %vm347, %v2304, %v2308
      %v2310 = vshrl.u32 %v2204, 16
      %v2312 = vor.u32 %v2310, %v2308
      %v2314 = vshll.u32 %v2205, 16
      %v2316 = vrot.slane %v2314, 1
      %v2317 = vsel %vm347, %v2312, %v2316
      %v2318 = vshrl.u32 %v2205, 16
      %v2320 = vor.u32 %v2318, %v2316
      %v2322 = vshll.u32 %v2206, 16
      %v2324 = vrot.slane %v2322, 1
      %v2325 = vsel %vm347, %v2320, %v2324
      %v2326 = vshrl.u32 %v2206, 16
      %v2328 = vor.u32 %v2326, %v2324
      %v2330 = vshll.u32 %v2207, 16
      %v2332 = vrot.slane %v2330, 1
      %v2333 = vsel %vm347, %v2328, %v2332
      %v2334 = vshrl.u32 %v2207, 16
      %v2336 = vor.u32 %v2334, %v2332
      %v2338 = vshll.u32 %v2208, 16
      %v2340 = vrot.slane %v2338, 1
      %v2341 = vsel %vm347, %v2336, %v2340
      %v2342 = vshrl.u32 %v2208, 16
      %v2344 = vor.u32 %v2342, %v2340
      %v2346 = vshll.u32 %v2209, 16
      %v2348 = vrot.slane %v2346, 1
      %v2349 = vsel %vm347, %v2344, %v2348
      %v2350 = vshrl.u32 %v2209, 16
      %v2352 = vor.u32 %v2350, %v2348
      %v2354 = vshll.u32 %v2210, 16
      %v2356 = vrot.slane %v2354, 1
      %v2357 = vsel %vm347, %v2352, %v2356
      %v2358 = vshrl.u32 %v2210, 16
      %v2360 = vor.u32 %v2358, %v2356
      %v2362 = vshll.u32 %v2211, 16
      %v2364 = vrot.slane %v2362, 1
      %v2365 = vsel %vm347, %v2360, %v2364
      %v2366 = vshrl.u32 %v2211, 16
      %v2368 = vor.u32 %v2366, %v2364
      %v2370 = vshll.u32 %v2212, 16
      %v2372 = vrot.slane %v2370, 1
      %v2373 = vsel %vm347, %v2368, %v2372
      %v2374 = vshrl.u32 %v2212, 16
      %v2376 = vor.u32 %v2374, %v2372
      %v2378 = vshll.u32 %v2213, 16
      %v2380 = vrot.slane %v2378, 1
      %v2381 = vsel %vm347, %v2376, %v2380
      %v2382 = vshrl.u32 %v2213, 16
      %v2384 = vor.u32 %v2382, %v2380
      %v2386 = vshll.u32 %v2214, 16
      %v2388 = vrot.slane %v2386, 1
      %v2389 = vsel %vm347, %v2384, %v2388
      %v2390 = vshrl.u32 %v2214, 16
      %v2392 = vor.u32 %v2390, %v2388
      %v2394 = vshll.u32 %v2215, 16
      %v2396 = vrot.slane %v2394, 1
      %v2397 = vsel %vm347, %v2392, %v2396
      %v2398 = vshrl.u32 %v2215, 16
      %v2400 = vor.u32 %v2398, %v2396
      %v2402 = vshll.u32 %v2216, 16
      %v2404 = vrot.slane %v2402, 1
      %v2405 = vsel %vm347, %v2400, %v2404
      %v2406 = vshrl.u32 %v2216, 16
      %v2408 = vor.u32 %v2406, %v2404
      %v2410 = vshll.u32 %v2217, 16
      %v2412 = vrot.slane %v2410, 1
      %v2413 = vsel %vm347, %v2408, %v2412
      %v2415 = vsel %vm544, %v2229, 0
      %v2418 = vsel %vm544, %v2237, 0
      %v2421 = vsel %vm544, %v2245, 0
      %v2424 = vsel %vm544, %v2253, 0
      %v2427 = vsel %vm544, %v2261, 0
      %v2430 = vsel %vm544, %v2269, 0
      %v2433 = vsel %vm544, %v2277, 0
      %v2436 = vsel %vm544, %v2285, 0
      %v2439 = vsel %vm544, %v2293, 0
      %v2442 = vsel %vm544, %v2301, 0
      %v2445 = vsel %vm544, %v2309, 0
      %v2448 = vsel %vm544, %v2317, 0
      %v2451 = vsel %vm544, %v2325, 0
      %v2454 = vsel %vm544, %v2333, 0
      %v2457 = vsel %vm544, %v2341, 0
      %v2460 = vsel %vm544, %v2349, 0
      %v2463 = vsel %vm544, %v2357, 0
      %v2466 = vsel %vm544, %v2365, 0
      %v2469 = vsel %vm544, %v2373, 0
      %v2472 = vsel %vm544, %v2381, 0
      %v2475 = vsel %vm544, %v2389, 0
      %v2478 = vsel %vm544, %v2397, 0
      %v2481 = vsel %vm544, %v2405, 0
      %v2484 = vsel %vm544, %v2413, 0
      %v2487 = vsel %vm617, %v2094, 0
      %2489 = vmatprep.subr.bf16.mxu0 0
      %2490 = vmatpush1.bf16.msra.mxu0 %v2487
      %2491 = vmatprep.subr.bf16.mxu0 0
      %2492 = vmatpush1.bf16.msra.mxu0 0
      %2493 = vmatprep.subr.bf16.mxu0 0
      %2494 = vmatpush1.bf16.msra.mxu0 0
      %2495 = vmatprep.subr.bf16.mxu0 0
      %2496 = vmatpush1.bf16.msra.mxu0 0
      %2497 = vmatprep.subr.bf16.mxu0 0
      %2498 = vmatpush1.bf16.msra.mxu0 0
      %2499 = vmatprep.subr.bf16.mxu0 0
      %2500 = vmatpush1.bf16.msra.mxu0 0
      %2501 = vmatprep.subr.bf16.mxu0 0
      %2502 = vmatpush1.bf16.msra.mxu0 0
      %2503 = vmatprep.subr.bf16.mxu0 0
      %2504 = vmatpush1.bf16.msra.mxu0 0
      %2505 = vmatprep.subr.bf16.mxu0 0
      %2506 = vmatpush1.bf16.msra.mxu0 0
      %2507 = vmatprep.subr.bf16.mxu0 0
      %2508 = vmatpush1.bf16.msra.mxu0 0
      %2509 = vmatprep.subr.bf16.mxu0 0
      %2510 = vmatpush1.bf16.msra.mxu0 0
      %2511 = vmatprep.subr.bf16.mxu0 0
      %2512 = vmatpush1.bf16.msra.mxu0 0
      %2513 = vmatprep.subr.bf16.mxu0 0
      %2514 = vmatpush1.bf16.msra.mxu0 0
      %2515 = vmatprep.subr.bf16.mxu0 0
      %2516 = vmatpush1.bf16.msra.mxu0 0
      %2517 = vmatprep.subr.bf16.mxu0 0
      %2518 = vmatpush1.bf16.msra.mxu0 0
      %2519 = vmatprep.subr.bf16.mxu0 0
      %2520 = vmatpush1.bf16.msra.mxu0 0
      %2521 = vmatprep.mubr.bf16.mxu0 0
      %2522 = vmatmul.mubr.bf16.gmra.mrb[0].mxu0 %v2415
      %v2523 = vpop.f32.mrb[0].mxu0
      %v2524 = vadd.f32 0.0, %v2523
      %v2525 = vpop.f32.mrb[0].mxu0
      %v2526 = vpop.f32.mrb[0].mxu0
      %v2527 = vadd.f32 0.0, %v2526
      %v2528 = vpop.f32.mrb[0].mxu0
      %2529 = vmatprep.mubr.bf16.mxu0 0
      %2530 = vmatmul.mubr.bf16.gmra.mrb[0].mxu0 %v2418
      %v2531 = vpop.f32.mrb[0].mxu0
      %v2532 = vadd.f32 0.0, %v2531
      %v2533 = vpop.f32.mrb[0].mxu0
      %v2534 = vpop.f32.mrb[0].mxu0
      %v2535 = vadd.f32 0.0, %v2534
      %v2536 = vpop.f32.mrb[0].mxu0
      %2537 = vmatprep.mubr.bf16.mxu0 0
      %2538 = vmatmul.mubr.bf16.gmra.mrb[0].mxu0 %v2421
      %v2539 = vpop.f32.mrb[0].mxu0
      %v2540 = vadd.f32 0.0, %v2539
      %v2541 = vpop.f32.mrb[0].mxu0
      %v2542 = vpop.f32.mrb[0].mxu0
      %v2543 = vadd.f32 0.0, %v2542
      %v2544 = vpop.f32.mrb[0].mxu0
      %2545 = vmatprep.mubr.bf16.mxu0 0
      %2546 = vmatmul.mubr.bf16.gmra.mrb[0].mxu0 %v2424
      %v2547 = vpop.f32.mrb[0].mxu0
      %v2548 = vadd.f32 0.0, %v2547
      %v2549 = vpop.f32.mrb[0].mxu0
      %v2550 = vpop.f32.mrb[0].mxu0
      %v2551 = vadd.f32 0.0, %v2550
      %v2552 = vpop.f32.mrb[0].mxu0
      %2553 = vmatprep.mubr.bf16.mxu0 0
      %2554 = vmatmul.mubr.bf16.gmra.mrb[0].mxu0 %v2427
      %v2555 = vpop.f32.mrb[0].mxu0
      %v2556 = vadd.f32 0.0, %v2555
      %v2557 = vpop.f32.mrb[0].mxu0
      %v2558 = vpop.f32.mrb[0].mxu0
      %v2559 = vadd.f32 0.0, %v2558
      %v2560 = vpop.f32.mrb[0].mxu0
      %2561 = vmatprep.mubr.bf16.mxu0 0
      %2562 = vmatmul.mubr.bf16.gmra.mrb[0].mxu0 %v2430
      %v2563 = vpop.f32.mrb[0].mxu0
      %v2564 = vadd.f32 0.0, %v2563
      %v2565 = vpop.f32.mrb[0].mxu0
      %v2566 = vpop.f32.mrb[0].mxu0
      %v2567 = vadd.f32 0.0, %v2566
      %v2568 = vpop.f32.mrb[0].mxu0
      %2569 = vmatprep.mubr.bf16.mxu0 0
      %2570 = vmatmul.mubr.bf16.gmra.mrb[0].mxu0 %v2433
      %v2571 = vpop.f32.mrb[0].mxu0
      %v2572 = vadd.f32 0.0, %v2571
      %v2573 = vpop.f32.mrb[0].mxu0
      %v2574 = vpop.f32.mrb[0].mxu0
      %v2575 = vadd.f32 0.0, %v2574
      %v2576 = vpop.f32.mrb[0].mxu0
      %2577 = vmatprep.mubr.bf16.mxu0 0
      %2578 = vmatmul.mubr.bf16.gmra.mrb[0].mxu0 %v2436
      %v2579 = vpop.f32.mrb[0].mxu0
      %v2580 = vadd.f32 0.0, %v2579
      %v2581 = vpop.f32.mrb[0].mxu0
      %v2582 = vpop.f32.mrb[0].mxu0
      %v2583 = vadd.f32 0.0, %v2582
      %v2584 = vpop.f32.mrb[0].mxu0
      %2585 = vmatprep.mubr.bf16.mxu0 0
      %2586 = vmatmul.mubr.bf16.gmra.mrb[0].mxu0 %v2439
      %v2587 = vpop.f32.mrb[0].mxu0
      %v2588 = vadd.f32 0.0, %v2587
      %v2589 = vpop.f32.mrb[0].mxu0
      %v2590 = vpop.f32.mrb[0].mxu0
      %v2591 = vadd.f32 0.0, %v2590
      %v2592 = vpop.f32.mrb[0].mxu0
      %2593 = vmatprep.mubr.bf16.mxu0 0
      %2594 = vmatmul.mubr.bf16.gmra.mrb[0].mxu0 %v2442
      %v2595 = vpop.f32.mrb[0].mxu0
      %v2596 = vadd.f32 0.0, %v2595
      %v2597 = vpop.f32.mrb[0].mxu0
      %v2598 = vpop.f32.mrb[0].mxu0
      %v2599 = vadd.f32 0.0, %v2598
      %v2600 = vpop.f32.mrb[0].mxu0
      %2601 = vmatprep.mubr.bf16.mxu0 0
      %2602 = vmatmul.mubr.bf16.gmra.mrb[0].mxu0 %v2445
      %v2603 = vpop.f32.mrb[0].mxu0
      %v2604 = vadd.f32 0.0, %v2603
      %v2605 = vpop.f32.mrb[0].mxu0
      %v2606 = vpop.f32.mrb[0].mxu0
      %v2607 = vadd.f32 0.0, %v2606
      %v2608 = vpop.f32.mrb[0].mxu0
      %2609 = vmatprep.mubr.bf16.mxu0 0
      %2610 = vmatmul.mubr.bf16.gmra.mrb[0].mxu0 %v2448
      %v2611 = vpop.f32.mrb[0].mxu0
      %v2612 = vadd.f32 0.0, %v2611
      %v2613 = vpop.f32.mrb[0].mxu0
      %v2614 = vpop.f32.mrb[0].mxu0
      %v2615 = vadd.f32 0.0, %v2614
      %v2616 = vpop.f32.mrb[0].mxu0
      %2617 = vmatprep.mubr.bf16.mxu0 0
      %2618 = vmatmul.mubr.bf16.gmra.mrb[0].mxu0 %v2451
      %v2619 = vpop.f32.mrb[0].mxu0
      %v2620 = vadd.f32 0.0, %v2619
      %v2621 = vpop.f32.mrb[0].mxu0
      %v2622 = vpop.f32.mrb[0].mxu0
      %v2623 = vadd.f32 0.0, %v2622
      %v2624 = vpop.f32.mrb[0].mxu0
      %2625 = vmatprep.mubr.bf16.mxu0 0
      %2626 = vmatmul.mubr.bf16.gmra.mrb[0].mxu0 %v2454
      %v2627 = vpop.f32.mrb[0].mxu0
      %v2628 = vadd.f32 0.0, %v2627
      %v2629 = vpop.f32.mrb[0].mxu0
      %v2630 = vpop.f32.mrb[0].mxu0
      %v2631 = vadd.f32 0.0, %v2630
      %v2632 = vpop.f32.mrb[0].mxu0
      %2633 = vmatprep.mubr.bf16.mxu0 0
      %2634 = vmatmul.mubr.bf16.gmra.mrb[0].mxu0 %v2457
      %v2635 = vpop.f32.mrb[0].mxu0
      %v2636 = vadd.f32 0.0, %v2635
      %v2637 = vpop.f32.mrb[0].mxu0
      %v2638 = vpop.f32.mrb[0].mxu0
      %v2639 = vadd.f32 0.0, %v2638
      %v2640 = vpop.f32.mrb[0].mxu0
      %2641 = vmatprep.mubr.bf16.mxu0 0
      %2642 = vmatmul.mubr.bf16.gmra.mrb[0].mxu0 %v2460
      %v2643 = vpop.f32.mrb[0].mxu0
      %v2644 = vadd.f32 0.0, %v2643
      %v2645 = vpop.f32.mrb[0].mxu0
      %v2646 = vpop.f32.mrb[0].mxu0
      %v2647 = vadd.f32 0.0, %v2646
      %v2648 = vpop.f32.mrb[0].mxu0
      %2649 = vmatprep.mubr.bf16.mxu0 0
      %2650 = vmatmul.mubr.bf16.gmra.mrb[0].mxu0 %v2463
      %v2651 = vpop.f32.mrb[0].mxu0
      %v2652 = vadd.f32 0.0, %v2651
      %v2653 = vpop.f32.mrb[0].mxu0
      %v2654 = vpop.f32.mrb[0].mxu0
      %v2655 = vadd.f32 0.0, %v2654
      %v2656 = vpop.f32.mrb[0].mxu0
      %2657 = vmatprep.mubr.bf16.mxu0 0
      %2658 = vmatmul.mubr.bf16.gmra.mrb[0].mxu0 %v2466
      %v2659 = vpop.f32.mrb[0].mxu0
      %v2660 = vadd.f32 0.0, %v2659
      %v2661 = vpop.f32.mrb[0].mxu0
      %v2662 = vpop.f32.mrb[0].mxu0
      %v2663 = vadd.f32 0.0, %v2662
      %v2664 = vpop.f32.mrb[0].mxu0
      %2665 = vmatprep.mubr.bf16.mxu0 0
      %2666 = vmatmul.mubr.bf16.gmra.mrb[0].mxu0 %v2469
      %v2667 = vpop.f32.mrb[0].mxu0
      %v2668 = vadd.f32 0.0, %v2667
      %v2669 = vpop.f32.mrb[0].mxu0
      %v2670 = vpop.f32.mrb[0].mxu0
      %v2671 = vadd.f32 0.0, %v2670
      %v2672 = vpop.f32.mrb[0].mxu0
      %2673 = vmatprep.mubr.bf16.mxu0 0
      %2674 = vmatmul.mubr.bf16.gmra.mrb[0].mxu0 %v2472
      %v2675 = vpop.f32.mrb[0].mxu0
      %v2676 = vadd.f32 0.0, %v2675
      %v2677 = vpop.f32.mrb[0].mxu0
      %v2678 = vpop.f32.mrb[0].mxu0
      %v2679 = vadd.f32 0.0, %v2678
      %v2680 = vpop.f32.mrb[0].mxu0
      %2681 = vmatprep.mubr.bf16.mxu0 0
      %2682 = vmatmul.mubr.bf16.gmra.mrb[0].mxu0 %v2475
      %v2683 = vpop.f32.mrb[0].mxu0
      %v2684 = vadd.f32 0.0, %v2683
      %v2685 = vpop.f32.mrb[0].mxu0
      %v2686 = vpop.f32.mrb[0].mxu0
      %v2687 = vadd.f32 0.0, %v2686
      %v2688 = vpop.f32.mrb[0].mxu0
      %2689 = vmatprep.mubr.bf16.mxu0 0
      %2690 = vmatmul.mubr.bf16.gmra.mrb[0].mxu0 %v2478
      %v2691 = vpop.f32.mrb[0].mxu0
      %v2692 = vadd.f32 0.0, %v2691
      %v2693 = vpop.f32.mrb[0].mxu0
      %v2694 = vpop.f32.mrb[0].mxu0
      %v2695 = vadd.f32 0.0, %v2694
      %v2696 = vpop.f32.mrb[0].mxu0
      %2697 = vmatprep.mubr.bf16.mxu0 0
      %2698 = vmatmul.mubr.bf16.gmra.mrb[0].mxu0 %v2481
      %v2699 = vpop.f32.mrb[0].mxu0
      %v2700 = vadd.f32 0.0, %v2699
      %v2701 = vpop.f32.mrb[0].mxu0
      %v2702 = vpop.f32.mrb[0].mxu0
      %v2703 = vadd.f32 0.0, %v2702
      %v2704 = vpop.f32.mrb[0].mxu0
      %2705 = vmatprep.mubr.bf16.mxu0 0
      %2706 = vmatmul.mubr.bf16.gmra.mrb[0].mxu0 %v2484
      %v2707 = vpop.f32.mrb[0].mxu0
      %v2708 = vadd.f32 0.0, %v2707
      %v2709 = vpop.f32.mrb[0].mxu0
      %v2710 = vpop.f32.mrb[0].mxu0
      %v2711 = vadd.f32 0.0, %v2710
      %v2712 = vpop.f32.mrb[0].mxu0
      %2713 = vdwg.mxu0
      %v2714 = vadd.f32 %v1996, %v2524
      %v2715 = vadd.f32 %v1997, %v2527
      %v2716 = vadd.f32 %v1998, %v2532
      %v2717 = vadd.f32 %v1999, %v2535
      %v2718 = vadd.f32 %v2000, %v2540
      %v2719 = vadd.f32 %v2001, %v2543
      %v2720 = vadd.f32 %v2002, %v2548
      %v2721 = vadd.f32 %v2003, %v2551
      %v2722 = vadd.f32 %v2004, %v2556
      %v2723 = vadd.f32 %v2005, %v2559
      %v2724 = vadd.f32 %v2006, %v2564
      %v2725 = vadd.f32 %v2007, %v2567
      %v2726 = vadd.f32 %v2008, %v2572
      %v2727 = vadd.f32 %v2009, %v2575
      %v2728 = vadd.f32 %v2010, %v2580
      %v2729 = vadd.f32 %v2011, %v2583
      %v2730 = vadd.f32 %v2012, %v2588
      %v2731 = vadd.f32 %v2013, %v2591
      %v2732 = vadd.f32 %v2014, %v2596
      %v2733 = vadd.f32 %v2015, %v2599
      %v2734 = vadd.f32 %v2016, %v2604
      %v2735 = vadd.f32 %v2017, %v2607
      %v2736 = vadd.f32 %v2018, %v2612
      %v2737 = vadd.f32 %v2019, %v2615
      %v2738 = vadd.f32 %v2020, %v2620
      %v2739 = vadd.f32 %v2021, %v2623
      %v2740 = vadd.f32 %v2022, %v2628
      %v2741 = vadd.f32 %v2023, %v2631
      %v2742 = vadd.f32 %v2024, %v2636
      %v2743 = vadd.f32 %v2025, %v2639
      %v2744 = vadd.f32 %v2026, %v2644
      %v2745 = vadd.f32 %v2027, %v2647
      %v2746 = vadd.f32 %v2028, %v2652
      %v2747 = vadd.f32 %v2029, %v2655
      %v2748 = vadd.f32 %v2030, %v2660
      %v2749 = vadd.f32 %v2031, %v2663
      %v2750 = vadd.f32 %v2032, %v2668
      %v2751 = vadd.f32 %v2033, %v2671
      %v2752 = vadd.f32 %v2034, %v2676
      %v2753 = vadd.f32 %v2035, %v2679
      %v2754 = vadd.f32 %v2036, %v2684
      %v2755 = vadd.f32 %v2037, %v2687
      %v2756 = vadd.f32 %v2038, %v2692
      %v2757 = vadd.f32 %v2039, %v2695
      %v2758 = vadd.f32 %v2040, %v2700
      %v2759 = vadd.f32 %v2041, %v2703
      %v2760 = vadd.f32 %v2042, %v2708
      %v2761 = vadd.f32 %v2043, %v2711
      %v2762 = vld [vmem:[%s165 + $0xc] sm:$0xe]
      %s2763 = scalar_lea.vmem %s1, 10
      %v2764 = vld [vmem:[%s2763] sm:$0x3]
      %v2766 = vunpack.c.l.b16 %v2762
      %v2767 = vpack.c.b16 %v2145, %v2766
      %v2768 = vrot.slane %v2767, 1
      %v2769 = vrot.slane %v2194, 1
      %v2770 = vsel %vm1128, %v2768, %v2769
      %v2771 = vrot.slane %v2195, 1
      %v2772 = vsel %vm1128, %v2769, %v2771
      %v2773 = vrot.slane %v2196, 1
      %v2774 = vsel %vm1128, %v2771, %v2773
      %v2775 = vrot.slane %v2197, 1
      %v2776 = vsel %vm1128, %v2773, %v2775
      %v2777 = vrot.slane %v2198, 1
      %v2778 = vsel %vm1128, %v2775, %v2777
      %v2779 = vrot.slane %v2199, 1
      %v2780 = vsel %vm1128, %v2777, %v2779
      %v2781 = vrot.slane %v2200, 1
      %v2782 = vsel %vm1128, %v2779, %v2781
      %v2783 = vrot.slane %v2201, 1
      %v2784 = vsel %vm1128, %v2781, %v2783
      %v2785 = vrot.slane %v2202, 1
      %v2786 = vsel %vm1128, %v2783, %v2785
      %v2787 = vrot.slane %v2203, 1
      %v2788 = vsel %vm1128, %v2785, %v2787
      %v2789 = vrot.slane %v2204, 1
      %v2790 = vsel %vm1128, %v2787, %v2789
      %v2791 = vrot.slane %v2205, 1
      %v2792 = vsel %vm1128, %v2789, %v2791
      %v2793 = vrot.slane %v2206, 1
      %v2794 = vsel %vm1128, %v2791, %v2793
      %v2795 = vrot.slane %v2207, 1
      %v2796 = vsel %vm1128, %v2793, %v2795
      %v2797 = vrot.slane %v2208, 1
      %v2798 = vsel %vm1128, %v2795, %v2797
      %v2799 = vrot.slane %v2209, 1
      %v2800 = vsel %vm1128, %v2797, %v2799
      %v2801 = vrot.slane %v2210, 1
      %v2802 = vsel %vm1128, %v2799, %v2801
      %v2803 = vrot.slane %v2211, 1
      %v2804 = vsel %vm1128, %v2801, %v2803
      %v2805 = vrot.slane %v2212, 1
      %v2806 = vsel %vm1128, %v2803, %v2805
      %v2807 = vrot.slane %v2213, 1
      %v2808 = vsel %vm1128, %v2805, %v2807
      %v2809 = vrot.slane %v2214, 1
      %v2810 = vsel %vm1128, %v2807, %v2809
      %v2811 = vrot.slane %v2215, 1
      %v2812 = vsel %vm1128, %v2809, %v2811
      %v2813 = vrot.slane %v2216, 1
      %v2814 = vsel %vm1128, %v2811, %v2813
      %v2815 = vrot.slane %v2217, 1
      %v2816 = vsel %vm1128, %v2813, %v2815
      %v2818 = vsel %vm544, %v2770, 0
      %v2821 = vsel %vm544, %v2772, 0
      %v2824 = vsel %vm544, %v2774, 0
      %v2827 = vsel %vm544, %v2776, 0
      %v2830 = vsel %vm544, %v2778, 0
      %v2833 = vsel %vm544, %v2780, 0
      %v2836 = vsel %vm544, %v2782, 0
      %v2839 = vsel %vm544, %v2784, 0
      %v2842 = vsel %vm544, %v2786, 0
      %v2845 = vsel %vm544, %v2788, 0
      %v2848 = vsel %vm544, %v2790, 0
      %v2851 = vsel %vm544, %v2792, 0
      %v2854 = vsel %vm544, %v2794, 0
      %v2857 = vsel %vm544, %v2796, 0
      %v2860 = vsel %vm544, %v2798, 0
      %v2863 = vsel %vm544, %v2800, 0
      %v2866 = vsel %vm544, %v2802, 0
      %v2869 = vsel %vm544, %v2804, 0
      %v2872 = vsel %vm544, %v2806, 0
      %v2875 = vsel %vm544, %v2808, 0
      %v2878 = vsel %vm544, %v2810, 0
      %v2881 = vsel %vm544, %v2812, 0
      %v2884 = vsel %vm544, %v2814, 0
      %v2887 = vsel %vm544, %v2816, 0
      %v2890 = vsel %vm617, %v2764, 0
      %2892 = vmatprep.subr.bf16.mxu0 0
      %2893 = vmatpush1.bf16.msra.mxu0 %v2890
      %2894 = vmatprep.subr.bf16.mxu0 0
      %2895 = vmatpush1.bf16.msra.mxu0 0
      %2896 = vmatprep.subr.bf16.mxu0 0
      %2897 = vmatpush1.bf16.msra.mxu0 0
      %2898 = vmatprep.subr.bf16.mxu0 0
      %2899 = vmatpush1.bf16.msra.mxu0 0
      %2900 = vmatprep.subr.bf16.mxu0 0
      %2901 = vmatpush1.bf16.msra.mxu0 0
      %2902 = vmatprep.subr.bf16.mxu0 0
      %2903 = vmatpush1.bf16.msra.mxu0 0
      %2904 = vmatprep.subr.bf16.mxu0 0
      %2905 = vmatpush1.bf16.msra.mxu0 0
      %2906 = vmatprep.subr.bf16.mxu0 0
      %2907 = vmatpush1.bf16.msra.mxu0 0
      %2908 = vmatprep.subr.bf16.mxu0 0
      %2909 = vmatpush1.bf16.msra.mxu0 0
      %2910 = vmatprep.subr.bf16.mxu0 0
      %2911 = vmatpush1.bf16.msra.mxu0 0
      %2912 = vmatprep.subr.bf16.mxu0 0
      %2913 = vmatpush1.bf16.msra.mxu0 0
      %2914 = vmatprep.subr.bf16.mxu0 0
      %2915 = vmatpush1.bf16.msra.mxu0 0
      %2916 = vmatprep.subr.bf16.mxu0 0
      %2917 = vmatpush1.bf16.msra.mxu0 0
      %2918 = vmatprep.subr.bf16.mxu0 0
      %2919 = vmatpush1.bf16.msra.mxu0 0
      %2920 = vmatprep.subr.bf16.mxu0 0
      %2921 = vmatpush1.bf16.msra.mxu0 0
      %2922 = vmatprep.subr.bf16.mxu0 0
      %2923 = vmatpush1.bf16.msra.mxu0 0
      %2924 = vmatprep.mubr.bf16.mxu0 0
      %2925 = vmatmul.mubr.bf16.gmra.mrb[0].mxu0 %v2818
      %v2926 = vpop.f32.mrb[0].mxu0
      %v2927 = vadd.f32 0.0, %v2926
      %v2928 = vpop.f32.mrb[0].mxu0
      %v2929 = vpop.f32.mrb[0].mxu0
      %v2930 = vadd.f32 0.0, %v2929
      %v2931 = vpop.f32.mrb[0].mxu0
      %2932 = vmatprep.mubr.bf16.mxu0 0
      %2933 = vmatmul.mubr.bf16.gmra.mrb[0].mxu0 %v2821
      %v2934 = vpop.f32.mrb[0].mxu0
      %v2935 = vadd.f32 0.0, %v2934
      %v2936 = vpop.f32.mrb[0].mxu0
      %v2937 = vpop.f32.mrb[0].mxu0
      %v2938 = vadd.f32 0.0, %v2937
      %v2939 = vpop.f32.mrb[0].mxu0
      %2940 = vmatprep.mubr.bf16.mxu0 0
      %2941 = vmatmul.mubr.bf16.gmra.mrb[0].mxu0 %v2824
      %v2942 = vpop.f32.mrb[0].mxu0
      %v2943 = vadd.f32 0.0, %v2942
      %v2944 = vpop.f32.mrb[0].mxu0
      %v2945 = vpop.f32.mrb[0].mxu0
      %v2946 = vadd.f32 0.0, %v2945
      %v2947 = vpop.f32.mrb[0].mxu0
      %2948 = vmatprep.mubr.bf16.mxu0 0
      %2949 = vmatmul.mubr.bf16.gmra.mrb[0].mxu0 %v2827
      %v2950 = vpop.f32.mrb[0].mxu0
      %v2951 = vadd.f32 0.0, %v2950
      %v2952 = vpop.f32.mrb[0].mxu0
      %v2953 = vpop.f32.mrb[0].mxu0
      %v2954 = vadd.f32 0.0, %v2953
      %v2955 = vpop.f32.mrb[0].mxu0
      %2956 = vmatprep.mubr.bf16.mxu0 0
      %2957 = vmatmul.mubr.bf16.gmra.mrb[0].mxu0 %v2830
      %v2958 = vpop.f32.mrb[0].mxu0
      %v2959 = vadd.f32 0.0, %v2958
      %v2960 = vpop.f32.mrb[0].mxu0
      %v2961 = vpop.f32.mrb[0].mxu0
      %v2962 = vadd.f32 0.0, %v2961
      %v2963 = vpop.f32.mrb[0].mxu0
      %2964 = vmatprep.mubr.bf16.mxu0 0
      %2965 = vmatmul.mubr.bf16.gmra.mrb[0].mxu0 %v2833
      %v2966 = vpop.f32.mrb[0].mxu0
      %v2967 = vadd.f32 0.0, %v2966
      %v2968 = vpop.f32.mrb[0].mxu0
      %v2969 = vpop.f32.mrb[0].mxu0
      %v2970 = vadd.f32 0.0, %v2969
      %v2971 = vpop.f32.mrb[0].mxu0
      %2972 = vmatprep.mubr.bf16.mxu0 0
      %2973 = vmatmul.mubr.bf16.gmra.mrb[0].mxu0 %v2836
      %v2974 = vpop.f32.mrb[0].mxu0
      %v2975 = vadd.f32 0.0, %v2974
      %v2976 = vpop.f32.mrb[0].mxu0
      %v2977 = vpop.f32.mrb[0].mxu0
      %v2978 = vadd.f32 0.0, %v2977
      %v2979 = vpop.f32.mrb[0].mxu0
      %2980 = vmatprep.mubr.bf16.mxu0 0
      %2981 = vmatmul.mubr.bf16.gmra.mrb[0].mxu0 %v2839
      %v2982 = vpop.f32.mrb[0].mxu0
      %v2983 = vadd.f32 0.0, %v2982
      %v2984 = vpop.f32.mrb[0].mxu0
      %v2985 = vpop.f32.mrb[0].mxu0
      %v2986 = vadd.f32 0.0, %v2985
      %v2987 = vpop.f32.mrb[0].mxu0
      %2988 = vmatprep.mubr.bf16.mxu0 0
      %2989 = vmatmul.mubr.bf16.gmra.mrb[0].mxu0 %v2842
      %v2990 = vpop.f32.mrb[0].mxu0
      %v2991 = vadd.f32 0.0, %v2990
      %v2992 = vpop.f32.mrb[0].mxu0
      %v2993 = vpop.f32.mrb[0].mxu0
      %v2994 = vadd.f32 0.0, %v2993
      %v2995 = vpop.f32.mrb[0].mxu0
      %2996 = vmatprep.mubr.bf16.mxu0 0
      %2997 = vmatmul.mubr.bf16.gmra.mrb[0].mxu0 %v2845
      %v2998 = vpop.f32.mrb[0].mxu0
      %v2999 = vadd.f32 0.0, %v2998
      %v3000 = vpop.f32.mrb[0].mxu0
      %v3001 = vpop.f32.mrb[0].mxu0
      %v3002 = vadd.f32 0.0, %v3001
      %v3003 = vpop.f32.mrb[0].mxu0
      %3004 = vmatprep.mubr.bf16.mxu0 0
      %3005 = vmatmul.mubr.bf16.gmra.mrb[0].mxu0 %v2848
      %v3006 = vpop.f32.mrb[0].mxu0
      %v3007 = vadd.f32 0.0, %v3006
      %v3008 = vpop.f32.mrb[0].mxu0
      %v3009 = vpop.f32.mrb[0].mxu0
      %v3010 = vadd.f32 0.0, %v3009
      %v3011 = vpop.f32.mrb[0].mxu0
      %3012 = vmatprep.mubr.bf16.mxu0 0
      %3013 = vmatmul.mubr.bf16.gmra.mrb[0].mxu0 %v2851
      %v3014 = vpop.f32.mrb[0].mxu0
      %v3015 = vadd.f32 0.0, %v3014
      %v3016 = vpop.f32.mrb[0].mxu0
      %v3017 = vpop.f32.mrb[0].mxu0
      %v3018 = vadd.f32 0.0, %v3017
      %v3019 = vpop.f32.mrb[0].mxu0
      %3020 = vmatprep.mubr.bf16.mxu0 0
      %3021 = vmatmul.mubr.bf16.gmra.mrb[0].mxu0 %v2854
      %v3022 = vpop.f32.mrb[0].mxu0
      %v3023 = vadd.f32 0.0, %v3022
      %v3024 = vpop.f32.mrb[0].mxu0
      %v3025 = vpop.f32.mrb[0].mxu0
      %v3026 = vadd.f32 0.0, %v3025
      %v3027 = vpop.f32.mrb[0].mxu0
      %3028 = vmatprep.mubr.bf16.mxu0 0
      %3029 = vmatmul.mubr.bf16.gmra.mrb[0].mxu0 %v2857
      %v3030 = vpop.f32.mrb[0].mxu0
      %v3031 = vadd.f32 0.0, %v3030
      %v3032 = vpop.f32.mrb[0].mxu0
      %v3033 = vpop.f32.mrb[0].mxu0
      %v3034 = vadd.f32 0.0, %v3033
      %v3035 = vpop.f32.mrb[0].mxu0
      %3036 = vmatprep.mubr.bf16.mxu0 0
      %3037 = vmatmul.mubr.bf16.gmra.mrb[0].mxu0 %v2860
      %v3038 = vpop.f32.mrb[0].mxu0
      %v3039 = vadd.f32 0.0, %v3038
      %v3040 = vpop.f32.mrb[0].mxu0
      %v3041 = vpop.f32.mrb[0].mxu0
      %v3042 = vadd.f32 0.0, %v3041
      %v3043 = vpop.f32.mrb[0].mxu0
      %3044 = vmatprep.mubr.bf16.mxu0 0
      %3045 = vmatmul.mubr.bf16.gmra.mrb[0].mxu0 %v2863
      %v3046 = vpop.f32.mrb[0].mxu0
      %v3047 = vadd.f32 0.0, %v3046
      %v3048 = vpop.f32.mrb[0].mxu0
      %v3049 = vpop.f32.mrb[0].mxu0
      %v3050 = vadd.f32 0.0, %v3049
      %v3051 = vpop.f32.mrb[0].mxu0
      %3052 = vmatprep.mubr.bf16.mxu0 0
      %3053 = vmatmul.mubr.bf16.gmra.mrb[0].mxu0 %v2866
      %v3054 = vpop.f32.mrb[0].mxu0
      %v3055 = vadd.f32 0.0, %v3054
      %v3056 = vpop.f32.mrb[0].mxu0
      %v3057 = vpop.f32.mrb[0].mxu0
      %v3058 = vadd.f32 0.0, %v3057
      %v3059 = vpop.f32.mrb[0].mxu0
      %3060 = vmatprep.mubr.bf16.mxu0 0
      %3061 = vmatmul.mubr.bf16.gmra.mrb[0].mxu0 %v2869
      %v3062 = vpop.f32.mrb[0].mxu0
      %v3063 = vadd.f32 0.0, %v3062
      %v3064 = vpop.f32.mrb[0].mxu0
      %v3065 = vpop.f32.mrb[0].mxu0
      %v3066 = vadd.f32 0.0, %v3065
      %v3067 = vpop.f32.mrb[0].mxu0
      %3068 = vmatprep.mubr.bf16.mxu0 0
      %3069 = vmatmul.mubr.bf16.gmra.mrb[0].mxu0 %v2872
      %v3070 = vpop.f32.mrb[0].mxu0
      %v3071 = vadd.f32 0.0, %v3070
      %v3072 = vpop.f32.mrb[0].mxu0
      %v3073 = vpop.f32.mrb[0].mxu0
      %v3074 = vadd.f32 0.0, %v3073
      %v3075 = vpop.f32.mrb[0].mxu0
      %3076 = vmatprep.mubr.bf16.mxu0 0
      %3077 = vmatmul.mubr.bf16.gmra.mrb[0].mxu0 %v2875
      %v3078 = vpop.f32.mrb[0].mxu0
      %v3079 = vadd.f32 0.0, %v3078
      %v3080 = vpop.f32.mrb[0].mxu0
      %v3081 = vpop.f32.mrb[0].mxu0
      %v3082 = vadd.f32 0.0, %v3081
      %v3083 = vpop.f32.mrb[0].mxu0
      %3084 = vmatprep.mubr.bf16.mxu0 0
      %3085 = vmatmul.mubr.bf16.gmra.mrb[0].mxu0 %v2878
      %v3086 = vpop.f32.mrb[0].mxu0
      %v3087 = vadd.f32 0.0, %v3086
      %v3088 = vpop.f32.mrb[0].mxu0
      %v3089 = vpop.f32.mrb[0].mxu0
      %v3090 = vadd.f32 0.0, %v3089
      %v3091 = vpop.f32.mrb[0].mxu0
      %3092 = vmatprep.mubr.bf16.mxu0 0
      %3093 = vmatmul.mubr.bf16.gmra.mrb[0].mxu0 %v2881
      %v3094 = vpop.f32.mrb[0].mxu0
      %v3095 = vadd.f32 0.0, %v3094
      %v3096 = vpop.f32.mrb[0].mxu0
      %v3097 = vpop.f32.mrb[0].mxu0
      %v3098 = vadd.f32 0.0, %v3097
      %v3099 = vpop.f32.mrb[0].mxu0
      %3100 = vmatprep.mubr.bf16.mxu0 0
      %3101 = vmatmul.mubr.bf16.gmra.mrb[0].mxu0 %v2884
      %v3102 = vpop.f32.mrb[0].mxu0
      %v3103 = vadd.f32 0.0, %v3102
      %v3104 = vpop.f32.mrb[0].mxu0
      %v3105 = vpop.f32.mrb[0].mxu0
      %v3106 = vadd.f32 0.0, %v3105
      %v3107 = vpop.f32.mrb[0].mxu0
      %3108 = vmatprep.mubr.bf16.mxu0 0
      %3109 = vmatmul.mubr.bf16.gmra.mrb[0].mxu0 %v2887
      %v3110 = vpop.f32.mrb[0].mxu0
      %v3111 = vadd.f32 0.0, %v3110
      %v3112 = vpop.f32.mrb[0].mxu0
      %v3113 = vpop.f32.mrb[0].mxu0
      %v3114 = vadd.f32 0.0, %v3113
      %v3115 = vpop.f32.mrb[0].mxu0
      %3116 = vdwg.mxu0
      %v3117 = vadd.f32 %v2714, %v2927
      %v3118 = vadd.f32 %v2715, %v2930
      %v3119 = vadd.f32 %v2716, %v2935
      %v3120 = vadd.f32 %v2717, %v2938
      %v3121 = vadd.f32 %v2718, %v2943
      %v3122 = vadd.f32 %v2719, %v2946
      %v3123 = vadd.f32 %v2720, %v2951
      %v3124 = vadd.f32 %v2721, %v2954
      %v3125 = vadd.f32 %v2722, %v2959
      %v3126 = vadd.f32 %v2723, %v2962
      %v3127 = vadd.f32 %v2724, %v2967
      %v3128 = vadd.f32 %v2725, %v2970
      %v3129 = vadd.f32 %v2726, %v2975
      %v3130 = vadd.f32 %v2727, %v2978
      %v3131 = vadd.f32 %v2728, %v2983
      %v3132 = vadd.f32 %v2729, %v2986
      %v3133 = vadd.f32 %v2730, %v2991
      %v3134 = vadd.f32 %v2731, %v2994
      %v3135 = vadd.f32 %v2732, %v2999
      %v3136 = vadd.f32 %v2733, %v3002
      %v3137 = vadd.f32 %v2734, %v3007
      %v3138 = vadd.f32 %v2735, %v3010
      %v3139 = vadd.f32 %v2736, %v3015
      %v3140 = vadd.f32 %v2737, %v3018
      %v3141 = vadd.f32 %v2738, %v3023
      %v3142 = vadd.f32 %v2739, %v3026
      %v3143 = vadd.f32 %v2740, %v3031
      %v3144 = vadd.f32 %v2741, %v3034
      %v3145 = vadd.f32 %v2742, %v3039
      %v3146 = vadd.f32 %v2743, %v3042
      %v3147 = vadd.f32 %v2744, %v3047
      %v3148 = vadd.f32 %v2745, %v3050
      %v3149 = vadd.f32 %v2746, %v3055
      %v3150 = vadd.f32 %v2747, %v3058
      %v3151 = vadd.f32 %v2748, %v3063
      %v3152 = vadd.f32 %v2749, %v3066
      %v3153 = vadd.f32 %v2750, %v3071
      %v3154 = vadd.f32 %v2751, %v3074
      %v3155 = vadd.f32 %v2752, %v3079
      %v3156 = vadd.f32 %v2753, %v3082
      %v3157 = vadd.f32 %v2754, %v3087
      %v3158 = vadd.f32 %v2755, %v3090
      %v3159 = vadd.f32 %v2756, %v3095
      %v3160 = vadd.f32 %v2757, %v3098
      %v3161 = vadd.f32 %v2758, %v3103
      %v3162 = vadd.f32 %v2759, %v3106
      %v3163 = vadd.f32 %v2760, %v3111
      %v3164 = vadd.f32 %v2761, %v3114
      %v3165 = vld [vmem:[%s165 + $0x18] sm:$0xf]
      %v3166 = vld [vmem:[%s165 + $0x1c] sm:$0xf]
      %v3167 = vld [vmem:[%s165 + $0x20] sm:$0xf]
      %v3168 = vld [vmem:[%s165 + $0x24] sm:$0xf]
      %v3169 = vld [vmem:[%s165 + $0x28] sm:$0xf]
      %v3170 = vld [vmem:[%s165 + $0x2c] sm:$0xf]
      %v3171 = vld [vmem:[%s165 + $0x30] sm:$0xf]
      %v3172 = vld [vmem:[%s165 + $0x34] sm:$0xf]
      %v3173 = vld [vmem:[%s165 + $0x38] sm:$0xf]
      %v3174 = vld [vmem:[%s165 + $0x3c] sm:$0xf]
      %v3175 = vld [vmem:[%s165 + $0x40] sm:$0xf]
      %v3176 = vld [vmem:[%s165 + $0x44] sm:$0xf]
      %v3177 = vld [vmem:[%s165 + $0x48] sm:$0xf]
      %v3178 = vld [vmem:[%s165 + $0x4c] sm:$0xf]
      %v3179 = vld [vmem:[%s165 + $0x50] sm:$0xf]
      %v3180 = vld [vmem:[%s165 + $0x54] sm:$0xf]
      %v3181 = vld [vmem:[%s165 + $0x58] sm:$0xf]
      %v3182 = vld [vmem:[%s165 + $0x5c] sm:$0xf]
      %v3183 = vld [vmem:[%s165 + $0x60] sm:$0xf]
      %v3184 = vld [vmem:[%s165 + $0x64] sm:$0xf]
      %v3185 = vld [vmem:[%s165 + $0x68] sm:$0xf]
      %v3186 = vld [vmem:[%s165 + $0x6c] sm:$0xf]
      %v3187 = vld [vmem:[%s165 + $0x70] sm:$0xf]
      %v3188 = vld [vmem:[%s165 + $0x74] sm:$0xf]
      %v3189 = vld [vmem:[%s165 + $0x78] sm:$0xf]
      %v3190 = vld [vmem:[%s165 + $0x7c] sm:$0xf]
      %v3191 = vld [vmem:[%s165 + $0x80] sm:$0xf]
      %v3192 = vld [vmem:[%s165 + $0x84] sm:$0xf]
      %v3193 = vld [vmem:[%s165 + $0x88] sm:$0xf]
      %v3194 = vld [vmem:[%s165 + $0x8c] sm:$0xf]
      %v3195 = vld [vmem:[%s165 + $0x90] sm:$0xf]
      %v3196 = vld [vmem:[%s165 + $0x94] sm:$0xf]
      %v3197 = vld [vmem:[%s165 + $0x98] sm:$0xf]
      %v3198 = vld [vmem:[%s165 + $0x9c] sm:$0xf]
      %v3199 = vld [vmem:[%s165 + $0xa0] sm:$0xf]
      %v3200 = vld [vmem:[%s165 + $0xa4] sm:$0xf]
      %v3201 = vld [vmem:[%s165 + $0xa8] sm:$0xf]
      %v3202 = vld [vmem:[%s165 + $0xac] sm:$0xf]
      %v3203 = vld [vmem:[%s165 + $0xb0] sm:$0xf]
      %v3204 = vld [vmem:[%s165 + $0xb4] sm:$0xf]
      %v3205 = vld [vmem:[%s165 + $0xb8] sm:$0xf]
      %v3206 = vld [vmem:[%s165 + $0xbc] sm:$0xf]
      %v3207 = vld [vmem:[%s165 + $0xc0] sm:$0xf]
      %v3208 = vld [vmem:[%s165 + $0xc4] sm:$0xf]
      %v3209 = vld [vmem:[%s165 + $0xc8] sm:$0xf]
      %v3210 = vld [vmem:[%s165 + $0xcc] sm:$0xf]
      %v3211 = vld [vmem:[%s165 + $0xd0] sm:$0xf]
      %v3212 = vld [vmem:[%s165 + $0xd4] sm:$0xf]
      %s3213 = scalar_lea.vmem %s1, 12
      %v3214 = vld [vmem:[%s3213] sm:$0x3]
      %v3263 = vunpack.c.l.b16 %v3165
      %v3264 = vunpack.c.l.b16 %v3166
      %v3265 = vunpack.c.l.b16 %v3167
      %v3266 = vunpack.c.l.b16 %v3168
      %v3267 = vunpack.c.l.b16 %v3169
      %v3268 = vunpack.c.l.b16 %v3170
      %v3269 = vunpack.c.l.b16 %v3171
      %v3270 = vunpack.c.l.b16 %v3172
      %v3271 = vunpack.c.l.b16 %v3173
      %v3272 = vunpack.c.l.b16 %v3174
      %v3273 = vunpack.c.l.b16 %v3175
      %v3274 = vunpack.c.l.b16 %v3176
      %v3275 = vunpack.c.l.b16 %v3177
      %v3276 = vunpack.c.l.b16 %v3178
      %v3277 = vunpack.c.l.b16 %v3179
      %v3278 = vunpack.c.l.b16 %v3180
      %v3279 = vunpack.c.l.b16 %v3181
      %v3280 = vunpack.c.l.b16 %v3182
      %v3281 = vunpack.c.l.b16 %v3183
      %v3282 = vunpack.c.l.b16 %v3184
      %v3283 = vunpack.c.l.b16 %v3185
      %v3284 = vunpack.c.l.b16 %v3186
      %v3285 = vunpack.c.l.b16 %v3187
      %v3286 = vunpack.c.l.b16 %v3188
      %v3287 = vunpack.c.l.b16 %v3189
      %v3288 = vunpack.c.l.b16 %v3190
      %v3289 = vunpack.c.l.b16 %v3191
      %v3290 = vunpack.c.l.b16 %v3192
      %v3291 = vunpack.c.l.b16 %v3193
      %v3292 = vunpack.c.l.b16 %v3194
      %v3293 = vunpack.c.l.b16 %v3195
      %v3294 = vunpack.c.l.b16 %v3196
      %v3295 = vunpack.c.l.b16 %v3197
      %v3296 = vunpack.c.l.b16 %v3198
      %v3297 = vunpack.c.l.b16 %v3199
      %v3298 = vunpack.c.l.b16 %v3200
      %v3299 = vunpack.c.l.b16 %v3201
      %v3300 = vunpack.c.l.b16 %v3202
      %v3301 = vunpack.c.l.b16 %v3203
      %v3302 = vunpack.c.l.b16 %v3204
      %v3303 = vunpack.c.l.b16 %v3205
      %v3304 = vunpack.c.l.b16 %v3206
      %v3305 = vunpack.c.l.b16 %v3207
      %v3306 = vunpack.c.l.b16 %v3208
      %v3307 = vunpack.c.l.b16 %v3209
      %v3308 = vunpack.c.l.b16 %v3210
      %v3309 = vunpack.c.l.b16 %v3211
      %v3310 = vunpack.c.l.b16 %v3212
      %v3311 = vpack.c.b16 %v3264, %v3263
      %v3312 = vpack.c.b16 %v3266, %v3265
      %v3313 = vpack.c.b16 %v3268, %v3267
      %v3314 = vpack.c.b16 %v3270, %v3269
      %v3315 = vpack.c.b16 %v3272, %v3271
      %v3316 = vpack.c.b16 %v3274, %v3273
      %v3317 = vpack.c.b16 %v3276, %v3275
      %v3318 = vpack.c.b16 %v3278, %v3277
      %v3319 = vpack.c.b16 %v3280, %v3279
      %v3320 = vpack.c.b16 %v3282, %v3281
      %v3321 = vpack.c.b16 %v3284, %v3283
      %v3322 = vpack.c.b16 %v3286, %v3285
      %v3323 = vpack.c.b16 %v3288, %v3287
      %v3324 = vpack.c.b16 %v3290, %v3289
      %v3325 = vpack.c.b16 %v3292, %v3291
      %v3326 = vpack.c.b16 %v3294, %v3293
      %v3327 = vpack.c.b16 %v3296, %v3295
      %v3328 = vpack.c.b16 %v3298, %v3297
      %v3329 = vpack.c.b16 %v3300, %v3299
      %v3330 = vpack.c.b16 %v3302, %v3301
      %v3331 = vpack.c.b16 %v3304, %v3303
      %v3332 = vpack.c.b16 %v3306, %v3305
      %v3333 = vpack.c.b16 %v3308, %v3307
      %v3334 = vpack.c.b16 %v3310, %v3309
      %v3336 = vsel %vm544, %v3311, 0
      %v3339 = vsel %vm544, %v3312, 0
      %v3342 = vsel %vm544, %v3313, 0
      %v3345 = vsel %vm544, %v3314, 0
      %v3348 = vsel %vm544, %v3315, 0
      %v3351 = vsel %vm544, %v3316, 0
      %v3354 = vsel %vm544, %v3317, 0
      %v3357 = vsel %vm544, %v3318, 0
      %v3360 = vsel %vm544, %v3319, 0
      %v3363 = vsel %vm544, %v3320, 0
      %v3366 = vsel %vm544, %v3321, 0
      %v3369 = vsel %vm544, %v3322, 0
      %v3372 = vsel %vm544, %v3323, 0
      %v3375 = vsel %vm544, %v3324, 0
      %v3378 = vsel %vm544, %v3325, 0
      %v3381 = vsel %vm544, %v3326, 0
      %v3384 = vsel %vm544, %v3327, 0
      %v3387 = vsel %vm544, %v3328, 0
      %v3390 = vsel %vm544, %v3329, 0
      %v3393 = vsel %vm544, %v3330, 0
      %v3396 = vsel %vm544, %v3331, 0
      %v3399 = vsel %vm544, %v3332, 0
      %v3402 = vsel %vm544, %v3333, 0
      %v3405 = vsel %vm544, %v3334, 0
      %v3408 = vsel %vm617, %v3214, 0
      %3410 = vmatprep.subr.bf16.mxu0 0
      %3411 = vmatpush1.bf16.msra.mxu0 %v3408
      %3412 = vmatprep.subr.bf16.mxu0 0
      %3413 = vmatpush1.bf16.msra.mxu0 0
      %3414 = vmatprep.subr.bf16.mxu0 0
      %3415 = vmatpush1.bf16.msra.mxu0 0
      %3416 = vmatprep.subr.bf16.mxu0 0
      %3417 = vmatpush1.bf16.msra.mxu0 0
      %3418 = vmatprep.subr.bf16.mxu0 0
      %3419 = vmatpush1.bf16.msra.mxu0 0
      %3420 = vmatprep.subr.bf16.mxu0 0
      %3421 = vmatpush1.bf16.msra.mxu0 0
      %3422 = vmatprep.subr.bf16.mxu0 0
      %3423 = vmatpush1.bf16.msra.mxu0 0
      %3424 = vmatprep.subr.bf16.mxu0 0
      %3425 = vmatpush1.bf16.msra.mxu0 0
      %3426 = vmatprep.subr.bf16.mxu0 0
      %3427 = vmatpush1.bf16.msra.mxu0 0
      %3428 = vmatprep.subr.bf16.mxu0 0
      %3429 = vmatpush1.bf16.msra.mxu0 0
      %3430 = vmatprep.subr.bf16.mxu0 0
      %3431 = vmatpush1.bf16.msra.mxu0 0
      %3432 = vmatprep.subr.bf16.mxu0 0
      %3433 = vmatpush1.bf16.msra.mxu0 0
      %3434 = vmatprep.subr.bf16.mxu0 0
      %3435 = vmatpush1.bf16.msra.mxu0 0
      %3436 = vmatprep.subr.bf16.mxu0 0
      %3437 = vmatpush1.bf16.msra.mxu0 0
      %3438 = vmatprep.subr.bf16.mxu0 0
      %3439 = vmatpush1.bf16.msra.mxu0 0
      %3440 = vmatprep.subr.bf16.mxu0 0
      %3441 = vmatpush1.bf16.msra.mxu0 0
      %3442 = vmatprep.mubr.bf16.mxu0 0
      %3443 = vmatmul.mubr.bf16.gmra.mrb[0].mxu0 %v3336
      %v3444 = vpop.f32.mrb[0].mxu0
      %v3445 = vadd.f32 0.0, %v3444
      %v3446 = vpop.f32.mrb[0].mxu0
      %v3447 = vpop.f32.mrb[0].mxu0
      %v3448 = vadd.f32 0.0, %v3447
      %v3449 = vpop.f32.mrb[0].mxu0
      %3450 = vmatprep.mubr.bf16.mxu0 0
      %3451 = vmatmul.mubr.bf16.gmra.mrb[0].mxu0 %v3339
      %v3452 = vpop.f32.mrb[0].mxu0
      %v3453 = vadd.f32 0.0, %v3452
      %v3454 = vpop.f32.mrb[0].mxu0
      %v3455 = vpop.f32.mrb[0].mxu0
      %v3456 = vadd.f32 0.0, %v3455
      %v3457 = vpop.f32.mrb[0].mxu0
      %3458 = vmatprep.mubr.bf16.mxu0 0
      %3459 = vmatmul.mubr.bf16.gmra.mrb[0].mxu0 %v3342
      %v3460 = vpop.f32.mrb[0].mxu0
      %v3461 = vadd.f32 0.0, %v3460
      %v3462 = vpop.f32.mrb[0].mxu0
      %v3463 = vpop.f32.mrb[0].mxu0
      %v3464 = vadd.f32 0.0, %v3463
      %v3465 = vpop.f32.mrb[0].mxu0
      %3466 = vmatprep.mubr.bf16.mxu0 0
      %3467 = vmatmul.mubr.bf16.gmra.mrb[0].mxu0 %v3345
      %v3468 = vpop.f32.mrb[0].mxu0
      %v3469 = vadd.f32 0.0, %v3468
      %v3470 = vpop.f32.mrb[0].mxu0
      %v3471 = vpop.f32.mrb[0].mxu0
      %v3472 = vadd.f32 0.0, %v3471
      %v3473 = vpop.f32.mrb[0].mxu0
      %3474 = vmatprep.mubr.bf16.mxu0 0
      %3475 = vmatmul.mubr.bf16.gmra.mrb[0].mxu0 %v3348
      %v3476 = vpop.f32.mrb[0].mxu0
      %v3477 = vadd.f32 0.0, %v3476
      %v3478 = vpop.f32.mrb[0].mxu0
      %v3479 = vpop.f32.mrb[0].mxu0
      %v3480 = vadd.f32 0.0, %v3479
      %v3481 = vpop.f32.mrb[0].mxu0
      %3482 = vmatprep.mubr.bf16.mxu0 0
      %3483 = vmatmul.mubr.bf16.gmra.mrb[0].mxu0 %v3351
      %v3484 = vpop.f32.mrb[0].mxu0
      %v3485 = vadd.f32 0.0, %v3484
      %v3486 = vpop.f32.mrb[0].mxu0
      %v3487 = vpop.f32.mrb[0].mxu0
      %v3488 = vadd.f32 0.0, %v3487
      %v3489 = vpop.f32.mrb[0].mxu0
      %3490 = vmatprep.mubr.bf16.mxu0 0
      %3491 = vmatmul.mubr.bf16.gmra.mrb[0].mxu0 %v3354
      %v3492 = vpop.f32.mrb[0].mxu0
      %v3493 = vadd.f32 0.0, %v3492
      %v3494 = vpop.f32.mrb[0].mxu0
      %v3495 = vpop.f32.mrb[0].mxu0
      %v3496 = vadd.f32 0.0, %v3495
      %v3497 = vpop.f32.mrb[0].mxu0
      %3498 = vmatprep.mubr.bf16.mxu0 0
      %3499 = vmatmul.mubr.bf16.gmra.mrb[0].mxu0 %v3357
      %v3500 = vpop.f32.mrb[0].mxu0
      %v3501 = vadd.f32 0.0, %v3500
      %v3502 = vpop.f32.mrb[0].mxu0
      %v3503 = vpop.f32.mrb[0].mxu0
      %v3504 = vadd.f32 0.0, %v3503
      %v3505 = vpop.f32.mrb[0].mxu0
      %3506 = vmatprep.mubr.bf16.mxu0 0
      %3507 = vmatmul.mubr.bf16.gmra.mrb[0].mxu0 %v3360
      %v3508 = vpop.f32.mrb[0].mxu0
      %v3509 = vadd.f32 0.0, %v3508
      %v3510 = vpop.f32.mrb[0].mxu0
      %v3511 = vpop.f32.mrb[0].mxu0
      %v3512 = vadd.f32 0.0, %v3511
      %v3513 = vpop.f32.mrb[0].mxu0
      %3514 = vmatprep.mubr.bf16.mxu0 0
      %3515 = vmatmul.mubr.bf16.gmra.mrb[0].mxu0 %v3363
      %v3516 = vpop.f32.mrb[0].mxu0
      %v3517 = vadd.f32 0.0, %v3516
      %v3518 = vpop.f32.mrb[0].mxu0
      %v3519 = vpop.f32.mrb[0].mxu0
      %v3520 = vadd.f32 0.0, %v3519
      %v3521 = vpop.f32.mrb[0].mxu0
      %3522 = vmatprep.mubr.bf16.mxu0 0
      %3523 = vmatmul.mubr.bf16.gmra.mrb[0].mxu0 %v3366
      %v3524 = vpop.f32.mrb[0].mxu0
      %v3525 = vadd.f32 0.0, %v3524
      %v3526 = vpop.f32.mrb[0].mxu0
      %v3527 = vpop.f32.mrb[0].mxu0
      %v3528 = vadd.f32 0.0, %v3527
      %v3529 = vpop.f32.mrb[0].mxu0
      %3530 = vmatprep.mubr.bf16.mxu0 0
      %3531 = vmatmul.mubr.bf16.gmra.mrb[0].mxu0 %v3369
      %v3532 = vpop.f32.mrb[0].mxu0
      %v3533 = vadd.f32 0.0, %v3532
      %v3534 = vpop.f32.mrb[0].mxu0
      %v3535 = vpop.f32.mrb[0].mxu0
      %v3536 = vadd.f32 0.0, %v3535
      %v3537 = vpop.f32.mrb[0].mxu0
      %3538 = vmatprep.mubr.bf16.mxu0 0
      %3539 = vmatmul.mubr.bf16.gmra.mrb[0].mxu0 %v3372
      %v3540 = vpop.f32.mrb[0].mxu0
      %v3541 = vadd.f32 0.0, %v3540
      %v3542 = vpop.f32.mrb[0].mxu0
      %v3543 = vpop.f32.mrb[0].mxu0
      %v3544 = vadd.f32 0.0, %v3543
      %v3545 = vpop.f32.mrb[0].mxu0
      %3546 = vmatprep.mubr.bf16.mxu0 0
      %3547 = vmatmul.mubr.bf16.gmra.mrb[0].mxu0 %v3375
      %v3548 = vpop.f32.mrb[0].mxu0
      %v3549 = vadd.f32 0.0, %v3548
      %v3550 = vpop.f32.mrb[0].mxu0
      %v3551 = vpop.f32.mrb[0].mxu0
      %v3552 = vadd.f32 0.0, %v3551
      %v3553 = vpop.f32.mrb[0].mxu0
      %3554 = vmatprep.mubr.bf16.mxu0 0
      %3555 = vmatmul.mubr.bf16.gmra.mrb[0].mxu0 %v3378
      %v3556 = vpop.f32.mrb[0].mxu0
      %v3557 = vadd.f32 0.0, %v3556
      %v3558 = vpop.f32.mrb[0].mxu0
      %v3559 = vpop.f32.mrb[0].mxu0
      %v3560 = vadd.f32 0.0, %v3559
      %v3561 = vpop.f32.mrb[0].mxu0
      %3562 = vmatprep.mubr.bf16.mxu0 0
      %3563 = vmatmul.mubr.bf16.gmra.mrb[0].mxu0 %v3381
      %v3564 = vpop.f32.mrb[0].mxu0
      %v3565 = vadd.f32 0.0, %v3564
      %v3566 = vpop.f32.mrb[0].mxu0
      %v3567 = vpop.f32.mrb[0].mxu0
      %v3568 = vadd.f32 0.0, %v3567
      %v3569 = vpop.f32.mrb[0].mxu0
      %3570 = vmatprep.mubr.bf16.mxu0 0
      %3571 = vmatmul.mubr.bf16.gmra.mrb[0].mxu0 %v3384
      %v3572 = vpop.f32.mrb[0].mxu0
      %v3573 = vadd.f32 0.0, %v3572
      %v3574 = vpop.f32.mrb[0].mxu0
      %v3575 = vpop.f32.mrb[0].mxu0
      %v3576 = vadd.f32 0.0, %v3575
      %v3577 = vpop.f32.mrb[0].mxu0
      %3578 = vmatprep.mubr.bf16.mxu0 0
      %3579 = vmatmul.mubr.bf16.gmra.mrb[0].mxu0 %v3387
      %v3580 = vpop.f32.mrb[0].mxu0
      %v3581 = vadd.f32 0.0, %v3580
      %v3582 = vpop.f32.mrb[0].mxu0
      %v3583 = vpop.f32.mrb[0].mxu0
      %v3584 = vadd.f32 0.0, %v3583
      %v3585 = vpop.f32.mrb[0].mxu0
      %3586 = vmatprep.mubr.bf16.mxu0 0
      %3587 = vmatmul.mubr.bf16.gmra.mrb[0].mxu0 %v3390
      %v3588 = vpop.f32.mrb[0].mxu0
      %v3589 = vadd.f32 0.0, %v3588
      %v3590 = vpop.f32.mrb[0].mxu0
      %v3591 = vpop.f32.mrb[0].mxu0
      %v3592 = vadd.f32 0.0, %v3591
      %v3593 = vpop.f32.mrb[0].mxu0
      %3594 = vmatprep.mubr.bf16.mxu0 0
      %3595 = vmatmul.mubr.bf16.gmra.mrb[0].mxu0 %v3393
      %v3596 = vpop.f32.mrb[0].mxu0
      %v3597 = vadd.f32 0.0, %v3596
      %v3598 = vpop.f32.mrb[0].mxu0
      %v3599 = vpop.f32.mrb[0].mxu0
      %v3600 = vadd.f32 0.0, %v3599
      %v3601 = vpop.f32.mrb[0].mxu0
      %3602 = vmatprep.mubr.bf16.mxu0 0
      %3603 = vmatmul.mubr.bf16.gmra.mrb[0].mxu0 %v3396
      %v3604 = vpop.f32.mrb[0].mxu0
      %v3605 = vadd.f32 0.0, %v3604
      %v3606 = vpop.f32.mrb[0].mxu0
      %v3607 = vpop.f32.mrb[0].mxu0
      %v3608 = vadd.f32 0.0, %v3607
      %v3609 = vpop.f32.mrb[0].mxu0
      %3610 = vmatprep.mubr.bf16.mxu0 0
      %3611 = vmatmul.mubr.bf16.gmra.mrb[0].mxu0 %v3399
      %v3612 = vpop.f32.mrb[0].mxu0
      %v3613 = vadd.f32 0.0, %v3612
      %v3614 = vpop.f32.mrb[0].mxu0
      %v3615 = vpop.f32.mrb[0].mxu0
      %v3616 = vadd.f32 0.0, %v3615
      %v3617 = vpop.f32.mrb[0].mxu0
      %3618 = vmatprep.mubr.bf16.mxu0 0
      %3619 = vmatmul.mubr.bf16.gmra.mrb[0].mxu0 %v3402
      %v3620 = vpop.f32.mrb[0].mxu0
      %v3621 = vadd.f32 0.0, %v3620
      %v3622 = vpop.f32.mrb[0].mxu0
      %v3623 = vpop.f32.mrb[0].mxu0
      %v3624 = vadd.f32 0.0, %v3623
      %v3625 = vpop.f32.mrb[0].mxu0
      %3626 = vmatprep.mubr.bf16.mxu0 0
      %3627 = vmatmul.mubr.bf16.gmra.mrb[0].mxu0 %v3405
      %v3628 = vpop.f32.mrb[0].mxu0
      %v3629 = vadd.f32 0.0, %v3628
      %v3630 = vpop.f32.mrb[0].mxu0
      %v3631 = vpop.f32.mrb[0].mxu0
      %v3632 = vadd.f32 0.0, %v3631
      %v3633 = vpop.f32.mrb[0].mxu0
      %3634 = vdwg.mxu0
      %v3635 = vadd.f32 %v3117, %v3445
      %v3636 = vadd.f32 %v3118, %v3448
      %v3637 = vadd.f32 %v3119, %v3453
      %v3638 = vadd.f32 %v3120, %v3456
      %v3639 = vadd.f32 %v3121, %v3461
      %v3640 = vadd.f32 %v3122, %v3464
      %v3641 = vadd.f32 %v3123, %v3469
      %v3642 = vadd.f32 %v3124, %v3472
      %v3643 = vadd.f32 %v3125, %v3477
      %v3644 = vadd.f32 %v3126, %v3480
      %v3645 = vadd.f32 %v3127, %v3485
      %v3646 = vadd.f32 %v3128, %v3488
      %v3647 = vadd.f32 %v3129, %v3493
      %v3648 = vadd.f32 %v3130, %v3496
      %v3649 = vadd.f32 %v3131, %v3501
      %v3650 = vadd.f32 %v3132, %v3504
      %v3651 = vadd.f32 %v3133, %v3509
      %v3652 = vadd.f32 %v3134, %v3512
      %v3653 = vadd.f32 %v3135, %v3517
      %v3654 = vadd.f32 %v3136, %v3520
      %v3655 = vadd.f32 %v3137, %v3525
      %v3656 = vadd.f32 %v3138, %v3528
      %v3657 = vadd.f32 %v3139, %v3533
      %v3658 = vadd.f32 %v3140, %v3536
      %v3659 = vadd.f32 %v3141, %v3541
      %v3660 = vadd.f32 %v3142, %v3544
      %v3661 = vadd.f32 %v3143, %v3549
      %v3662 = vadd.f32 %v3144, %v3552
      %v3663 = vadd.f32 %v3145, %v3557
      %v3664 = vadd.f32 %v3146, %v3560
      %v3665 = vadd.f32 %v3147, %v3565
      %v3666 = vadd.f32 %v3148, %v3568
      %v3667 = vadd.f32 %v3149, %v3573
      %v3668 = vadd.f32 %v3150, %v3576
      %v3669 = vadd.f32 %v3151, %v3581
      %v3670 = vadd.f32 %v3152, %v3584
      %v3671 = vadd.f32 %v3153, %v3589
      %v3672 = vadd.f32 %v3154, %v3592
      %v3673 = vadd.f32 %v3155, %v3597
      %v3674 = vadd.f32 %v3156, %v3600
      %v3675 = vadd.f32 %v3157, %v3605
      %v3676 = vadd.f32 %v3158, %v3608
      %v3677 = vadd.f32 %v3159, %v3613
      %v3678 = vadd.f32 %v3160, %v3616
      %v3679 = vadd.f32 %v3161, %v3621
      %v3680 = vadd.f32 %v3162, %v3624
      %v3681 = vadd.f32 %v3163, %v3629
      %v3682 = vadd.f32 %v3164, %v3632
      %v3683 = vld [vmem:[%s165 + $0x18] sm:$0xf]
      %v3684 = vld [vmem:[%s165 + $0x1c] sm:$0xf]
      %v3685 = vld [vmem:[%s165 + $0x20] sm:$0xf]
      %v3686 = vld [vmem:[%s165 + $0x24] sm:$0xf]
      %v3687 = vld [vmem:[%s165 + $0x28] sm:$0xf]
      %v3688 = vld [vmem:[%s165 + $0x2c] sm:$0xf]
      %v3689 = vld [vmem:[%s165 + $0x30] sm:$0xf]
      %v3690 = vld [vmem:[%s165 + $0x34] sm:$0xf]
      %v3691 = vld [vmem:[%s165 + $0x38] sm:$0xf]
      %v3692 = vld [vmem:[%s165 + $0x3c] sm:$0xf]
      %v3693 = vld [vmem:[%s165 + $0x40] sm:$0xf]
      %v3694 = vld [vmem:[%s165 + $0x44] sm:$0xf]
      %v3695 = vld [vmem:[%s165 + $0x48] sm:$0xf]
      %v3696 = vld [vmem:[%s165 + $0x4c] sm:$0xf]
      %v3697 = vld [vmem:[%s165 + $0x50] sm:$0xf]
      %v3698 = vld [vmem:[%s165 + $0x54] sm:$0xf]
      %v3699 = vld [vmem:[%s165 + $0x58] sm:$0xf]
      %v3700 = vld [vmem:[%s165 + $0x5c] sm:$0xf]
      %v3701 = vld [vmem:[%s165 + $0x60] sm:$0xf]
      %v3702 = vld [vmem:[%s165 + $0x64] sm:$0xf]
      %v3703 = vld [vmem:[%s165 + $0x68] sm:$0xf]
      %v3704 = vld [vmem:[%s165 + $0x6c] sm:$0xf]
      %v3705 = vld [vmem:[%s165 + $0x70] sm:$0xf]
      %v3706 = vld [vmem:[%s165 + $0x74] sm:$0xf]
      %v3707 = vld [vmem:[%s165 + $0x78] sm:$0xf]
      %v3708 = vld [vmem:[%s165 + $0x7c] sm:$0xf]
      %v3709 = vld [vmem:[%s165 + $0x80] sm:$0xf]
      %v3710 = vld [vmem:[%s165 + $0x84] sm:$0xf]
      %v3711 = vld [vmem:[%s165 + $0x88] sm:$0xf]
      %v3712 = vld [vmem:[%s165 + $0x8c] sm:$0xf]
      %v3713 = vld [vmem:[%s165 + $0x90] sm:$0xf]
      %v3714 = vld [vmem:[%s165 + $0x94] sm:$0xf]
      %v3715 = vld [vmem:[%s165 + $0x98] sm:$0xf]
      %v3716 = vld [vmem:[%s165 + $0x9c] sm:$0xf]
      %v3717 = vld [vmem:[%s165 + $0xa0] sm:$0xf]
      %v3718 = vld [vmem:[%s165 + $0xa4] sm:$0xf]
      %v3719 = vld [vmem:[%s165 + $0xa8] sm:$0xf]
      %v3720 = vld [vmem:[%s165 + $0xac] sm:$0xf]
      %v3721 = vld [vmem:[%s165 + $0xb0] sm:$0xf]
      %v3722 = vld [vmem:[%s165 + $0xb4] sm:$0xf]
      %v3723 = vld [vmem:[%s165 + $0xb8] sm:$0xf]
      %v3724 = vld [vmem:[%s165 + $0xbc] sm:$0xf]
      %v3725 = vld [vmem:[%s165 + $0xc0] sm:$0xf]
      %v3726 = vld [vmem:[%s165 + $0xc4] sm:$0xf]
      %v3727 = vld [vmem:[%s165 + $0xc8] sm:$0xf]
      %v3728 = vld [vmem:[%s165 + $0xcc] sm:$0xf]
      %v3729 = vld [vmem:[%s165 + $0xd0] sm:$0xf]
      %v3730 = vld [vmem:[%s165 + $0xd4] sm:$0xf]
      %v3731 = vld [vmem:[%s165 + $0xd8] sm:$0x1]
      %s3732 = scalar_lea.vmem %s1, 14
      %v3733 = vld [vmem:[%s3732] sm:$0x3]
      %v3783 = vunpack.c.l.b16 %v3683
      %v3784 = vunpack.c.l.b16 %v3684
      %v3785 = vunpack.c.l.b16 %v3685
      %v3786 = vunpack.c.l.b16 %v3686
      %v3787 = vunpack.c.l.b16 %v3687
      %v3788 = vunpack.c.l.b16 %v3688
      %v3789 = vunpack.c.l.b16 %v3689
      %v3790 = vunpack.c.l.b16 %v3690
      %v3791 = vunpack.c.l.b16 %v3691
      %v3792 = vunpack.c.l.b16 %v3692
      %v3793 = vunpack.c.l.b16 %v3693
      %v3794 = vunpack.c.l.b16 %v3694
      %v3795 = vunpack.c.l.b16 %v3695
      %v3796 = vunpack.c.l.b16 %v3696
      %v3797 = vunpack.c.l.b16 %v3697
      %v3798 = vunpack.c.l.b16 %v3698
      %v3799 = vunpack.c.l.b16 %v3699
      %v3800 = vunpack.c.l.b16 %v3700
      %v3801 = vunpack.c.l.b16 %v3701
      %v3802 = vunpack.c.l.b16 %v3702
      %v3803 = vunpack.c.l.b16 %v3703
      %v3804 = vunpack.c.l.b16 %v3704
      %v3805 = vunpack.c.l.b16 %v3705
      %v3806 = vunpack.c.l.b16 %v3706
      %v3807 = vunpack.c.l.b16 %v3707
      %v3808 = vunpack.c.l.b16 %v3708
      %v3809 = vunpack.c.l.b16 %v3709
      %v3810 = vunpack.c.l.b16 %v3710
      %v3811 = vunpack.c.l.b16 %v3711
      %v3812 = vunpack.c.l.b16 %v3712
      %v3813 = vunpack.c.l.b16 %v3713
      %v3814 = vunpack.c.l.b16 %v3714
      %v3815 = vunpack.c.l.b16 %v3715
      %v3816 = vunpack.c.l.b16 %v3716
      %v3817 = vunpack.c.l.b16 %v3717
      %v3818 = vunpack.c.l.b16 %v3718
      %v3819 = vunpack.c.l.b16 %v3719
      %v3820 = vunpack.c.l.b16 %v3720
      %v3821 = vunpack.c.l.b16 %v3721
      %v3822 = vunpack.c.l.b16 %v3722
      %v3823 = vunpack.c.l.b16 %v3723
      %v3824 = vunpack.c.l.b16 %v3724
      %v3825 = vunpack.c.l.b16 %v3725
      %v3826 = vunpack.c.l.b16 %v3726
      %v3827 = vunpack.c.l.b16 %v3727
      %v3828 = vunpack.c.l.b16 %v3728
      %v3829 = vunpack.c.l.b16 %v3729
      %v3830 = vunpack.c.l.b16 %v3730
      %v3831 = vunpack.c.l.b16 %v3731
      %v3832 = vpack.c.b16 %v3784, %v3783
      %v3833 = vpack.c.b16 %v3786, %v3785
      %v3834 = vpack.c.b16 %v3788, %v3787
      %v3835 = vpack.c.b16 %v3790, %v3789
      %v3836 = vpack.c.b16 %v3792, %v3791
      %v3837 = vpack.c.b16 %v3794, %v3793
      %v3838 = vpack.c.b16 %v3796, %v3795
      %v3839 = vpack.c.b16 %v3798, %v3797
      %v3840 = vpack.c.b16 %v3800, %v3799
      %v3841 = vpack.c.b16 %v3802, %v3801
      %v3842 = vpack.c.b16 %v3804, %v3803
      %v3843 = vpack.c.b16 %v3806, %v3805
      %v3844 = vpack.c.b16 %v3808, %v3807
      %v3845 = vpack.c.b16 %v3810, %v3809
      %v3846 = vpack.c.b16 %v3812, %v3811
      %v3847 = vpack.c.b16 %v3814, %v3813
      %v3848 = vpack.c.b16 %v3816, %v3815
      %v3849 = vpack.c.b16 %v3818, %v3817
      %v3850 = vpack.c.b16 %v3820, %v3819
      %v3851 = vpack.c.b16 %v3822, %v3821
      %v3852 = vpack.c.b16 %v3824, %v3823
      %v3853 = vpack.c.b16 %v3826, %v3825
      %v3854 = vpack.c.b16 %v3828, %v3827
      %v3855 = vpack.c.b16 %v3830, %v3829
      %v3856 = vpack.c.b16 %v3831, %v3831
      %v3858 = vshrl.u32 %v3832, 16
      %v3860 = vshll.u32 %v3832, 16
      %v3862 = vrot.slane %v3860, 1
      %v3863 = vor.u32 %v3858, %v3862
      %v3865 = vshll.u32 %v3833, 16
      %v3867 = vrot.slane %v3865, 1
      %v3868 = vsel %vm347, %v3863, %v3867
      %v3869 = vshrl.u32 %v3833, 16
      %v3871 = vor.u32 %v3869, %v3867
      %v3873 = vshll.u32 %v3834, 16
      %v3875 = vrot.slane %v3873, 1
      %v3876 = vsel %vm347, %v3871, %v3875
      %v3877 = vshrl.u32 %v3834, 16
      %v3879 = vor.u32 %v3877, %v3875
      %v3881 = vshll.u32 %v3835, 16
      %v3883 = vrot.slane %v3881, 1
      %v3884 = vsel %vm347, %v3879, %v3883
      %v3885 = vshrl.u32 %v3835, 16
      %v3887 = vor.u32 %v3885, %v3883
      %v3889 = vshll.u32 %v3836, 16
      %v3891 = vrot.slane %v3889, 1
      %v3892 = vsel %vm347, %v3887, %v3891
      %v3893 = vshrl.u32 %v3836, 16
      %v3895 = vor.u32 %v3893, %v3891
      %v3897 = vshll.u32 %v3837, 16
      %v3899 = vrot.slane %v3897, 1
      %v3900 = vsel %vm347, %v3895, %v3899
      %v3901 = vshrl.u32 %v3837, 16
      %v3903 = vor.u32 %v3901, %v3899
      %v3905 = vshll.u32 %v3838, 16
      %v3907 = vrot.slane %v3905, 1
      %v3908 = vsel %vm347, %v3903, %v3907
      %v3909 = vshrl.u32 %v3838, 16
      %v3911 = vor.u32 %v3909, %v3907
      %v3913 = vshll.u32 %v3839, 16
      %v3915 = vrot.slane %v3913, 1
      %v3916 = vsel %vm347, %v3911, %v3915
      %v3917 = vshrl.u32 %v3839, 16
      %v3919 = vor.u32 %v3917, %v3915
      %v3921 = vshll.u32 %v3840, 16
      %v3923 = vrot.slane %v3921, 1
      %v3924 = vsel %vm347, %v3919, %v3923
      %v3925 = vshrl.u32 %v3840, 16
      %v3927 = vor.u32 %v3925, %v3923
      %v3929 = vshll.u32 %v3841, 16
      %v3931 = vrot.slane %v3929, 1
      %v3932 = vsel %vm347, %v3927, %v3931
      %v3933 = vshrl.u32 %v3841, 16
      %v3935 = vor.u32 %v3933, %v3931
      %v3937 = vshll.u32 %v3842, 16
      %v3939 = vrot.slane %v3937, 1
      %v3940 = vsel %vm347, %v3935, %v3939
      %v3941 = vshrl.u32 %v3842, 16
      %v3943 = vor.u32 %v3941, %v3939
      %v3945 = vshll.u32 %v3843, 16
      %v3947 = vrot.slane %v3945, 1
      %v3948 = vsel %vm347, %v3943, %v3947
      %v3949 = vshrl.u32 %v3843, 16
      %v3951 = vor.u32 %v3949, %v3947
      %v3953 = vshll.u32 %v3844, 16
      %v3955 = vrot.slane %v3953, 1
      %v3956 = vsel %vm347, %v3951, %v3955
      %v3957 = vshrl.u32 %v3844, 16
      %v3959 = vor.u32 %v3957, %v3955
      %v3961 = vshll.u32 %v3845, 16
      %v3963 = vrot.slane %v3961, 1
      %v3964 = vsel %vm347, %v3959, %v3963
      %v3965 = vshrl.u32 %v3845, 16
      %v3967 = vor.u32 %v3965, %v3963
      %v3969 = vshll.u32 %v3846, 16
      %v3971 = vrot.slane %v3969, 1
      %v3972 = vsel %vm347, %v3967, %v3971
      %v3973 = vshrl.u32 %v3846, 16
      %v3975 = vor.u32 %v3973, %v3971
      %v3977 = vshll.u32 %v3847, 16
      %v3979 = vrot.slane %v3977, 1
      %v3980 = vsel %vm347, %v3975, %v3979
      %v3981 = vshrl.u32 %v3847, 16
      %v3983 = vor.u32 %v3981, %v3979
      %v3985 = vshll.u32 %v3848, 16
      %v3987 = vrot.slane %v3985, 1
      %v3988 = vsel %vm347, %v3983, %v3987
      %v3989 = vshrl.u32 %v3848, 16
      %v3991 = vor.u32 %v3989, %v3987
      %v3993 = vshll.u32 %v3849, 16
      %v3995 = vrot.slane %v3993, 1
      %v3996 = vsel %vm347, %v3991, %v3995
      %v3997 = vshrl.u32 %v3849, 16
      %v3999 = vor.u32 %v3997, %v3995
      %v4001 = vshll.u32 %v3850, 16
      %v4003 = vrot.slane %v4001, 1
      %v4004 = vsel %vm347, %v3999, %v4003
      %v4005 = vshrl.u32 %v3850, 16
      %v4007 = vor.u32 %v4005, %v4003
      %v4009 = vshll.u32 %v3851, 16
      %v4011 = vrot.slane %v4009, 1
      %v4012 = vsel %vm347, %v4007, %v4011
      %v4013 = vshrl.u32 %v3851, 16
      %v4015 = vor.u32 %v4013, %v4011
      %v4017 = vshll.u32 %v3852, 16
      %v4019 = vrot.slane %v4017, 1
      %v4020 = vsel %vm347, %v4015, %v4019
      %v4021 = vshrl.u32 %v3852, 16
      %v4023 = vor.u32 %v4021, %v4019
      %v4025 = vshll.u32 %v3853, 16
      %v4027 = vrot.slane %v4025, 1
      %v4028 = vsel %vm347, %v4023, %v4027
      %v4029 = vshrl.u32 %v3853, 16
      %v4031 = vor.u32 %v4029, %v4027
      %v4033 = vshll.u32 %v3854, 16
      %v4035 = vrot.slane %v4033, 1
      %v4036 = vsel %vm347, %v4031, %v4035
      %v4037 = vshrl.u32 %v3854, 16
      %v4039 = vor.u32 %v4037, %v4035
      %v4041 = vshll.u32 %v3855, 16
      %v4043 = vrot.slane %v4041, 1
      %v4044 = vsel %vm347, %v4039, %v4043
      %v4045 = vshrl.u32 %v3855, 16
      %v4047 = vor.u32 %v4045, %v4043
      %v4049 = vshll.u32 %v3856, 16
      %v4051 = vrot.slane %v4049, 1
      %v4052 = vsel %vm347, %v4047, %v4051
      %v4054 = vsel %vm544, %v3868, 0
      %v4057 = vsel %vm544, %v3876, 0
      %v4060 = vsel %vm544, %v3884, 0
      %v4063 = vsel %vm544, %v3892, 0
      %v4066 = vsel %vm544, %v3900, 0
      %v4069 = vsel %vm544, %v3908, 0
      %v4072 = vsel %vm544, %v3916, 0
      %v4075 = vsel %vm544, %v3924, 0
      %v4078 = vsel %vm544, %v3932, 0
      %v4081 = vsel %vm544, %v3940, 0
      %v4084 = vsel %vm544, %v3948, 0
      %v4087 = vsel %vm544, %v3956, 0
      %v4090 = vsel %vm544, %v3964, 0
      %v4093 = vsel %vm544, %v3972, 0
      %v4096 = vsel %vm544, %v3980, 0
      %v4099 = vsel %vm544, %v3988, 0
      %v4102 = vsel %vm544, %v3996, 0
      %v4105 = vsel %vm544, %v4004, 0
      %v4108 = vsel %vm544, %v4012, 0
      %v4111 = vsel %vm544, %v4020, 0
      %v4114 = vsel %vm544, %v4028, 0
      %v4117 = vsel %vm544, %v4036, 0
      %v4120 = vsel %vm544, %v4044, 0
      %v4123 = vsel %vm544, %v4052, 0
      %v4126 = vsel %vm617, %v3733, 0
      %4128 = vmatprep.subr.bf16.mxu0 0
      %4129 = vmatpush1.bf16.msra.mxu0 %v4126
      %4130 = vmatprep.subr.bf16.mxu0 0
      %4131 = vmatpush1.bf16.msra.mxu0 0
      %4132 = vmatprep.subr.bf16.mxu0 0
      %4133 = vmatpush1.bf16.msra.mxu0 0
      %4134 = vmatprep.subr.bf16.mxu0 0
      %4135 = vmatpush1.bf16.msra.mxu0 0
      %4136 = vmatprep.subr.bf16.mxu0 0
      %4137 = vmatpush1.bf16.msra.mxu0 0
      %4138 = vmatprep.subr.bf16.mxu0 0
      %4139 = vmatpush1.bf16.msra.mxu0 0
      %4140 = vmatprep.subr.bf16.mxu0 0
      %4141 = vmatpush1.bf16.msra.mxu0 0
      %4142 = vmatprep.subr.bf16.mxu0 0
      %4143 = vmatpush1.bf16.msra.mxu0 0
      %4144 = vmatprep.subr.bf16.mxu0 0
      %4145 = vmatpush1.bf16.msra.mxu0 0
      %4146 = vmatprep.subr.bf16.mxu0 0
      %4147 = vmatpush1.bf16.msra.mxu0 0
      %4148 = vmatprep.subr.bf16.mxu0 0
      %4149 = vmatpush1.bf16.msra.mxu0 0
      %4150 = vmatprep.subr.bf16.mxu0 0
      %4151 = vmatpush1.bf16.msra.mxu0 0
      %4152 = vmatprep.subr.bf16.mxu0 0
      %4153 = vmatpush1.bf16.msra.mxu0 0
      %4154 = vmatprep.subr.bf16.mxu0 0
      %4155 = vmatpush1.bf16.msra.mxu0 0
      %4156 = vmatprep.subr.bf16.mxu0 0
      %4157 = vmatpush1.bf16.msra.mxu0 0
      %4158 = vmatprep.subr.bf16.mxu0 0
      %4159 = vmatpush1.bf16.msra.mxu0 0
      %4160 = vmatprep.mubr.bf16.mxu0 0
      %4161 = vmatmul.mubr.bf16.gmra.mrb[0].mxu0 %v4054
      %v4162 = vpop.f32.mrb[0].mxu0
      %v4163 = vadd.f32 0.0, %v4162
      %v4164 = vpop.f32.mrb[0].mxu0
      %v4165 = vpop.f32.mrb[0].mxu0
      %v4166 = vadd.f32 0.0, %v4165
      %v4167 = vpop.f32.mrb[0].mxu0
      %4168 = vmatprep.mubr.bf16.mxu0 0
      %4169 = vmatmul.mubr.bf16.gmra.mrb[0].mxu0 %v4057
      %v4170 = vpop.f32.mrb[0].mxu0
      %v4171 = vadd.f32 0.0, %v4170
      %v4172 = vpop.f32.mrb[0].mxu0
      %v4173 = vpop.f32.mrb[0].mxu0
      %v4174 = vadd.f32 0.0, %v4173
      %v4175 = vpop.f32.mrb[0].mxu0
      %4176 = vmatprep.mubr.bf16.mxu0 0
      %4177 = vmatmul.mubr.bf16.gmra.mrb[0].mxu0 %v4060
      %v4178 = vpop.f32.mrb[0].mxu0
      %v4179 = vadd.f32 0.0, %v4178
      %v4180 = vpop.f32.mrb[0].mxu0
      %v4181 = vpop.f32.mrb[0].mxu0
      %v4182 = vadd.f32 0.0, %v4181
      %v4183 = vpop.f32.mrb[0].mxu0
      %4184 = vmatprep.mubr.bf16.mxu0 0
      %4185 = vmatmul.mubr.bf16.gmra.mrb[0].mxu0 %v4063
      %v4186 = vpop.f32.mrb[0].mxu0
      %v4187 = vadd.f32 0.0, %v4186
      %v4188 = vpop.f32.mrb[0].mxu0
      %v4189 = vpop.f32.mrb[0].mxu0
      %v4190 = vadd.f32 0.0, %v4189
      %v4191 = vpop.f32.mrb[0].mxu0
      %4192 = vmatprep.mubr.bf16.mxu0 0
      %4193 = vmatmul.mubr.bf16.gmra.mrb[0].mxu0 %v4066
      %v4194 = vpop.f32.mrb[0].mxu0
      %v4195 = vadd.f32 0.0, %v4194
      %v4196 = vpop.f32.mrb[0].mxu0
      %v4197 = vpop.f32.mrb[0].mxu0
      %v4198 = vadd.f32 0.0, %v4197
      %v4199 = vpop.f32.mrb[0].mxu0
      %4200 = vmatprep.mubr.bf16.mxu0 0
      %4201 = vmatmul.mubr.bf16.gmra.mrb[0].mxu0 %v4069
      %v4202 = vpop.f32.mrb[0].mxu0
      %v4203 = vadd.f32 0.0, %v4202
      %v4204 = vpop.f32.mrb[0].mxu0
      %v4205 = vpop.f32.mrb[0].mxu0
      %v4206 = vadd.f32 0.0, %v4205
      %v4207 = vpop.f32.mrb[0].mxu0
      %4208 = vmatprep.mubr.bf16.mxu0 0
      %4209 = vmatmul.mubr.bf16.gmra.mrb[0].mxu0 %v4072
      %v4210 = vpop.f32.mrb[0].mxu0
      %v4211 = vadd.f32 0.0, %v4210
      %v4212 = vpop.f32.mrb[0].mxu0
      %v4213 = vpop.f32.mrb[0].mxu0
      %v4214 = vadd.f32 0.0, %v4213
      %v4215 = vpop.f32.mrb[0].mxu0
      %4216 = vmatprep.mubr.bf16.mxu0 0
      %4217 = vmatmul.mubr.bf16.gmra.mrb[0].mxu0 %v4075
      %v4218 = vpop.f32.mrb[0].mxu0
      %v4219 = vadd.f32 0.0, %v4218
      %v4220 = vpop.f32.mrb[0].mxu0
      %v4221 = vpop.f32.mrb[0].mxu0
      %v4222 = vadd.f32 0.0, %v4221
      %v4223 = vpop.f32.mrb[0].mxu0
      %4224 = vmatprep.mubr.bf16.mxu0 0
      %4225 = vmatmul.mubr.bf16.gmra.mrb[0].mxu0 %v4078
      %v4226 = vpop.f32.mrb[0].mxu0
      %v4227 = vadd.f32 0.0, %v4226
      %v4228 = vpop.f32.mrb[0].mxu0
      %v4229 = vpop.f32.mrb[0].mxu0
      %v4230 = vadd.f32 0.0, %v4229
      %v4231 = vpop.f32.mrb[0].mxu0
      %4232 = vmatprep.mubr.bf16.mxu0 0
      %4233 = vmatmul.mubr.bf16.gmra.mrb[0].mxu0 %v4081
      %v4234 = vpop.f32.mrb[0].mxu0
      %v4235 = vadd.f32 0.0, %v4234
      %v4236 = vpop.f32.mrb[0].mxu0
      %v4237 = vpop.f32.mrb[0].mxu0
      %v4238 = vadd.f32 0.0, %v4237
      %v4239 = vpop.f32.mrb[0].mxu0
      %4240 = vmatprep.mubr.bf16.mxu0 0
      %4241 = vmatmul.mubr.bf16.gmra.mrb[0].mxu0 %v4084
      %v4242 = vpop.f32.mrb[0].mxu0
      %v4243 = vadd.f32 0.0, %v4242
      %v4244 = vpop.f32.mrb[0].mxu0
      %v4245 = vpop.f32.mrb[0].mxu0
      %v4246 = vadd.f32 0.0, %v4245
      %v4247 = vpop.f32.mrb[0].mxu0
      %4248 = vmatprep.mubr.bf16.mxu0 0
      %4249 = vmatmul.mubr.bf16.gmra.mrb[0].mxu0 %v4087
      %v4250 = vpop.f32.mrb[0].mxu0
      %v4251 = vadd.f32 0.0, %v4250
      %v4252 = vpop.f32.mrb[0].mxu0
      %v4253 = vpop.f32.mrb[0].mxu0
      %v4254 = vadd.f32 0.0, %v4253
      %v4255 = vpop.f32.mrb[0].mxu0
      %4256 = vmatprep.mubr.bf16.mxu0 0
      %4257 = vmatmul.mubr.bf16.gmra.mrb[0].mxu0 %v4090
      %v4258 = vpop.f32.mrb[0].mxu0
      %v4259 = vadd.f32 0.0, %v4258
      %v4260 = vpop.f32.mrb[0].mxu0
      %v4261 = vpop.f32.mrb[0].mxu0
      %v4262 = vadd.f32 0.0, %v4261
      %v4263 = vpop.f32.mrb[0].mxu0
      %4264 = vmatprep.mubr.bf16.mxu0 0
      %4265 = vmatmul.mubr.bf16.gmra.mrb[0].mxu0 %v4093
      %v4266 = vpop.f32.mrb[0].mxu0
      %v4267 = vadd.f32 0.0, %v4266
      %v4268 = vpop.f32.mrb[0].mxu0
      %v4269 = vpop.f32.mrb[0].mxu0
      %v4270 = vadd.f32 0.0, %v4269
      %v4271 = vpop.f32.mrb[0].mxu0
      %4272 = vmatprep.mubr.bf16.mxu0 0
      %4273 = vmatmul.mubr.bf16.gmra.mrb[0].mxu0 %v4096
      %v4274 = vpop.f32.mrb[0].mxu0
      %v4275 = vadd.f32 0.0, %v4274
      %v4276 = vpop.f32.mrb[0].mxu0
      %v4277 = vpop.f32.mrb[0].mxu0
      %v4278 = vadd.f32 0.0, %v4277
      %v4279 = vpop.f32.mrb[0].mxu0
      %4280 = vmatprep.mubr.bf16.mxu0 0
      %4281 = vmatmul.mubr.bf16.gmra.mrb[0].mxu0 %v4099
      %v4282 = vpop.f32.mrb[0].mxu0
      %v4283 = vadd.f32 0.0, %v4282
      %v4284 = vpop.f32.mrb[0].mxu0
      %v4285 = vpop.f32.mrb[0].mxu0
      %v4286 = vadd.f32 0.0, %v4285
      %v4287 = vpop.f32.mrb[0].mxu0
      %4288 = vmatprep.mubr.bf16.mxu0 0
      %4289 = vmatmul.mubr.bf16.gmra.mrb[0].mxu0 %v4102
      %v4290 = vpop.f32.mrb[0].mxu0
      %v4291 = vadd.f32 0.0, %v4290
      %v4292 = vpop.f32.mrb[0].mxu0
      %v4293 = vpop.f32.mrb[0].mxu0
      %v4294 = vadd.f32 0.0, %v4293
      %v4295 = vpop.f32.mrb[0].mxu0
      %4296 = vmatprep.mubr.bf16.mxu0 0
      %4297 = vmatmul.mubr.bf16.gmra.mrb[0].mxu0 %v4105
      %v4298 = vpop.f32.mrb[0].mxu0
      %v4299 = vadd.f32 0.0, %v4298
      %v4300 = vpop.f32.mrb[0].mxu0
      %v4301 = vpop.f32.mrb[0].mxu0
      %v4302 = vadd.f32 0.0, %v4301
      %v4303 = vpop.f32.mrb[0].mxu0
      %4304 = vmatprep.mubr.bf16.mxu0 0
      %4305 = vmatmul.mubr.bf16.gmra.mrb[0].mxu0 %v4108
      %v4306 = vpop.f32.mrb[0].mxu0
      %v4307 = vadd.f32 0.0, %v4306
      %v4308 = vpop.f32.mrb[0].mxu0
      %v4309 = vpop.f32.mrb[0].mxu0
      %v4310 = vadd.f32 0.0, %v4309
      %v4311 = vpop.f32.mrb[0].mxu0
      %4312 = vmatprep.mubr.bf16.mxu0 0
      %4313 = vmatmul.mubr.bf16.gmra.mrb[0].mxu0 %v4111
      %v4314 = vpop.f32.mrb[0].mxu0
      %v4315 = vadd.f32 0.0, %v4314
      %v4316 = vpop.f32.mrb[0].mxu0
      %v4317 = vpop.f32.mrb[0].mxu0
      %v4318 = vadd.f32 0.0, %v4317
      %v4319 = vpop.f32.mrb[0].mxu0
      %4320 = vmatprep.mubr.bf16.mxu0 0
      %4321 = vmatmul.mubr.bf16.gmra.mrb[0].mxu0 %v4114
      %v4322 = vpop.f32.mrb[0].mxu0
      %v4323 = vadd.f32 0.0, %v4322
      %v4324 = vpop.f32.mrb[0].mxu0
      %v4325 = vpop.f32.mrb[0].mxu0
      %v4326 = vadd.f32 0.0, %v4325
      %v4327 = vpop.f32.mrb[0].mxu0
      %4328 = vmatprep.mubr.bf16.mxu0 0
      %4329 = vmatmul.mubr.bf16.gmra.mrb[0].mxu0 %v4117
      %v4330 = vpop.f32.mrb[0].mxu0
      %v4331 = vadd.f32 0.0, %v4330
      %v4332 = vpop.f32.mrb[0].mxu0
      %v4333 = vpop.f32.mrb[0].mxu0
      %v4334 = vadd.f32 0.0, %v4333
      %v4335 = vpop.f32.mrb[0].mxu0
      %4336 = vmatprep.mubr.bf16.mxu0 0
      %4337 = vmatmul.mubr.bf16.gmra.mrb[0].mxu0 %v4120
      %v4338 = vpop.f32.mrb[0].mxu0
      %v4339 = vadd.f32 0.0, %v4338
      %v4340 = vpop.f32.mrb[0].mxu0
      %v4341 = vpop.f32.mrb[0].mxu0
      %v4342 = vadd.f32 0.0, %v4341
      %v4343 = vpop.f32.mrb[0].mxu0
      %4344 = vmatprep.mubr.bf16.mxu0 0
      %4345 = vmatmul.mubr.bf16.gmra.mrb[0].mxu0 %v4123
      %v4346 = vpop.f32.mrb[0].mxu0
      %v4347 = vadd.f32 0.0, %v4346
      %v4348 = vpop.f32.mrb[0].mxu0
      %v4349 = vpop.f32.mrb[0].mxu0
      %v4350 = vadd.f32 0.0, %v4349
      %v4351 = vpop.f32.mrb[0].mxu0
      %4352 = vdwg.mxu0
      %v4353 = vadd.f32 %v3635, %v4163
      %v4354 = vadd.f32 %v3636, %v4166
      %v4355 = vadd.f32 %v3637, %v4171
      %v4356 = vadd.f32 %v3638, %v4174
      %v4357 = vadd.f32 %v3639, %v4179
      %v4358 = vadd.f32 %v3640, %v4182
      %v4359 = vadd.f32 %v3641, %v4187
      %v4360 = vadd.f32 %v3642, %v4190
      %v4361 = vadd.f32 %v3643, %v4195
      %v4362 = vadd.f32 %v3644, %v4198
      %v4363 = vadd.f32 %v3645, %v4203
      %v4364 = vadd.f32 %v3646, %v4206
      %v4365 = vadd.f32 %v3647, %v4211
      %v4366 = vadd.f32 %v3648, %v4214
      %v4367 = vadd.f32 %v3649, %v4219
      %v4368 = vadd.f32 %v3650, %v4222
      %v4369 = vadd.f32 %v3651, %v4227
      %v4370 = vadd.f32 %v3652, %v4230
      %v4371 = vadd.f32 %v3653, %v4235
      %v4372 = vadd.f32 %v3654, %v4238
      %v4373 = vadd.f32 %v3655, %v4243
      %v4374 = vadd.f32 %v3656, %v4246
      %v4375 = vadd.f32 %v3657, %v4251
      %v4376 = vadd.f32 %v3658, %v4254
      %v4377 = vadd.f32 %v3659, %v4259
      %v4378 = vadd.f32 %v3660, %v4262
      %v4379 = vadd.f32 %v3661, %v4267
      %v4380 = vadd.f32 %v3662, %v4270
      %v4381 = vadd.f32 %v3663, %v4275
      %v4382 = vadd.f32 %v3664, %v4278
      %v4383 = vadd.f32 %v3665, %v4283
      %v4384 = vadd.f32 %v3666, %v4286
      %v4385 = vadd.f32 %v3667, %v4291
      %v4386 = vadd.f32 %v3668, %v4294
      %v4387 = vadd.f32 %v3669, %v4299
      %v4388 = vadd.f32 %v3670, %v4302
      %v4389 = vadd.f32 %v3671, %v4307
      %v4390 = vadd.f32 %v3672, %v4310
      %v4391 = vadd.f32 %v3673, %v4315
      %v4392 = vadd.f32 %v3674, %v4318
      %v4393 = vadd.f32 %v3675, %v4323
      %v4394 = vadd.f32 %v3676, %v4326
      %v4395 = vadd.f32 %v3677, %v4331
      %v4396 = vadd.f32 %v3678, %v4334
      %v4397 = vadd.f32 %v3679, %v4339
      %v4398 = vadd.f32 %v3680, %v4342
      %v4399 = vadd.f32 %v3681, %v4347
      %v4400 = vadd.f32 %v3682, %v4350
      %v4401 = vld [vmem:[%s165 + $0x18] sm:$0xe]
      %s4402 = scalar_lea.vmem %s1, 16
      %v4403 = vld [vmem:[%s4402] sm:$0x3]
      %v4405 = vunpack.c.l.b16 %v4401
      %v4406 = vpack.c.b16 %v3784, %v4405
      %v4407 = vrot.slane %v4406, 1
      %v4408 = vrot.slane %v3833, 1
      %v4409 = vsel %vm1128, %v4407, %v4408
      %v4410 = vrot.slane %v3834, 1
      %v4411 = vsel %vm1128, %v4408, %v4410
      %v4412 = vrot.slane %v3835, 1
      %v4413 = vsel %vm1128, %v4410, %v4412
      %v4414 = vrot.slane %v3836, 1
      %v4415 = vsel %vm1128, %v4412, %v4414
      %v4416 = vrot.slane %v3837, 1
      %v4417 = vsel %vm1128, %v4414, %v4416
      %v4418 = vrot.slane %v3838, 1
      %v4419 = vsel %vm1128, %v4416, %v4418
      %v4420 = vrot.slane %v3839, 1
      %v4421 = vsel %vm1128, %v4418, %v4420
      %v4422 = vrot.slane %v3840, 1
      %v4423 = vsel %vm1128, %v4420, %v4422
      %v4424 = vrot.slane %v3841, 1
      %v4425 = vsel %vm1128, %v4422, %v4424
      %v4426 = vrot.slane %v3842, 1
      %v4427 = vsel %vm1128, %v4424, %v4426
      %v4428 = vrot.slane %v3843, 1
      %v4429 = vsel %vm1128, %v4426, %v4428
      %v4430 = vrot.slane %v3844, 1
      %v4431 = vsel %vm1128, %v4428, %v4430
      %v4432 = vrot.slane %v3845, 1
      %v4433 = vsel %vm1128, %v4430, %v4432
      %v4434 = vrot.slane %v3846, 1
      %v4435 = vsel %vm1128, %v4432, %v4434
      %v4436 = vrot.slane %v3847, 1
      %v4437 = vsel %vm1128, %v4434, %v4436
      %v4438 = vrot.slane %v3848, 1
      %v4439 = vsel %vm1128, %v4436, %v4438
      %v4440 = vrot.slane %v3849, 1
      %v4441 = vsel %vm1128, %v4438, %v4440
      %v4442 = vrot.slane %v3850, 1
      %v4443 = vsel %vm1128, %v4440, %v4442
      %v4444 = vrot.slane %v3851, 1
      %v4445 = vsel %vm1128, %v4442, %v4444
      %v4446 = vrot.slane %v3852, 1
      %v4447 = vsel %vm1128, %v4444, %v4446
      %v4448 = vrot.slane %v3853, 1
      %v4449 = vsel %vm1128, %v4446, %v4448
      %v4450 = vrot.slane %v3854, 1
      %v4451 = vsel %vm1128, %v4448, %v4450
      %v4452 = vrot.slane %v3855, 1
      %v4453 = vsel %vm1128, %v4450, %v4452
      %v4454 = vrot.slane %v3856, 1
      %v4455 = vsel %vm1128, %v4452, %v4454
      %v4457 = vsel %vm544, %v4409, 0
      %v4460 = vsel %vm544, %v4411, 0
      %v4463 = vsel %vm544, %v4413, 0
      %v4466 = vsel %vm544, %v4415, 0
      %v4469 = vsel %vm544, %v4417, 0
      %v4472 = vsel %vm544, %v4419, 0
      %v4475 = vsel %vm544, %v4421, 0
      %v4478 = vsel %vm544, %v4423, 0
      %v4481 = vsel %vm544, %v4425, 0
      %v4484 = vsel %vm544, %v4427, 0
      %v4487 = vsel %vm544, %v4429, 0
      %v4490 = vsel %vm544, %v4431, 0
      %v4493 = vsel %vm544, %v4433, 0
      %v4496 = vsel %vm544, %v4435, 0
      %v4499 = vsel %vm544, %v4437, 0
      %v4502 = vsel %vm544, %v4439, 0
      %v4505 = vsel %vm544, %v4441, 0
      %v4508 = vsel %vm544, %v4443, 0
      %v4511 = vsel %vm544, %v4445, 0
      %v4514 = vsel %vm544, %v4447, 0
      %v4517 = vsel %vm544, %v4449, 0
      %v4520 = vsel %vm544, %v4451, 0
      %v4523 = vsel %vm544, %v4453, 0
      %v4526 = vsel %vm544, %v4455, 0
      %v4529 = vsel %vm617, %v4403, 0
      %4531 = vmatprep.subr.bf16.mxu0 0
      %4532 = vmatpush1.bf16.msra.mxu0 %v4529
      %4533 = vmatprep.subr.bf16.mxu0 0
      %4534 = vmatpush1.bf16.msra.mxu0 0
      %4535 = vmatprep.subr.bf16.mxu0 0
      %4536 = vmatpush1.bf16.msra.mxu0 0
      %4537 = vmatprep.subr.bf16.mxu0 0
      %4538 = vmatpush1.bf16.msra.mxu0 0
      %4539 = vmatprep.subr.bf16.mxu0 0
      %4540 = vmatpush1.bf16.msra.mxu0 0
      %4541 = vmatprep.subr.bf16.mxu0 0
      %4542 = vmatpush1.bf16.msra.mxu0 0
      %4543 = vmatprep.subr.bf16.mxu0 0
      %4544 = vmatpush1.bf16.msra.mxu0 0
      %4545 = vmatprep.subr.bf16.mxu0 0
      %4546 = vmatpush1.bf16.msra.mxu0 0
      %4547 = vmatprep.subr.bf16.mxu0 0
      %4548 = vmatpush1.bf16.msra.mxu0 0
      %4549 = vmatprep.subr.bf16.mxu0 0
      %4550 = vmatpush1.bf16.msra.mxu0 0
      %4551 = vmatprep.subr.bf16.mxu0 0
      %4552 = vmatpush1.bf16.msra.mxu0 0
      %4553 = vmatprep.subr.bf16.mxu0 0
      %4554 = vmatpush1.bf16.msra.mxu0 0
      %4555 = vmatprep.subr.bf16.mxu0 0
      %4556 = vmatpush1.bf16.msra.mxu0 0
      %4557 = vmatprep.subr.bf16.mxu0 0
      %4558 = vmatpush1.bf16.msra.mxu0 0
      %4559 = vmatprep.subr.bf16.mxu0 0
      %4560 = vmatpush1.bf16.msra.mxu0 0
      %4561 = vmatprep.subr.bf16.mxu0 0
      %4562 = vmatpush1.bf16.msra.mxu0 0
      %4563 = vmatprep.mubr.bf16.mxu0 0
      %4564 = vmatmul.mubr.bf16.gmra.mrb[0].mxu0 %v4457
      %v4565 = vpop.f32.mrb[0].mxu0
      %v4566 = vadd.f32 0.0, %v4565
      %v4567 = vpop.f32.mrb[0].mxu0
      %v4568 = vpop.f32.mrb[0].mxu0
      %v4569 = vadd.f32 0.0, %v4568
      %v4570 = vpop.f32.mrb[0].mxu0
      %4571 = vmatprep.mubr.bf16.mxu0 0
      %4572 = vmatmul.mubr.bf16.gmra.mrb[0].mxu0 %v4460
      %v4573 = vpop.f32.mrb[0].mxu0
      %v4574 = vadd.f32 0.0, %v4573
      %v4575 = vpop.f32.mrb[0].mxu0
      %v4576 = vpop.f32.mrb[0].mxu0
      %v4577 = vadd.f32 0.0, %v4576
      %v4578 = vpop.f32.mrb[0].mxu0
      %4579 = vmatprep.mubr.bf16.mxu0 0
      %4580 = vmatmul.mubr.bf16.gmra.mrb[0].mxu0 %v4463
      %v4581 = vpop.f32.mrb[0].mxu0
      %v4582 = vadd.f32 0.0, %v4581
      %v4583 = vpop.f32.mrb[0].mxu0
      %v4584 = vpop.f32.mrb[0].mxu0
      %v4585 = vadd.f32 0.0, %v4584
      %v4586 = vpop.f32.mrb[0].mxu0
      %4587 = vmatprep.mubr.bf16.mxu0 0
      %4588 = vmatmul.mubr.bf16.gmra.mrb[0].mxu0 %v4466
      %v4589 = vpop.f32.mrb[0].mxu0
      %v4590 = vadd.f32 0.0, %v4589
      %v4591 = vpop.f32.mrb[0].mxu0
      %v4592 = vpop.f32.mrb[0].mxu0
      %v4593 = vadd.f32 0.0, %v4592
      %v4594 = vpop.f32.mrb[0].mxu0
      %4595 = vmatprep.mubr.bf16.mxu0 0
      %4596 = vmatmul.mubr.bf16.gmra.mrb[0].mxu0 %v4469
      %v4597 = vpop.f32.mrb[0].mxu0
      %v4598 = vadd.f32 0.0, %v4597
      %v4599 = vpop.f32.mrb[0].mxu0
      %v4600 = vpop.f32.mrb[0].mxu0
      %v4601 = vadd.f32 0.0, %v4600
      %v4602 = vpop.f32.mrb[0].mxu0
      %4603 = vmatprep.mubr.bf16.mxu0 0
      %4604 = vmatmul.mubr.bf16.gmra.mrb[0].mxu0 %v4472
      %v4605 = vpop.f32.mrb[0].mxu0
      %v4606 = vadd.f32 0.0, %v4605
      %v4607 = vpop.f32.mrb[0].mxu0
      %v4608 = vpop.f32.mrb[0].mxu0
      %v4609 = vadd.f32 0.0, %v4608
      %v4610 = vpop.f32.mrb[0].mxu0
      %4611 = vmatprep.mubr.bf16.mxu0 0
      %4612 = vmatmul.mubr.bf16.gmra.mrb[0].mxu0 %v4475
      %v4613 = vpop.f32.mrb[0].mxu0
      %v4614 = vadd.f32 0.0, %v4613
      %v4615 = vpop.f32.mrb[0].mxu0
      %v4616 = vpop.f32.mrb[0].mxu0
      %v4617 = vadd.f32 0.0, %v4616
      %v4618 = vpop.f32.mrb[0].mxu0
      %4619 = vmatprep.mubr.bf16.mxu0 0
      %4620 = vmatmul.mubr.bf16.gmra.mrb[0].mxu0 %v4478
      %v4621 = vpop.f32.mrb[0].mxu0
      %v4622 = vadd.f32 0.0, %v4621
      %v4623 = vpop.f32.mrb[0].mxu0
      %v4624 = vpop.f32.mrb[0].mxu0
      %v4625 = vadd.f32 0.0, %v4624
      %v4626 = vpop.f32.mrb[0].mxu0
      %4627 = vmatprep.mubr.bf16.mxu0 0
      %4628 = vmatmul.mubr.bf16.gmra.mrb[0].mxu0 %v4481
      %v4629 = vpop.f32.mrb[0].mxu0
      %v4630 = vadd.f32 0.0, %v4629
      %v4631 = vpop.f32.mrb[0].mxu0
      %v4632 = vpop.f32.mrb[0].mxu0
      %v4633 = vadd.f32 0.0, %v4632
      %v4634 = vpop.f32.mrb[0].mxu0
      %4635 = vmatprep.mubr.bf16.mxu0 0
      %4636 = vmatmul.mubr.bf16.gmra.mrb[0].mxu0 %v4484
      %v4637 = vpop.f32.mrb[0].mxu0
      %v4638 = vadd.f32 0.0, %v4637
      %v4639 = vpop.f32.mrb[0].mxu0
      %v4640 = vpop.f32.mrb[0].mxu0
      %v4641 = vadd.f32 0.0, %v4640
      %v4642 = vpop.f32.mrb[0].mxu0
      %4643 = vmatprep.mubr.bf16.mxu0 0
      %4644 = vmatmul.mubr.bf16.gmra.mrb[0].mxu0 %v4487
      %v4645 = vpop.f32.mrb[0].mxu0
      %v4646 = vadd.f32 0.0, %v4645
      %v4647 = vpop.f32.mrb[0].mxu0
      %v4648 = vpop.f32.mrb[0].mxu0
      %v4649 = vadd.f32 0.0, %v4648
      %v4650 = vpop.f32.mrb[0].mxu0
      %4651 = vmatprep.mubr.bf16.mxu0 0
      %4652 = vmatmul.mubr.bf16.gmra.mrb[0].mxu0 %v4490
      %v4653 = vpop.f32.mrb[0].mxu0
      %v4654 = vadd.f32 0.0, %v4653
      %v4655 = vpop.f32.mrb[0].mxu0
      %v4656 = vpop.f32.mrb[0].mxu0
      %v4657 = vadd.f32 0.0, %v4656
      %v4658 = vpop.f32.mrb[0].mxu0
      %4659 = vmatprep.mubr.bf16.mxu0 0
      %4660 = vmatmul.mubr.bf16.gmra.mrb[0].mxu0 %v4493
      %v4661 = vpop.f32.mrb[0].mxu0
      %v4662 = vadd.f32 0.0, %v4661
      %v4663 = vpop.f32.mrb[0].mxu0
      %v4664 = vpop.f32.mrb[0].mxu0
      %v4665 = vadd.f32 0.0, %v4664
      %v4666 = vpop.f32.mrb[0].mxu0
      %4667 = vmatprep.mubr.bf16.mxu0 0
      %4668 = vmatmul.mubr.bf16.gmra.mrb[0].mxu0 %v4496
      %v4669 = vpop.f32.mrb[0].mxu0
      %v4670 = vadd.f32 0.0, %v4669
      %v4671 = vpop.f32.mrb[0].mxu0
      %v4672 = vpop.f32.mrb[0].mxu0
      %v4673 = vadd.f32 0.0, %v4672
      %v4674 = vpop.f32.mrb[0].mxu0
      %4675 = vmatprep.mubr.bf16.mxu0 0
      %4676 = vmatmul.mubr.bf16.gmra.mrb[0].mxu0 %v4499
      %v4677 = vpop.f32.mrb[0].mxu0
      %v4678 = vadd.f32 0.0, %v4677
      %v4679 = vpop.f32.mrb[0].mxu0
      %v4680 = vpop.f32.mrb[0].mxu0
      %v4681 = vadd.f32 0.0, %v4680
      %v4682 = vpop.f32.mrb[0].mxu0
      %4683 = vmatprep.mubr.bf16.mxu0 0
      %4684 = vmatmul.mubr.bf16.gmra.mrb[0].mxu0 %v4502
      %v4685 = vpop.f32.mrb[0].mxu0
      %v4686 = vadd.f32 0.0, %v4685
      %v4687 = vpop.f32.mrb[0].mxu0
      %v4688 = vpop.f32.mrb[0].mxu0
      %v4689 = vadd.f32 0.0, %v4688
      %v4690 = vpop.f32.mrb[0].mxu0
      %4691 = vmatprep.mubr.bf16.mxu0 0
      %4692 = vmatmul.mubr.bf16.gmra.mrb[0].mxu0 %v4505
      %v4693 = vpop.f32.mrb[0].mxu0
      %v4694 = vadd.f32 0.0, %v4693
      %v4695 = vpop.f32.mrb[0].mxu0
      %v4696 = vpop.f32.mrb[0].mxu0
      %v4697 = vadd.f32 0.0, %v4696
      %v4698 = vpop.f32.mrb[0].mxu0
      %4699 = vmatprep.mubr.bf16.mxu0 0
      %4700 = vmatmul.mubr.bf16.gmra.mrb[0].mxu0 %v4508
      %v4701 = vpop.f32.mrb[0].mxu0
      %v4702 = vadd.f32 0.0, %v4701
      %v4703 = vpop.f32.mrb[0].mxu0
      %v4704 = vpop.f32.mrb[0].mxu0
      %v4705 = vadd.f32 0.0, %v4704
      %v4706 = vpop.f32.mrb[0].mxu0
      %4707 = vmatprep.mubr.bf16.mxu0 0
      %4708 = vmatmul.mubr.bf16.gmra.mrb[0].mxu0 %v4511
      %v4709 = vpop.f32.mrb[0].mxu0
      %v4710 = vadd.f32 0.0, %v4709
      %v4711 = vpop.f32.mrb[0].mxu0
      %v4712 = vpop.f32.mrb[0].mxu0
      %v4713 = vadd.f32 0.0, %v4712
      %v4714 = vpop.f32.mrb[0].mxu0
      %4715 = vmatprep.mubr.bf16.mxu0 0
      %4716 = vmatmul.mubr.bf16.gmra.mrb[0].mxu0 %v4514
      %v4717 = vpop.f32.mrb[0].mxu0
      %v4718 = vadd.f32 0.0, %v4717
      %v4719 = vpop.f32.mrb[0].mxu0
      %v4720 = vpop.f32.mrb[0].mxu0
      %v4721 = vadd.f32 0.0, %v4720
      %v4722 = vpop.f32.mrb[0].mxu0
      %4723 = vmatprep.mubr.bf16.mxu0 0
      %4724 = vmatmul.mubr.bf16.gmra.mrb[0].mxu0 %v4517
      %v4725 = vpop.f32.mrb[0].mxu0
      %v4726 = vadd.f32 0.0, %v4725
      %v4727 = vpop.f32.mrb[0].mxu0
      %v4728 = vpop.f32.mrb[0].mxu0
      %v4729 = vadd.f32 0.0, %v4728
      %v4730 = vpop.f32.mrb[0].mxu0
      %4731 = vmatprep.mubr.bf16.mxu0 0
      %4732 = vmatmul.mubr.bf16.gmra.mrb[0].mxu0 %v4520
      %v4733 = vpop.f32.mrb[0].mxu0
      %v4734 = vadd.f32 0.0, %v4733
      %v4735 = vpop.f32.mrb[0].mxu0
      %v4736 = vpop.f32.mrb[0].mxu0
      %v4737 = vadd.f32 0.0, %v4736
      %v4738 = vpop.f32.mrb[0].mxu0
      %4739 = vmatprep.mubr.bf16.mxu0 0
      %4740 = vmatmul.mubr.bf16.gmra.mrb[0].mxu0 %v4523
      %v4741 = vpop.f32.mrb[0].mxu0
      %v4742 = vadd.f32 0.0, %v4741
      %v4743 = vpop.f32.mrb[0].mxu0
      %v4744 = vpop.f32.mrb[0].mxu0
      %v4745 = vadd.f32 0.0, %v4744
      %v4746 = vpop.f32.mrb[0].mxu0
      %4747 = vmatprep.mubr.bf16.mxu0 0
      %4748 = vmatmul.mubr.bf16.gmra.mrb[0].mxu0 %v4526
      %v4749 = vpop.f32.mrb[0].mxu0
      %v4750 = vadd.f32 0.0, %v4749
      %v4751 = vpop.f32.mrb[0].mxu0
      %v4752 = vpop.f32.mrb[0].mxu0
      %v4753 = vadd.f32 0.0, %v4752
      %v4754 = vpop.f32.mrb[0].mxu0
      %4755 = vdwg.mxu0
      %v4756 = vadd.f32 %v4353, %v4566
      %v4757 = vadd.f32 %v4354, %v4569
      %v4758 = vadd.f32 %v4355, %v4574
      %v4759 = vadd.f32 %v4356, %v4577
      %v4760 = vadd.f32 %v4357, %v4582
      %v4761 = vadd.f32 %v4358, %v4585
      %v4762 = vadd.f32 %v4359, %v4590
      %v4763 = vadd.f32 %v4360, %v4593
      %v4764 = vadd.f32 %v4361, %v4598
      %v4765 = vadd.f32 %v4362, %v4601
      %v4766 = vadd.f32 %v4363, %v4606
      %v4767 = vadd.f32 %v4364, %v4609
      %v4768 = vadd.f32 %v4365, %v4614
      %v4769 = vadd.f32 %v4366, %v4617
      %v4770 = vadd.f32 %v4367, %v4622
      %v4771 = vadd.f32 %v4368, %v4625
      %v4772 = vadd.f32 %v4369, %v4630
      %v4773 = vadd.f32 %v4370, %v4633
      %v4774 = vadd.f32 %v4371, %v4638
      %v4775 = vadd.f32 %v4372, %v4641
      %v4776 = vadd.f32 %v4373, %v4646
      %v4777 = vadd.f32 %v4374, %v4649
      %v4778 = vadd.f32 %v4375, %v4654
      %v4779 = vadd.f32 %v4376, %v4657
      %v4780 = vadd.f32 %v4377, %v4662
      %v4781 = vadd.f32 %v4378, %v4665
      %v4782 = vadd.f32 %v4379, %v4670
      %v4783 = vadd.f32 %v4380, %v4673
      %v4784 = vadd.f32 %v4381, %v4678
      %v4785 = vadd.f32 %v4382, %v4681
      %v4786 = vadd.f32 %v4383, %v4686
      %v4787 = vadd.f32 %v4384, %v4689
      %v4788 = vadd.f32 %v4385, %v4694
      %v4789 = vadd.f32 %v4386, %v4697
      %v4790 = vadd.f32 %v4387, %v4702
      %v4791 = vadd.f32 %v4388, %v4705
      %v4792 = vadd.f32 %v4389, %v4710
      %v4793 = vadd.f32 %v4390, %v4713
      %v4794 = vadd.f32 %v4391, %v4718
      %v4795 = vadd.f32 %v4392, %v4721
      %v4796 = vadd.f32 %v4393, %v4726
      %v4797 = vadd.f32 %v4394, %v4729
      %v4798 = vadd.f32 %v4395, %v4734
      %v4799 = vadd.f32 %v4396, %v4737
      %v4800 = vadd.f32 %v4397, %v4742
      %v4801 = vadd.f32 %v4398, %v4745
      %v4802 = vadd.f32 %v4399, %v4750
      %v4803 = vadd.f32 %v4400, %v4753
      %v4804 = vld [vmem:[%s2] sm:$0x1]
      %v4806 = vlaneseq
      %v4807 = vshrl.u32 %v4806, 7
      %v4808 = vsub.s32 0, %v4807
      %v4809 = vrot.slane %v4804, %v4808
      %v4811 = vadd.f32 %v4756, %v4809
      %v4812 = vadd.f32 %v4757, %v4809
      %v4813 = vadd.f32 %v4758, %v4809
      %v4814 = vadd.f32 %v4759, %v4809
      %v4815 = vadd.f32 %v4760, %v4809
      %v4816 = vadd.f32 %v4761, %v4809
      %v4817 = vadd.f32 %v4762, %v4809
      %v4818 = vadd.f32 %v4763, %v4809
      %v4819 = vadd.f32 %v4764, %v4809
      %v4820 = vadd.f32 %v4765, %v4809
      %v4821 = vadd.f32 %v4766, %v4809
      %v4822 = vadd.f32 %v4767, %v4809
      %v4823 = vadd.f32 %v4768, %v4809
      %v4824 = vadd.f32 %v4769, %v4809
      %v4825 = vadd.f32 %v4770, %v4809
      %v4826 = vadd.f32 %v4771, %v4809
      %v4827 = vadd.f32 %v4772, %v4809
      %v4828 = vadd.f32 %v4773, %v4809
      %v4829 = vadd.f32 %v4774, %v4809
      %v4830 = vadd.f32 %v4775, %v4809
      %v4831 = vadd.f32 %v4776, %v4809
      %v4832 = vadd.f32 %v4777, %v4809
      %v4833 = vadd.f32 %v4778, %v4809
      %v4834 = vadd.f32 %v4779, %v4809
      %v4835 = vadd.f32 %v4780, %v4809
      %v4836 = vadd.f32 %v4781, %v4809
      %v4837 = vadd.f32 %v4782, %v4809
      %v4838 = vadd.f32 %v4783, %v4809
      %v4839 = vadd.f32 %v4784, %v4809
      %v4840 = vadd.f32 %v4785, %v4809
      %v4841 = vadd.f32 %v4786, %v4809
      %v4842 = vadd.f32 %v4787, %v4809
      %v4843 = vadd.f32 %v4788, %v4809
      %v4844 = vadd.f32 %v4789, %v4809
      %v4845 = vadd.f32 %v4790, %v4809
      %v4846 = vadd.f32 %v4791, %v4809
      %v4847 = vadd.f32 %v4792, %v4809
      %v4848 = vadd.f32 %v4793, %v4809
      %v4849 = vadd.f32 %v4794, %v4809
      %v4850 = vadd.f32 %v4795, %v4809
      %v4851 = vadd.f32 %v4796, %v4809
      %v4852 = vadd.f32 %v4797, %v4809
      %v4853 = vadd.f32 %v4798, %v4809
      %v4854 = vadd.f32 %v4799, %v4809
      %v4855 = vadd.f32 %v4800, %v4809
      %v4856 = vadd.f32 %v4801, %v4809
      %v4857 = vadd.f32 %v4802, %v4809
      %v4858 = vadd.f32 %v4803, %v4809
      %v4859 = vmax.f32 %v4811, 0.0
      %v4860 = vmax.f32 %v4812, 0.0
      %v4861 = vmax.f32 %v4813, 0.0
      %v4862 = vmax.f32 %v4814, 0.0
      %v4863 = vmax.f32 %v4815, 0.0
      %v4864 = vmax.f32 %v4816, 0.0
      %v4865 = vmax.f32 %v4817, 0.0
      %v4866 = vmax.f32 %v4818, 0.0
      %v4867 = vmax.f32 %v4819, 0.0
      %v4868 = vmax.f32 %v4820, 0.0
      %v4869 = vmax.f32 %v4821, 0.0
      %v4870 = vmax.f32 %v4822, 0.0
      %v4871 = vmax.f32 %v4823, 0.0
      %v4872 = vmax.f32 %v4824, 0.0
      %v4873 = vmax.f32 %v4825, 0.0
      %v4874 = vmax.f32 %v4826, 0.0
      %v4875 = vmax.f32 %v4827, 0.0
      %v4876 = vmax.f32 %v4828, 0.0
      %v4877 = vmax.f32 %v4829, 0.0
      %v4878 = vmax.f32 %v4830, 0.0
      %v4879 = vmax.f32 %v4831, 0.0
      %v4880 = vmax.f32 %v4832, 0.0
      %v4881 = vmax.f32 %v4833, 0.0
      %v4882 = vmax.f32 %v4834, 0.0
      %v4883 = vmax.f32 %v4835, 0.0
      %v4884 = vmax.f32 %v4836, 0.0
      %v4885 = vmax.f32 %v4837, 0.0
      %v4886 = vmax.f32 %v4838, 0.0
      %v4887 = vmax.f32 %v4839, 0.0
      %v4888 = vmax.f32 %v4840, 0.0
      %v4889 = vmax.f32 %v4841, 0.0
      %v4890 = vmax.f32 %v4842, 0.0
      %v4891 = vmax.f32 %v4843, 0.0
      %v4892 = vmax.f32 %v4844, 0.0
      %v4893 = vmax.f32 %v4845, 0.0
      %v4894 = vmax.f32 %v4846, 0.0
      %v4895 = vmax.f32 %v4847, 0.0
      %v4896 = vmax.f32 %v4848, 0.0
      %v4897 = vmax.f32 %v4849, 0.0
      %v4898 = vmax.f32 %v4850, 0.0
      %v4899 = vmax.f32 %v4851, 0.0
      %v4900 = vmax.f32 %v4852, 0.0
      %v4901 = vmax.f32 %v4853, 0.0
      %v4902 = vmax.f32 %v4854, 0.0
      %v4903 = vmax.f32 %v4855, 0.0
      %v4904 = vmax.f32 %v4856, 0.0
      %v4905 = vmax.f32 %v4857, 0.0
      %v4906 = vmax.f32 %v4858, 0.0
      %s4907 = scalar_lea.vmem [#allocation2], 24
      %4908 = vst [vmem:[%s4907] sm:$0xff] %v4859
      %4909 = vst [vmem:[%s4907 + $0x8] sm:$0xff] %v4860
      %4910 = vst [vmem:[%s4907 + $0x10] sm:$0xff] %v4861
      %4911 = vst [vmem:[%s4907 + $0x18] sm:$0xff] %v4862
      %4912 = vst [vmem:[%s4907 + $0x20] sm:$0xff] %v4863
      %4913 = vst [vmem:[%s4907 + $0x28] sm:$0xff] %v4864
      %4914 = vst [vmem:[%s4907 + $0x30] sm:$0xff] %v4865
      %4915 = vst [vmem:[%s4907 + $0x38] sm:$0xff] %v4866
      %4916 = vst [vmem:[%s4907 + $0x40] sm:$0xff] %v4867
      %4917 = vst [vmem:[%s4907 + $0x48] sm:$0xff] %v4868
      %4918 = vst [vmem:[%s4907 + $0x50] sm:$0xff] %v4869
      %4919 = vst [vmem:[%s4907 + $0x58] sm:$0xff] %v4870
      %4920 = vst [vmem:[%s4907 + $0x60] sm:$0xff] %v4871
      %4921 = vst [vmem:[%s4907 + $0x68] sm:$0xff] %v4872
      %4922 = vst [vmem:[%s4907 + $0x70] sm:$0xff] %v4873
      %4923 = vst [vmem:[%s4907 + $0x78] sm:$0xff] %v4874
      %4924 = vst [vmem:[%s4907 + $0x80] sm:$0xff] %v4875
      %4925 = vst [vmem:[%s4907 + $0x88] sm:$0xff] %v4876
      %4926 = vst [vmem:[%s4907 + $0x90] sm:$0xff] %v4877
      %4927 = vst [vmem:[%s4907 + $0x98] sm:$0xff] %v4878
      %4928 = vst [vmem:[%s4907 + $0xa0] sm:$0xff] %v4879
      %4929 = vst [vmem:[%s4907 + $0xa8] sm:$0xff] %v4880
      %4930 = vst [vmem:[%s4907 + $0xb0] sm:$0xff] %v4881
      %4931 = vst [vmem:[%s4907 + $0xb8] sm:$0xff] %v4882
      %4932 = vst [vmem:[%s4907 + $0xc0] sm:$0xff] %v4883
      %4933 = vst [vmem:[%s4907 + $0xc8] sm:$0xff] %v4884
      %4934 = vst [vmem:[%s4907 + $0xd0] sm:$0xff] %v4885
      %4935 = vst [vmem:[%s4907 + $0xd8] sm:$0xff] %v4886
      %4936 = vst [vmem:[%s4907 + $0xe0] sm:$0xff] %v4887
      %4937 = vst [vmem:[%s4907 + $0xe8] sm:$0xff] %v4888
      %4938 = vst [vmem:[%s4907 + $0xf0] sm:$0xff] %v4889
      %4939 = vst [vmem:[%s4907 + $0xf8] sm:$0xff] %v4890
      %4940 = vst [vmem:[%s4907 + $0x100] sm:$0xff] %v4891
      %4941 = vst [vmem:[%s4907 + $0x108] sm:$0xff] %v4892
      %4942 = vst [vmem:[%s4907 + $0x110] sm:$0xff] %v4893
      %4943 = vst [vmem:[%s4907 + $0x118] sm:$0xff] %v4894
      %4944 = vst [vmem:[%s4907 + $0x120] sm:$0xff] %v4895
      %4945 = vst [vmem:[%s4907 + $0x128] sm:$0xff] %v4896
      %4946 = vst [vmem:[%s4907 + $0x130] sm:$0xff] %v4897
      %4947 = vst [vmem:[%s4907 + $0x138] sm:$0xff] %v4898
      %4948 = vst [vmem:[%s4907 + $0x140] sm:$0xff] %v4899
      %4949 = vst [vmem:[%s4907 + $0x148] sm:$0xff] %v4900
      %4950 = vst [vmem:[%s4907 + $0x150] sm:$0xff] %v4901
      %4951 = vst [vmem:[%s4907 + $0x158] sm:$0xff] %v4902
      %4952 = vst [vmem:[%s4907 + $0x160] sm:$0xff] %v4903
      %4953 = vst [vmem:[%s4907 + $0x168] sm:$0xff] %v4904
      %4954 = vst [vmem:[%s4907 + $0x170] sm:$0xff] %v4905
      %4955 = vst [vmem:[%s4907 + $0x178] sm:$0xff] %v4906
      %4956 = vst [vmem:[#allocation2] sm:$0xff] 0.0
      %4957 = vst [vmem:[#allocation2 + $0x8] sm:$0xff] 0.0
      %4958 = vst [vmem:[#allocation2 + $0x10] sm:$0xff] 0.0
      %s4959 = scalar_lea.vmem [#allocation2], 408
      %4960 = vst [vmem:[%s4959] sm:$0xff] 0.0
      %4961 = vst [vmem:[%s4959 + $0x8] sm:$0xff] 0.0
      %4962 = vst [vmem:[%s4959 + $0x10] sm:$0xff] 0.0
      %4963 = vst [vmem:[#allocation2] sm:$0x1] 0.0
      %4964 = vst [vmem:[#allocation2 + $0x18] sm:$0x1] 0.0
      %4965 = vst [vmem:[#allocation2 + $0x30] sm:$0x1] 0.0
      %4966 = vst [vmem:[#allocation2 + $0x48] sm:$0x1] 0.0
      %4967 = vst [vmem:[#allocation2 + $0x60] sm:$0x1] 0.0
      %4968 = vst [vmem:[#allocation2 + $0x78] sm:$0x1] 0.0
      %4969 = vst [vmem:[#allocation2 + $0x90] sm:$0x1] 0.0
      %4970 = vst [vmem:[#allocation2 + $0xa8] sm:$0x1] 0.0
      %4971 = vst [vmem:[#allocation2 + $0xc0] sm:$0x1] 0.0
      %4972 = vst [vmem:[#allocation2 + $0xd8] sm:$0x1] 0.0
      %4973 = vst [vmem:[#allocation2 + $0xf0] sm:$0x1] 0.0
      %4974 = vst [vmem:[#allocation2 + $0x108] sm:$0x1] 0.0
      %4975 = vst [vmem:[#allocation2 + $0x120] sm:$0x1] 0.0
      %4976 = vst [vmem:[#allocation2 + $0x138] sm:$0x1] 0.0
      %4977 = vst [vmem:[#allocation2 + $0x150] sm:$0x1] 0.0
      %4978 = vst [vmem:[#allocation2 + $0x168] sm:$0x1] 0.0
      %4979 = vst [vmem:[#allocation2 + $0x180] sm:$0x1] 0.0
      %4980 = vst [vmem:[#allocation2 + $0x198] sm:$0x1] 0.0
      %4981 = vst [vmem:[#allocation2 + $0x11] sm:$0x1] 0.0
      %4982 = vst [vmem:[#allocation2 + $0x29] sm:$0x1] 0.0
      %4983 = vst [vmem:[#allocation2 + $0x41] sm:$0x1] 0.0
      %4984 = vst [vmem:[#allocation2 + $0x59] sm:$0x1] 0.0
      %4985 = vst [vmem:[#allocation2 + $0x71] sm:$0x1] 0.0
      %4986 = vst [vmem:[#allocation2 + $0x89] sm:$0x1] 0.0
      %4987 = vst [vmem:[#allocation2 + $0xa1] sm:$0x1] 0.0
      %4988 = vst [vmem:[#allocation2 + $0xb9] sm:$0x1] 0.0
      %4989 = vst [vmem:[#allocation2 + $0xd1] sm:$0x1] 0.0
      %4990 = vst [vmem:[#allocation2 + $0xe9] sm:$0x1] 0.0
      %4991 = vst [vmem:[#allocation2 + $0x101] sm:$0x1] 0.0
      %4992 = vst [vmem:[#allocation2 + $0x119] sm:$0x1] 0.0
      %4993 = vst [vmem:[#allocation2 + $0x131] sm:$0x1] 0.0
      %4994 = vst [vmem:[#allocation2 + $0x149] sm:$0x1] 0.0
      %4995 = vst [vmem:[#allocation2 + $0x161] sm:$0x1] 0.0
      %4996 = vst [vmem:[#allocation2 + $0x179] sm:$0x1] 0.0
      %4997 = vst [vmem:[#allocation2 + $0x191] sm:$0x1] 0.0
      %4998 = vst [vmem:[#allocation2 + $0x1a9] sm:$0x1] 0.0
      %v4999 = vld [vmem:[#allocation2] ss:$2 sm:$0xff]
      %s5000 = scalar_lea.vmem [#allocation2], 24
      %v5001 = vld [vmem:[%s5000] ss:$2 sm:$0xff]
      %s5002 = scalar_lea.vmem [#allocation2], 48
      %v5003 = vld [vmem:[%s5002] ss:$2 sm:$0xff]
      %s5004 = scalar_lea.vmem [#allocation2], 72
      %v5005 = vld [vmem:[%s5004] ss:$2 sm:$0xff]
      %s5006 = scalar_lea.vmem [#allocation2], 96
      %v5007 = vld [vmem:[%s5006] ss:$2 sm:$0xff]
      %s5008 = scalar_lea.vmem [#allocation2], 120
      %v5009 = vld [vmem:[%s5008] ss:$2 sm:$0xff]
      %s5010 = scalar_lea.vmem [#allocation2], 144
      %v5011 = vld [vmem:[%s5010] ss:$2 sm:$0xff]
      %s5012 = scalar_lea.vmem [#allocation2], 168
      %v5013 = vld [vmem:[%s5012] ss:$2 sm:$0xff]
      %s5014 = scalar_lea.vmem [#allocation2], 192
      %v5015 = vld [vmem:[%s5014] ss:$2 sm:$0xff]
      %s5016 = scalar_lea.vmem [#allocation2], 216
      %v5017 = vld [vmem:[%s5016] ss:$2 sm:$0xff]
      %s5018 = scalar_lea.vmem [#allocation2], 240
      %v5019 = vld [vmem:[%s5018] ss:$2 sm:$0xff]
      %s5020 = scalar_lea.vmem [#allocation2], 264
      %v5021 = vld [vmem:[%s5020] ss:$2 sm:$0xff]
      %s5022 = scalar_lea.vmem [#allocation2], 288
      %v5023 = vld [vmem:[%s5022] ss:$2 sm:$0xff]
      %s5024 = scalar_lea.vmem [#allocation2], 312
      %v5025 = vld [vmem:[%s5024] ss:$2 sm:$0xff]
      %s5026 = scalar_lea.vmem [#allocation2], 336
      %v5027 = vld [vmem:[%s5026] ss:$2 sm:$0xff]
      %s5028 = scalar_lea.vmem [#allocation2], 360
      %v5029 = vld [vmem:[%s5028] ss:$2 sm:$0xff]
      %s5030 = scalar_lea.vmem [#allocation2], 384
      %v5031 = vld [vmem:[%s5030] ss:$2 sm:$0xff]
      %s5032 = scalar_lea.vmem [#allocation2], 1
      %v5033 = vld [vmem:[%s5032] ss:$2 sm:$0xff]
      %s5034 = scalar_lea.vmem [#allocation2], 25
      %v5035 = vld [vmem:[%s5034] ss:$2 sm:$0xff]
      %s5036 = scalar_lea.vmem [#allocation2], 49
      %v5037 = vld [vmem:[%s5036] ss:$2 sm:$0xff]
      %s5038 = scalar_lea.vmem [#allocation2], 73
      %v5039 = vld [vmem:[%s5038] ss:$2 sm:$0xff]
      %s5040 = scalar_lea.vmem [#allocation2], 97
      %v5041 = vld [vmem:[%s5040] ss:$2 sm:$0xff]
      %s5042 = scalar_lea.vmem [#allocation2], 121
      %v5043 = vld [vmem:[%s5042] ss:$2 sm:$0xff]
      %s5044 = scalar_lea.vmem [#allocation2], 145
      %v5045 = vld [vmem:[%s5044] ss:$2 sm:$0xff]
      %s5046 = scalar_lea.vmem [#allocation2], 169
      %v5047 = vld [vmem:[%s5046] ss:$2 sm:$0xff]
      %s5048 = scalar_lea.vmem [#allocation2], 193
      %v5049 = vld [vmem:[%s5048] ss:$2 sm:$0xff]
      %s5050 = scalar_lea.vmem [#allocation2], 217
      %v5051 = vld [vmem:[%s5050] ss:$2 sm:$0xff]
      %s5052 = scalar_lea.vmem [#allocation2], 241
      %v5053 = vld [vmem:[%s5052] ss:$2 sm:$0xff]
      %s5054 = scalar_lea.vmem [#allocation2], 265
      %v5055 = vld [vmem:[%s5054] ss:$2 sm:$0xff]
      %s5056 = scalar_lea.vmem [#allocation2], 289
      %v5057 = vld [vmem:[%s5056] ss:$2 sm:$0xff]
      %s5058 = scalar_lea.vmem [#allocation2], 313
      %v5059 = vld [vmem:[%s5058] ss:$2 sm:$0xff]
      %s5060 = scalar_lea.vmem [#allocation2], 337
      %v5061 = vld [vmem:[%s5060] ss:$2 sm:$0xff]
      %s5062 = scalar_lea.vmem [#allocation2], 361
      %v5063 = vld [vmem:[%s5062] ss:$2 sm:$0xff]
      %s5064 = scalar_lea.vmem [#allocation2], 385
      %v5065 = vld [vmem:[%s5064] ss:$2 sm:$0xff]
      %s5066 = scalar_lea.vmem [#allocation2], 2
      %v5067 = vld [vmem:[%s5066] ss:$2 sm:$0xff]
      %s5068 = scalar_lea.vmem [#allocation2], 26
      %v5069 = vld [vmem:[%s5068] ss:$2 sm:$0xff]
      %s5070 = scalar_lea.vmem [#allocation2], 50
      %v5071 = vld [vmem:[%s5070] ss:$2 sm:$0xff]
      %s5072 = scalar_lea.vmem [#allocation2], 74
      %v5073 = vld [vmem:[%s5072] ss:$2 sm:$0xff]
      %s5074 = scalar_lea.vmem [#allocation2], 98
      %v5075 = vld [vmem:[%s5074] ss:$2 sm:$0xff]
      %s5076 = scalar_lea.vmem [#allocation2], 122
      %v5077 = vld [vmem:[%s5076] ss:$2 sm:$0xff]
      %s5078 = scalar_lea.vmem [#allocation2], 146
      %v5079 = vld [vmem:[%s5078] ss:$2 sm:$0xff]
      %s5080 = scalar_lea.vmem [#allocation2], 170
      %v5081 = vld [vmem:[%s5080] ss:$2 sm:$0xff]
      %s5082 = scalar_lea.vmem [#allocation2], 194
      %v5083 = vld [vmem:[%s5082] ss:$2 sm:$0xff]
      %s5084 = scalar_lea.vmem [#allocation2], 218
      %v5085 = vld [vmem:[%s5084] ss:$2 sm:$0xff]
      %s5086 = scalar_lea.vmem [#allocation2], 242
      %v5087 = vld [vmem:[%s5086] ss:$2 sm:$0xff]
      %s5088 = scalar_lea.vmem [#allocation2], 266
      %v5089 = vld [vmem:[%s5088] ss:$2 sm:$0xff]
      %s5090 = scalar_lea.vmem [#allocation2], 290
      %v5091 = vld [vmem:[%s5090] ss:$2 sm:$0xff]
      %s5092 = scalar_lea.vmem [#allocation2], 314
      %v5093 = vld [vmem:[%s5092] ss:$2 sm:$0xff]
      %s5094 = scalar_lea.vmem [#allocation2], 338
      %v5095 = vld [vmem:[%s5094] ss:$2 sm:$0xff]
      %s5096 = scalar_lea.vmem [#allocation2], 362
      %v5097 = vld [vmem:[%s5096] ss:$2 sm:$0xff]
      %s5098 = scalar_lea.vmem [#allocation2], 386
      %v5099 = vld [vmem:[%s5098] ss:$2 sm:$0xff]
      %v5100 = vmax.f32 %v4999, %v5033
      %v5101 = vmax.f32 %v5001, %v5035
      %v5102 = vmax.f32 %v5003, %v5037
      %v5103 = vmax.f32 %v5005, %v5039
      %v5104 = vmax.f32 %v5007, %v5041
      %v5105 = vmax.f32 %v5009, %v5043
      %v5106 = vmax.f32 %v5011, %v5045
      %v5107 = vmax.f32 %v5013, %v5047
      %v5108 = vmax.f32 %v5015, %v5049
      %v5109 = vmax.f32 %v5017, %v5051
      %v5110 = vmax.f32 %v5019, %v5053
      %v5111 = vmax.f32 %v5021, %v5055
      %v5112 = vmax.f32 %v5023, %v5057
      %v5113 = vmax.f32 %v5025, %v5059
      %v5114 = vmax.f32 %v5027, %v5061
      %v5115 = vmax.f32 %v5029, %v5063
      %v5116 = vmax.f32 %v5031, %v5065
      %v5117 = vmax.f32 %v5100, %v5067
      %v5118 = vmax.f32 %v5101, %v5069
      %v5119 = vmax.f32 %v5102, %v5071
      %v5120 = vmax.f32 %v5103, %v5073
      %v5121 = vmax.f32 %v5104, %v5075
      %v5122 = vmax.f32 %v5105, %v5077
      %v5123 = vmax.f32 %v5106, %v5079
      %v5124 = vmax.f32 %v5107, %v5081
      %v5125 = vmax.f32 %v5108, %v5083
      %v5126 = vmax.f32 %v5109, %v5085
      %v5127 = vmax.f32 %v5110, %v5087
      %v5128 = vmax.f32 %v5111, %v5089
      %v5129 = vmax.f32 %v5112, %v5091
      %v5130 = vmax.f32 %v5113, %v5093
      %v5131 = vmax.f32 %v5114, %v5095
      %v5132 = vmax.f32 %v5115, %v5097
      %v5133 = vmax.f32 %v5116, %v5099
      %v5134 = vmax.f32 %v5117, %v5118
      %v5135 = vmax.f32 %v5119, %v5120
      %v5136 = vmax.f32 %v5121, %v5122
      %v5137 = vmax.f32 %v5123, %v5124
      %v5138 = vmax.f32 %v5125, %v5126
      %v5139 = vmax.f32 %v5127, %v5128
      %v5140 = vmax.f32 %v5129, %v5130
      %v5141 = vmax.f32 %v5131, %v5132
      %v5142 = vmax.f32 %v5134, %v5119
      %v5143 = vmax.f32 %v5135, %v5121
      %v5144 = vmax.f32 %v5136, %v5123
      %v5145 = vmax.f32 %v5137, %v5125
      %v5146 = vmax.f32 %v5138, %v5127
      %v5147 = vmax.f32 %v5139, %v5129
      %v5148 = vmax.f32 %v5140, %v5131
      %v5149 = vmax.f32 %v5141, %v5133
      %v5150 = vpack.c.bf16 %v5142, %v5142
      %v5151 = vpack.c.bf16 %v5143, %v5143
      %v5152 = vpack.c.bf16 %v5144, %v5144
      %v5153 = vpack.c.bf16 %v5145, %v5145
      %v5154 = vpack.c.bf16 %v5146, %v5146
      %v5155 = vpack.c.bf16 %v5147, %v5147
      %v5156 = vpack.c.bf16 %v5148, %v5148
      %v5157 = vpack.c.bf16 %v5149, %v5149
      %5158 = vst [vmem:[%s170] sm:$0xf] %v5150
      %5159 = vst [vmem:[%s170 + $0x4] sm:$0xf] %v5151
      %5160 = vst [vmem:[%s170 + $0x8] sm:$0xf] %v5152
      %5161 = vst [vmem:[%s170 + $0xc] sm:$0xf] %v5153
      %5162 = vst [vmem:[%s170 + $0x10] sm:$0xf] %v5154
      %5163 = vst [vmem:[%s170 + $0x14] sm:$0xf] %v5155
      %5164 = vst [vmem:[%s170 + $0x18] sm:$0xf] %v5156
      %5165 = vst [vmem:[%s170 + $0x1c] sm:$0xf] %v5157
      %p5166 = scmp.lt.s32.totalorder %s14, 1
      %s5167 = scalar_select %p5166, %s14, 1
      %s5168 = smul.addr %s5167, 8
      %s5169 = smul.addr %s5168, 4
      %s5170 = scalar_lea.vmem %s3, %s5169
      // Predicated region
      $region33: #{pool_block_forward.1} parent=31 // pred_check
        %p5171 = pneg %p100
      $region34: #{pool_block_forward.1} parent=31 // pred_check_branch
        %5173 = sbr.rel (%p5171) target = $region36
      $region35: #{pool_block_forward.1} parent=31 // pred_region
        _
      $region36: #{pool_block_forward.1} parent=31 // pred_fallthru
        _
    $region32: #{pool_block_forward.1} parent=5 // pred_fallthru
      _
    %p5174 = scmp.le.s32.totalorder 2, %s9
    // Predicated region
    $region37: #{pool_block_forward.1} parent=5 // pred_check
      %p5175 = pneg %p5174
    $region38: #{pool_block_forward.1} parent=5 // pred_check_branch
      %5177 = sbr.rel (%p5175) target = $region40
    $region39: #{pool_block_forward.1} parent=5 // pred_region
      %s5178 = ssub.s32 %s9, 2
      // Predicated region
      $region41: #{pool_block_forward.1} parent=39 // pred_check
        %p5179 = pneg %p106
      $region42: #{pool_block_forward.1} parent=39 // pred_check_branch
        %5181 = sbr.rel (%p5179) target = $region44
      $region43: #{pool_block_forward.1} parent=39 // pred_region
        %p5182 = scmp.lt.s32.totalorder %s15, 1
        %s5183 = scalar_select %p5182, %s15, 1
        %s5184 = smul.addr %s5183, 8
        %s5185 = smul.addr %s5184, 4
        %s5186 = scalar_lea.vmem %s3, %s5185
      $region44: #{pool_block_forward.1} parent=39 // pred_fallthru
        _
    $region40: #{pool_block_forward.1} parent=5 // pred_fallthru
      _
  $region6: #{pool_block_forward.1} parent=0 // loop_footer
    %s13 = sadd.s32 1, %s9
  $region7: #{pool_block_forward.1} parent=0 // loop_footer_branch
    %8 = sbr.rel target = $region3
  $region8: #{pool_block_forward.1} parent=0 // loop_exit
    _

</llo_original>
